<compile_context>
chip_gen: v6e
topology: v6e:2x2x1
jax: 0.10.0
libtpu: 0.0.40
codegen_flags: <defaults>
</compile_context>

<pallas_src>
import functools

import jax
import jax.numpy as jnp
from jax.experimental import pallas as pl
from jax.experimental.pallas import tpu as pltpu


def _seq2seq_kernel(
    seq_emb_ref,   # (S, TB, H)     source token embeddings, time-major
    enc_wih_ref,   # (H, 4H)        encoder LSTM input weights   (gate order i,f,o,g)
    enc_whh_ref,   # (H, 4H)        encoder LSTM hidden weights
    enc_b_ref,     # (1, 4H)        encoder LSTM bias (b_ih + b_hh)
    dec_w_ref,     # (Vp+H, 4H)     rows [0:Vp)  = pad(dec_emb @ Wih + b)
                   #                rows [Vp: )  = dec Whh
    out_wh_ref,    # (H, Vp)        output projection, hidden half (lane-padded)
    out_wc_ref,    # (H, Vp)        output projection, context half (lane-padded)
    out_b_ref,     # (1, Vp)        output bias (padded lanes = -1e30)
    out_ref,       # (max_len, TB, Vp) logits, row 0 == 0
    xg_ref,        # scratch (S, TB, 4H)  precomputed encoder input-gate projections
    enc_seq_ref,   # scratch (S, TB, H)   encoder outputs (time-major)
    ev_ref,        # scratch (S, TB, Vp)  enc_out @ out_wc (attention values)
    *,
    v_real,
):
    S, TB, H = seq_emb_ref.shape
    Vp = out_b_ref.shape[1]
    max_len = out_ref.shape[0]
    f32 = jnp.float32
    H3 = 3 * H

    # hoisted iotas (broadcast_in_dim is not CSE'd inside loops)
    lane4 = jax.lax.broadcasted_iota(jnp.int32, (TB, 4 * H), 1)
    col = jax.lax.broadcasted_iota(jnp.int32, (TB, Vp), 1)

    def act_split(gates):
        # gate columns are packed [i, f, o, g]: one sigmoid + one tanh per step
        a = jnp.where(lane4 < H3, jax.nn.sigmoid(gates), jnp.tanh(gates))
        return a[:, 0:H], a[:, H:2 * H], a[:, 2 * H:H3], a[:, H3:4 * H]  # i, f, o, g

    # ---- encoder input projection for ALL (S, TB) steps: one matmul ----
    xg_ref[...] = (
        jnp.dot(seq_emb_ref[...].reshape(S * TB, H), enc_wih_ref[...],
                preferred_element_type=f32)
        + enc_b_ref[...]
    ).reshape(S, TB, 4 * H)

    # ---------------- encoder: LSTM over the source sequence ----------------
    def enc_step(t, carry):
        h, c = carry
        gates = xg_ref[t] + jnp.dot(h, enc_whh_ref[...],
                                    preferred_element_type=f32)        # (TB, 4H)
        i, f, o, g = act_split(gates)
        c = f * c + i * g
        h = o * jnp.tanh(c)
        enc_seq_ref[t] = h
        return (h, c)

    h0 = jnp.zeros((TB, H), f32)
    c0 = jnp.zeros((TB, H), f32)
    h_enc, c_enc = jax.lax.fori_loop(0, S, enc_step, (h0, c0), unroll=True)

    # ---- attention "values" projected once: EV = enc_out @ Wc ----
    ev_ref[...] = jnp.dot(
        enc_seq_ref[...].reshape(S * TB, H), out_wc_ref[...],
        preferred_element_type=f32).reshape(S, TB, Vp)

    # outputs[0] stays zero (reference loop starts at t = 1)
    out_ref[0] = jnp.zeros((TB, Vp), f32)

    # -------- decoder: greedy loop with attention + argmax feedback ---------
    def dec_step(t, carry):
        h, c, onehot = carry                                           # (TB,H)(TB,H)(TB,Vp)

        # fused LSTM gates: embedding lookup + input proj + hidden proj in ONE matmul
        xin = jnp.concatenate([onehot, h], axis=1)                     # (TB, Vp+H)
        gates = jnp.dot(xin, dec_w_ref[...], preferred_element_type=f32)
        i, f, o, g = act_split(gates)
        c = f * c + i * g
        h = o * jnp.tanh(c)

        # dot-product attention over encoder outputs (no transpose, no batched matmul)
        enc = enc_seq_ref[...]                                         # (S, TB, H)
        sc = jnp.sum(enc * h[None, :, :], axis=-1, keepdims=True)      # (S, TB, 1)
        sc = sc - jnp.max(sc, axis=0, keepdims=True)
        e = jnp.exp(sc)
        attn = e / jnp.sum(e, axis=0, keepdims=True)                   # exact normalization
        av = jnp.sum(attn * ev_ref[...], axis=0)                       # (TB, Vp) == context @ Wc

        logits = (jnp.dot(h, out_wh_ref[...], preferred_element_type=f32)
                  + av + out_b_ref[...])                               # (TB, Vp)
        out_ref[t] = logits

        # greedy argmax: first max index (torch.max(1)[1] semantics), real cols only
        maxv = jnp.max(logits, axis=1, keepdims=True)
        cand = jnp.where((logits == maxv) & (col < v_real), col, Vp)
        tok = jnp.min(cand, axis=1, keepdims=True)                     # (TB, 1) int32
        onehot_next = (col == tok).astype(f32)                         # (TB, Vp)
        return (h, c, onehot_next)

    onehot_sos = (col == 0).astype(f32)                                # input token 0 (<sos>)
    jax.lax.fori_loop(1, max_len, dec_step, (h_enc, c_enc, onehot_sos),
                      unroll=True)


def _reorder_ifgo_to_ifog(w):
    """Repack the 4H gate axis from PyTorch order [i,f,g,o] to [i,f,o,g]."""
    h = w.shape[-1] // 4
    return jnp.concatenate([w[..., :2 * h], w[..., 3 * h:], w[..., 2 * h:3 * h]],
                           axis=-1)


def _round_up(x, m):
    return (x + m - 1) // m * m


@functools.partial(jax.jit, static_argnames=("max_len",))
def full_model_forward(sequences, max_len, params):
    """Encoder + greedy attention decoder for a batch of independent source
    sequences (the reference module is the batch==1 special case).
    Returns (max_len, B, target_vocab) logits; row 0 is all zeros."""
    if sequences.ndim == 1:
        sequences = sequences[None, :]
    B, S = sequences.shape
    H = params["enc_whh"].shape[0]
    V = params["out_b"].shape[1]
    Vp = _round_up(V, 128)
    NEG = -1e30

    # token embeddings for all sequences, time-major: (S, B, H)   (glue: gather)
    seq_emb = jnp.swapaxes(params["src_emb"][sequences], 0, 1).astype(jnp.float32)

    # gate repack so the kernel applies one sigmoid (0:3H) + one tanh (3H:4H)
    enc_wih = _reorder_ifgo_to_ifog(params["enc_wih"])
    enc_whh = _reorder_ifgo_to_ifog(params["enc_whh"])
    enc_b = _reorder_ifgo_to_ifog(params["enc_b"])
    dec_wih = _reorder_ifgo_to_ifog(params["dec_wih"])
    dec_whh = _reorder_ifgo_to_ifog(params["dec_whh"])
    dec_b = _reorder_ifgo_to_ifog(params["dec_b"])

    # Fold decoder embedding + input projection (+ bias: one-hot rows sum to 1)
    # into one table, pad rows to Vp, stack hidden weights below it so the
    # per-step decoder gates are a single fused matmul.
    dec_tbl = jnp.dot(params["dec_emb"], dec_wih) + dec_b                    # (V, 4H)
    dec_tbl = jnp.pad(dec_tbl, ((0, Vp - V), (0, 0)))                        # (Vp, 4H)
    dec_w = jnp.concatenate([dec_tbl, dec_whh], axis=0)                      # (Vp+H, 4H)

    # output projection, lane-padded to Vp; padded bias = -1e30 so the greedy
    # argmax can never select a padding column
    out_wh = jnp.pad(params["out_wh"], ((0, 0), (0, Vp - V)))
    out_wc = jnp.pad(params["out_wc"], ((0, 0), (0, Vp - V)))
    out_b = jnp.pad(params["out_b"], ((0, 0), (0, Vp - V)), constant_values=NEG)

    # batch tiling: one sub-batch per grid step ("parallel" -> both v7x TensorCores)
    TB = 8 if B % 8 == 0 else B
    grid = (B // TB,)

    def wspec(shape):
        return pl.BlockSpec(shape, lambda i, _s=shape: (0,) * len(_s))

    out3d = pl.pallas_call(
        functools.partial(_seq2seq_kernel, v_real=V),
        out_shape=jax.ShapeDtypeStruct((max_len, B, Vp), jnp.float32),
        grid=grid,
        in_specs=[
            pl.BlockSpec((S, TB, H), lambda i: (0, i, 0)),   # seq_emb (batch-blocked)
            wspec((H, 4 * H)),                               # enc_wih
            wspec((H, 4 * H)),                               # enc_whh
            wspec((1, 4 * H)),                               # enc_b
            wspec((Vp + H, 4 * H)),                          # dec_w
            wspec((H, Vp)),                                  # out_wh
            wspec((H, Vp)),                                  # out_wc
            wspec((1, Vp)),                                  # out_b
        ],
        out_specs=pl.BlockSpec((max_len, TB, Vp), lambda i: (0, i, 0)),
        scratch_shapes=[
            pltpu.VMEM((S, TB, 4 * H), jnp.float32),   # precomputed encoder gates
            pltpu.VMEM((S, TB, H), jnp.float32),       # encoder outputs
            pltpu.VMEM((S, TB, Vp), jnp.float32),      # enc_out @ out_wc
        ],
        compiler_params=pltpu.CompilerParams(dimension_semantics=("parallel",)),
    )(seq_emb, enc_wih, enc_whh, enc_b, dec_w, out_wh, out_wc, out_b)

    return out3d[:, :, :V]                               # (max_len, B, V)


def init_params(key, src_vocab, tgt_vocab, hidden):
    ks = jax.random.split(key, 12)
    s = 0.1
    p = {
        "src_emb": s * jax.random.normal(ks[0], (src_vocab, hidden), jnp.float32),
        "enc_wih": s * jax.random.normal(ks[1], (hidden, 4 * hidden), jnp.float32),
        "enc_whh": s * jax.random.normal(ks[2], (hidden, 4 * hidden), jnp.float32),
        # enc_b / dec_b represent (b_ih + b_hh) of the reference LSTM
        "enc_b":   s * jax.random.normal(ks[3], (1, 4 * hidden), jnp.float32),
        "dec_emb": s * jax.random.normal(ks[4], (tgt_vocab, hidden), jnp.float32),
        "dec_wih": s * jax.random.normal(ks[5], (hidden, 4 * hidden), jnp.float32),
        "dec_whh": s * jax.random.normal(ks[6], (hidden, 4 * hidden), jnp.float32),
        "dec_b":   s * jax.random.normal(ks[7], (1, 4 * hidden), jnp.float32),
        "out_wh":  s * jax.random.normal(ks[8], (hidden, tgt_vocab), jnp.float32),
        "out_wc":  s * jax.random.normal(ks[9], (hidden, tgt_vocab), jnp.float32),
        "out_b":   s * jax.random.normal(ks[10], (1, tgt_vocab), jnp.float32),
        # `combine` Linear (2H -> H) exists in the module but is only used on the
        # graph=True branch, which is not exercised here (graph=False).
        "combine_w": s * jax.random.normal(ks[11], (2 * hidden, hidden), jnp.float32),
    }
    return p
    # TODO(synk): graph=True branch (graph_encoder GCN + combine + ReLU) not implemented.
    # TODO(synk): bf16 weight casting (v6e/v7x micro-opt) intentionally skipped to keep
    #             f32 parity with the PyTorch reference (and v5e has no bf16 VPU path).


if __name__ == "__main__":
    key = jax.random.PRNGKey(0)
    SRC_VOCAB, TGT_VOCAB, HIDDEN = 24, 32, 32
    SEQ_LEN, MAX_LEN, BATCH = 8, 8, 16

    k_seq, k_par = jax.random.split(key)
    sequences = jax.random.randint(k_seq, (BATCH, SEQ_LEN), 0, SRC_VOCAB, dtype=jnp.int32)
    target = jnp.zeros((MAX_LEN, 1), jnp.int32)   # only target.shape[0] is used
    params = init_params(k_par, SRC_VOCAB, TGT_VOCAB, HIDDEN)

    # batched call (B independent sequences share the matmul M dimension)
    outputs = full_model_forward(sequences, int(target.shape[0]), params)
    jax.block_until_ready(outputs)
    assert outputs.shape == (MAX_LEN, BATCH, TGT_VOCAB)
    assert bool(jnp.all(outputs[0] == 0.0))
    assert bool(jnp.all(jnp.isfinite(outputs)))

    # reference-style single-sequence call (batch = 1, exactly the PyTorch module)
    out1 = full_model_forward(sequences[0], int(target.shape[0]), params)
    jax.block_until_ready(out1)
    assert out1.shape == (MAX_LEN, 1, TGT_VOCAB)
    assert bool(jnp.all(jnp.isfinite(out1)))

    print("KERNEL_OK")
</pallas_src>

<mosaic_0001>
module attributes {stable_mosaic.version = 11 : i64} {
  func.func @_seq2seq_kernel(%arg0: i32, %arg1: memref<8x8x32xf32, #tpu.memory_space<vmem>>, %arg2: memref<32x128xf32, #tpu.memory_space<vmem>>, %arg3: memref<32x128xf32, #tpu.memory_space<vmem>>, %arg4: memref<1x128xf32, #tpu.memory_space<vmem>>, %arg5: memref<160x128xf32, #tpu.memory_space<vmem>>, %arg6: memref<32x128xf32, #tpu.memory_space<vmem>>, %arg7: memref<32x128xf32, #tpu.memory_space<vmem>>, %arg8: memref<1x128xf32, #tpu.memory_space<vmem>>, %arg9: memref<8x8x128xf32, #tpu.memory_space<vmem>>, %arg10: memref<8x8x128xf32, #tpu.memory_space<vmem>>, %arg11: memref<8x8x32xf32, #tpu.memory_space<vmem>>, %arg12: memref<8x8x128xf32, #tpu.memory_space<vmem>>) attributes {dimension_semantics = [#tpu.dimension_semantics<parallel>], iteration_bounds = array<i64: 2>, scalar_prefetch = 0 : i64, scratch_operands = 3 : i64, tpu.core_type = #tpu.core_type<tc>, window_params = [{transform_indices = @transform_0, window_bounds = array<i64: 8, 8, 32>}, {pipeline_mode = #tpu.pipeline_mode<synchronous>, transform_indices = @transform_1, window_bounds = array<i64: 32, 128>}, {pipeline_mode = #tpu.pipeline_mode<synchronous>, transform_indices = @transform_2, window_bounds = array<i64: 32, 128>}, {pipeline_mode = #tpu.pipeline_mode<synchronous>, transform_indices = @transform_3, window_bounds = array<i64: 1, 128>}, {pipeline_mode = #tpu.pipeline_mode<synchronous>, transform_indices = @transform_4, window_bounds = array<i64: 160, 128>}, {pipeline_mode = #tpu.pipeline_mode<synchronous>, transform_indices = @transform_5, window_bounds = array<i64: 32, 128>}, {pipeline_mode = #tpu.pipeline_mode<synchronous>, transform_indices = @transform_6, window_bounds = array<i64: 32, 128>}, {pipeline_mode = #tpu.pipeline_mode<synchronous>, transform_indices = @transform_7, window_bounds = array<i64: 1, 128>}, {transform_indices = @transform_8, window_bounds = array<i64: 8, 8, 128>}]} {
    %0 = tpu.iota {dimensions = array<i32: 1>} : vector<8x128xi32>
    %1 = tpu.iota {dimensions = array<i32: 1>} : vector<8x128xi32>
    %c0 = arith.constant 0 : index
    %c0_0 = arith.constant 0 : index
    %c0_1 = arith.constant 0 : index
    %2 = vector.load %arg1[%c0, %c0_0, %c0_1] : memref<8x8x32xf32, #tpu.memory_space<vmem>>, vector<8x8x32xf32>
    %3 = vector.shape_cast %2 : vector<8x8x32xf32> to vector<64x32xf32>
    %c0_2 = arith.constant 0 : index
    %c0_3 = arith.constant 0 : index
    %4 = vector.load %arg2[%c0_2, %c0_3] : memref<32x128xf32, #tpu.memory_space<vmem>>, vector<32x128xf32>
    %cst = arith.constant dense<0.000000e+00> : vector<64x128xf32>
    %5 = tpu.matmul %3, %4, %cst {dimension_numbers = #tpu.dot_dimension_numbers<[1], [0], [0], [1], [0, 0, 1, 1], [], []>} : vector<64x32xf32>, vector<32x128xf32>, vector<64x128xf32> -> vector<64x128xf32>
    %c0_4 = arith.constant 0 : index
    %c0_5 = arith.constant 0 : index
    %6 = vector.load %arg4[%c0_4, %c0_5] : memref<1x128xf32, #tpu.memory_space<vmem>>, vector<1x128xf32>
    %7 = vector.broadcast %6 : vector<1x128xf32> to vector<64x128xf32>
    %8 = arith.addf %5, %7 : vector<64x128xf32>
    %9 = vector.shape_cast %8 : vector<64x128xf32> to vector<8x8x128xf32>
    %c0_6 = arith.constant 0 : index
    %c0_7 = arith.constant 0 : index
    %c0_8 = arith.constant 0 : index
    %10 = vector.load %arg10[%c0_6, %c0_7, %c0_8] : memref<8x8x128xf32, #tpu.memory_space<vmem>>, vector<8x8x128xf32>
    tpu.vector_store %arg10[%c0_6, %c0_7, %c0_8], %9 {strides = array<i32>} : memref<8x8x128xf32, #tpu.memory_space<vmem>>, vector<8x8x128xf32>,
    %cst_9 = arith.constant 0.000000e+00 : f32
    %11 = vector.broadcast %cst_9 : f32 to vector<8x32xf32>
    %cst_10 = arith.constant 0.000000e+00 : f32
    %12 = vector.broadcast %cst_10 : f32 to vector<8x32xf32>
    %c0_i32 = arith.constant 0 : i32
    %13 = arith.index_cast %c0_i32 : i32 to index
    %c0_11 = arith.constant 0 : index
    %c0_12 = arith.constant 0 : index
    %14 = vector.load %arg10[%13, %c0_11, %c0_12] : memref<8x8x128xf32, #tpu.memory_space<vmem>>, vector<1x8x128xf32>
    %15 = vector.shape_cast %14 : vector<1x8x128xf32> to vector<8x128xf32>
    %c0_13 = arith.constant 0 : index
    %c0_14 = arith.constant 0 : index
    %16 = vector.load %arg3[%c0_13, %c0_14] : memref<32x128xf32, #tpu.memory_space<vmem>>, vector<32x128xf32>
    %cst_15 = arith.constant dense<0.000000e+00> : vector<8x128xf32>
    %17 = tpu.matmul %11, %16, %cst_15 {dimension_numbers = #tpu.dot_dimension_numbers<[1], [0], [0], [1], [0, 0, 1, 1], [], []>} : vector<8x32xf32>, vector<32x128xf32>, vector<8x128xf32> -> vector<8x128xf32>
    %18 = arith.addf %15, %17 : vector<8x128xf32>
    %c96_i32 = arith.constant 96 : i32
    %19 = vector.broadcast %c96_i32 : i32 to vector<8x128xi32>
    %20 = arith.cmpi slt, %0, %19 : vector<8x128xi32>
    %21 = arith.negf %18 : vector<8x128xf32>
    %22 = math.exp %21 : vector<8x128xf32>
    %cst_16 = arith.constant 1.000000e+00 : f32
    %23 = vector.broadcast %cst_16 : f32 to vector<8x128xf32>
    %24 = arith.addf %23, %22 : vector<8x128xf32>
    %25 = arith.divf %23, %24 : vector<8x128xf32>
    %26 = math.tanh %18 : vector<8x128xf32>
    %27 = arith.select %20, %25, %26 : vector<8x128xi1>, vector<8x128xf32>
    %28 = vector.extract_strided_slice %27 {offsets = [0, 0], sizes = [8, 32], strides = [1, 1]} : vector<8x128xf32> to vector<8x32xf32>
    %29 = vector.extract_strided_slice %27 {offsets = [0, 32], sizes = [8, 32], strides = [1, 1]} : vector<8x128xf32> to vector<8x32xf32>
    %30 = vector.extract_strided_slice %27 {offsets = [0, 64], sizes = [8, 32], strides = [1, 1]} : vector<8x128xf32> to vector<8x32xf32>
    %31 = vector.extract_strided_slice %27 {offsets = [0, 96], sizes = [8, 32], strides = [1, 1]} : vector<8x128xf32> to vector<8x32xf32>
    %32 = arith.mulf %29, %12 : vector<8x32xf32>
    %33 = arith.mulf %28, %31 : vector<8x32xf32>
    %34 = arith.addf %32, %33 : vector<8x32xf32>
    %35 = math.tanh %34 : vector<8x32xf32>
    %36 = arith.mulf %30, %35 : vector<8x32xf32>
    %37 = arith.index_cast %c0_i32 : i32 to index
    %c0_17 = arith.constant 0 : index
    %c0_18 = arith.constant 0 : index
    %38 = vector.load %arg11[%37, %c0_17, %c0_18] : memref<8x8x32xf32, #tpu.memory_space<vmem>>, vector<1x8x32xf32>
    %39 = vector.shape_cast %38 : vector<1x8x32xf32> to vector<8x32xf32>
    %40 = vector.shape_cast %36 : vector<8x32xf32> to vector<1x8x32xf32>
    tpu.vector_store %arg11[%37, %c0_17, %c0_18], %40 {strides = array<i32>} : memref<8x8x32xf32, #tpu.memory_space<vmem>>, vector<1x8x32xf32>,
    %c1_i32 = arith.constant 1 : i32
    %41 = arith.index_cast %c1_i32 : i32 to index
    %c0_19 = arith.constant 0 : index
    %c0_20 = arith.constant 0 : index
    %42 = vector.load %arg10[%41, %c0_19, %c0_20] : memref<8x8x128xf32, #tpu.memory_space<vmem>>, vector<1x8x128xf32>
    %43 = vector.shape_cast %42 : vector<1x8x128xf32> to vector<8x128xf32>
    %c0_21 = arith.constant 0 : index
    %c0_22 = arith.constant 0 : index
    %44 = vector.load %arg3[%c0_21, %c0_22] : memref<32x128xf32, #tpu.memory_space<vmem>>, vector<32x128xf32>
    %cst_23 = arith.constant dense<0.000000e+00> : vector<8x128xf32>
    %45 = tpu.matmul %36, %44, %cst_23 {dimension_numbers = #tpu.dot_dimension_numbers<[1], [0], [0], [1], [0, 0, 1, 1], [], []>} : vector<8x32xf32>, vector<32x128xf32>, vector<8x128xf32> -> vector<8x128xf32>
    %46 = arith.addf %43, %45 : vector<8x128xf32>
    %c96_i32_24 = arith.constant 96 : i32
    %47 = vector.broadcast %c96_i32_24 : i32 to vector<8x128xi32>
    %48 = arith.cmpi slt, %0, %47 : vector<8x128xi32>
    %49 = arith.negf %46 : vector<8x128xf32>
    %50 = math.exp %49 : vector<8x128xf32>
    %cst_25 = arith.constant 1.000000e+00 : f32
    %51 = vector.broadcast %cst_25 : f32 to vector<8x128xf32>
    %52 = arith.addf %51, %50 : vector<8x128xf32>
    %53 = arith.divf %51, %52 : vector<8x128xf32>
    %54 = math.tanh %46 : vector<8x128xf32>
    %55 = arith.select %48, %53, %54 : vector<8x128xi1>, vector<8x128xf32>
    %56 = vector.extract_strided_slice %55 {offsets = [0, 0], sizes = [8, 32], strides = [1, 1]} : vector<8x128xf32> to vector<8x32xf32>
    %57 = vector.extract_strided_slice %55 {offsets = [0, 32], sizes = [8, 32], strides = [1, 1]} : vector<8x128xf32> to vector<8x32xf32>
    %58 = vector.extract_strided_slice %55 {offsets = [0, 64], sizes = [8, 32], strides = [1, 1]} : vector<8x128xf32> to vector<8x32xf32>
    %59 = vector.extract_strided_slice %55 {offsets = [0, 96], sizes = [8, 32], strides = [1, 1]} : vector<8x128xf32> to vector<8x32xf32>
    %60 = arith.mulf %57, %34 : vector<8x32xf32>
    %61 = arith.mulf %56, %59 : vector<8x32xf32>
    %62 = arith.addf %60, %61 : vector<8x32xf32>
    %63 = math.tanh %62 : vector<8x32xf32>
    %64 = arith.mulf %58, %63 : vector<8x32xf32>
    %65 = arith.index_cast %c1_i32 : i32 to index
    %c0_26 = arith.constant 0 : index
    %c0_27 = arith.constant 0 : index
    %66 = vector.load %arg11[%65, %c0_26, %c0_27] : memref<8x8x32xf32, #tpu.memory_space<vmem>>, vector<1x8x32xf32>
    %67 = vector.shape_cast %66 : vector<1x8x32xf32> to vector<8x32xf32>
    %68 = vector.shape_cast %64 : vector<8x32xf32> to vector<1x8x32xf32>
    tpu.vector_store %arg11[%65, %c0_26, %c0_27], %68 {strides = array<i32>} : memref<8x8x32xf32, #tpu.memory_space<vmem>>, vector<1x8x32xf32>,
    %c2_i32 = arith.constant 2 : i32
    %69 = arith.index_cast %c2_i32 : i32 to index
    %c0_28 = arith.constant 0 : index
    %c0_29 = arith.constant 0 : index
    %70 = vector.load %arg10[%69, %c0_28, %c0_29] : memref<8x8x128xf32, #tpu.memory_space<vmem>>, vector<1x8x128xf32>
    %71 = vector.shape_cast %70 : vector<1x8x128xf32> to vector<8x128xf32>
    %c0_30 = arith.constant 0 : index
    %c0_31 = arith.constant 0 : index
    %72 = vector.load %arg3[%c0_30, %c0_31] : memref<32x128xf32, #tpu.memory_space<vmem>>, vector<32x128xf32>
    %cst_32 = arith.constant dense<0.000000e+00> : vector<8x128xf32>
    %73 = tpu.matmul %64, %72, %cst_32 {dimension_numbers = #tpu.dot_dimension_numbers<[1], [0], [0], [1], [0, 0, 1, 1], [], []>} : vector<8x32xf32>, vector<32x128xf32>, vector<8x128xf32> -> vector<8x128xf32>
    %74 = arith.addf %71, %73 : vector<8x128xf32>
    %c96_i32_33 = arith.constant 96 : i32
    %75 = vector.broadcast %c96_i32_33 : i32 to vector<8x128xi32>
    %76 = arith.cmpi slt, %0, %75 : vector<8x128xi32>
    %77 = arith.negf %74 : vector<8x128xf32>
    %78 = math.exp %77 : vector<8x128xf32>
    %cst_34 = arith.constant 1.000000e+00 : f32
    %79 = vector.broadcast %cst_34 : f32 to vector<8x128xf32>
    %80 = arith.addf %79, %78 : vector<8x128xf32>
    %81 = arith.divf %79, %80 : vector<8x128xf32>
    %82 = math.tanh %74 : vector<8x128xf32>
    %83 = arith.select %76, %81, %82 : vector<8x128xi1>, vector<8x128xf32>
    %84 = vector.extract_strided_slice %83 {offsets = [0, 0], sizes = [8, 32], strides = [1, 1]} : vector<8x128xf32> to vector<8x32xf32>
    %85 = vector.extract_strided_slice %83 {offsets = [0, 32], sizes = [8, 32], strides = [1, 1]} : vector<8x128xf32> to vector<8x32xf32>
    %86 = vector.extract_strided_slice %83 {offsets = [0, 64], sizes = [8, 32], strides = [1, 1]} : vector<8x128xf32> to vector<8x32xf32>
    %87 = vector.extract_strided_slice %83 {offsets = [0, 96], sizes = [8, 32], strides = [1, 1]} : vector<8x128xf32> to vector<8x32xf32>
    %88 = arith.mulf %85, %62 : vector<8x32xf32>
    %89 = arith.mulf %84, %87 : vector<8x32xf32>
    %90 = arith.addf %88, %89 : vector<8x32xf32>
    %91 = math.tanh %90 : vector<8x32xf32>
    %92 = arith.mulf %86, %91 : vector<8x32xf32>
    %93 = arith.index_cast %c2_i32 : i32 to index
    %c0_35 = arith.constant 0 : index
    %c0_36 = arith.constant 0 : index
    %94 = vector.load %arg11[%93, %c0_35, %c0_36] : memref<8x8x32xf32, #tpu.memory_space<vmem>>, vector<1x8x32xf32>
    %95 = vector.shape_cast %94 : vector<1x8x32xf32> to vector<8x32xf32>
    %96 = vector.shape_cast %92 : vector<8x32xf32> to vector<1x8x32xf32>
    tpu.vector_store %arg11[%93, %c0_35, %c0_36], %96 {strides = array<i32>} : memref<8x8x32xf32, #tpu.memory_space<vmem>>, vector<1x8x32xf32>,
    %c3_i32 = arith.constant 3 : i32
    %97 = arith.index_cast %c3_i32 : i32 to index
    %c0_37 = arith.constant 0 : index
    %c0_38 = arith.constant 0 : index
    %98 = vector.load %arg10[%97, %c0_37, %c0_38] : memref<8x8x128xf32, #tpu.memory_space<vmem>>, vector<1x8x128xf32>
    %99 = vector.shape_cast %98 : vector<1x8x128xf32> to vector<8x128xf32>
    %c0_39 = arith.constant 0 : index
    %c0_40 = arith.constant 0 : index
    %100 = vector.load %arg3[%c0_39, %c0_40] : memref<32x128xf32, #tpu.memory_space<vmem>>, vector<32x128xf32>
    %cst_41 = arith.constant dense<0.000000e+00> : vector<8x128xf32>
    %101 = tpu.matmul %92, %100, %cst_41 {dimension_numbers = #tpu.dot_dimension_numbers<[1], [0], [0], [1], [0, 0, 1, 1], [], []>} : vector<8x32xf32>, vector<32x128xf32>, vector<8x128xf32> -> vector<8x128xf32>
    %102 = arith.addf %99, %101 : vector<8x128xf32>
    %c96_i32_42 = arith.constant 96 : i32
    %103 = vector.broadcast %c96_i32_42 : i32 to vector<8x128xi32>
    %104 = arith.cmpi slt, %0, %103 : vector<8x128xi32>
    %105 = arith.negf %102 : vector<8x128xf32>
    %106 = math.exp %105 : vector<8x128xf32>
    %cst_43 = arith.constant 1.000000e+00 : f32
    %107 = vector.broadcast %cst_43 : f32 to vector<8x128xf32>
    %108 = arith.addf %107, %106 : vector<8x128xf32>
    %109 = arith.divf %107, %108 : vector<8x128xf32>
    %110 = math.tanh %102 : vector<8x128xf32>
    %111 = arith.select %104, %109, %110 : vector<8x128xi1>, vector<8x128xf32>
    %112 = vector.extract_strided_slice %111 {offsets = [0, 0], sizes = [8, 32], strides = [1, 1]} : vector<8x128xf32> to vector<8x32xf32>
    %113 = vector.extract_strided_slice %111 {offsets = [0, 32], sizes = [8, 32], strides = [1, 1]} : vector<8x128xf32> to vector<8x32xf32>
    %114 = vector.extract_strided_slice %111 {offsets = [0, 64], sizes = [8, 32], strides = [1, 1]} : vector<8x128xf32> to vector<8x32xf32>
    %115 = vector.extract_strided_slice %111 {offsets = [0, 96], sizes = [8, 32], strides = [1, 1]} : vector<8x128xf32> to vector<8x32xf32>
    %116 = arith.mulf %113, %90 : vector<8x32xf32>
    %117 = arith.mulf %112, %115 : vector<8x32xf32>
    %118 = arith.addf %116, %117 : vector<8x32xf32>
    %119 = math.tanh %118 : vector<8x32xf32>
    %120 = arith.mulf %114, %119 : vector<8x32xf32>
    %121 = arith.index_cast %c3_i32 : i32 to index
    %c0_44 = arith.constant 0 : index
    %c0_45 = arith.constant 0 : index
    %122 = vector.load %arg11[%121, %c0_44, %c0_45] : memref<8x8x32xf32, #tpu.memory_space<vmem>>, vector<1x8x32xf32>
    %123 = vector.shape_cast %122 : vector<1x8x32xf32> to vector<8x32xf32>
    %124 = vector.shape_cast %120 : vector<8x32xf32> to vector<1x8x32xf32>
    tpu.vector_store %arg11[%121, %c0_44, %c0_45], %124 {strides = array<i32>} : memref<8x8x32xf32, #tpu.memory_space<vmem>>, vector<1x8x32xf32>,
    %c4_i32 = arith.constant 4 : i32
    %125 = arith.index_cast %c4_i32 : i32 to index
    %c0_46 = arith.constant 0 : index
    %c0_47 = arith.constant 0 : index
    %126 = vector.load %arg10[%125, %c0_46, %c0_47] : memref<8x8x128xf32, #tpu.memory_space<vmem>>, vector<1x8x128xf32>
    %127 = vector.shape_cast %126 : vector<1x8x128xf32> to vector<8x128xf32>
    %c0_48 = arith.constant 0 : index
    %c0_49 = arith.constant 0 : index
    %128 = vector.load %arg3[%c0_48, %c0_49] : memref<32x128xf32, #tpu.memory_space<vmem>>, vector<32x128xf32>
    %cst_50 = arith.constant dense<0.000000e+00> : vector<8x128xf32>
    %129 = tpu.matmul %120, %128, %cst_50 {dimension_numbers = #tpu.dot_dimension_numbers<[1], [0], [0], [1], [0, 0, 1, 1], [], []>} : vector<8x32xf32>, vector<32x128xf32>, vector<8x128xf32> -> vector<8x128xf32>
    %130 = arith.addf %127, %129 : vector<8x128xf32>
    %c96_i32_51 = arith.constant 96 : i32
    %131 = vector.broadcast %c96_i32_51 : i32 to vector<8x128xi32>
    %132 = arith.cmpi slt, %0, %131 : vector<8x128xi32>
    %133 = arith.negf %130 : vector<8x128xf32>
    %134 = math.exp %133 : vector<8x128xf32>
    %cst_52 = arith.constant 1.000000e+00 : f32
    %135 = vector.broadcast %cst_52 : f32 to vector<8x128xf32>
    %136 = arith.addf %135, %134 : vector<8x128xf32>
    %137 = arith.divf %135, %136 : vector<8x128xf32>
    %138 = math.tanh %130 : vector<8x128xf32>
    %139 = arith.select %132, %137, %138 : vector<8x128xi1>, vector<8x128xf32>
    %140 = vector.extract_strided_slice %139 {offsets = [0, 0], sizes = [8, 32], strides = [1, 1]} : vector<8x128xf32> to vector<8x32xf32>
    %141 = vector.extract_strided_slice %139 {offsets = [0, 32], sizes = [8, 32], strides = [1, 1]} : vector<8x128xf32> to vector<8x32xf32>
    %142 = vector.extract_strided_slice %139 {offsets = [0, 64], sizes = [8, 32], strides = [1, 1]} : vector<8x128xf32> to vector<8x32xf32>
    %143 = vector.extract_strided_slice %139 {offsets = [0, 96], sizes = [8, 32], strides = [1, 1]} : vector<8x128xf32> to vector<8x32xf32>
    %144 = arith.mulf %141, %118 : vector<8x32xf32>
    %145 = arith.mulf %140, %143 : vector<8x32xf32>
    %146 = arith.addf %144, %145 : vector<8x32xf32>
    %147 = math.tanh %146 : vector<8x32xf32>
    %148 = arith.mulf %142, %147 : vector<8x32xf32>
    %149 = arith.index_cast %c4_i32 : i32 to index
    %c0_53 = arith.constant 0 : index
    %c0_54 = arith.constant 0 : index
    %150 = vector.load %arg11[%149, %c0_53, %c0_54] : memref<8x8x32xf32, #tpu.memory_space<vmem>>, vector<1x8x32xf32>
    %151 = vector.shape_cast %150 : vector<1x8x32xf32> to vector<8x32xf32>
    %152 = vector.shape_cast %148 : vector<8x32xf32> to vector<1x8x32xf32>
    tpu.vector_store %arg11[%149, %c0_53, %c0_54], %152 {strides = array<i32>} : memref<8x8x32xf32, #tpu.memory_space<vmem>>, vector<1x8x32xf32>,
    %c5_i32 = arith.constant 5 : i32
    %153 = arith.index_cast %c5_i32 : i32 to index
    %c0_55 = arith.constant 0 : index
    %c0_56 = arith.constant 0 : index
    %154 = vector.load %arg10[%153, %c0_55, %c0_56] : memref<8x8x128xf32, #tpu.memory_space<vmem>>, vector<1x8x128xf32>
    %155 = vector.shape_cast %154 : vector<1x8x128xf32> to vector<8x128xf32>
    %c0_57 = arith.constant 0 : index
    %c0_58 = arith.constant 0 : index
    %156 = vector.load %arg3[%c0_57, %c0_58] : memref<32x128xf32, #tpu.memory_space<vmem>>, vector<32x128xf32>
    %cst_59 = arith.constant dense<0.000000e+00> : vector<8x128xf32>
    %157 = tpu.matmul %148, %156, %cst_59 {dimension_numbers = #tpu.dot_dimension_numbers<[1], [0], [0], [1], [0, 0, 1, 1], [], []>} : vector<8x32xf32>, vector<32x128xf32>, vector<8x128xf32> -> vector<8x128xf32>
    %158 = arith.addf %155, %157 : vector<8x128xf32>
    %c96_i32_60 = arith.constant 96 : i32
    %159 = vector.broadcast %c96_i32_60 : i32 to vector<8x128xi32>
    %160 = arith.cmpi slt, %0, %159 : vector<8x128xi32>
    %161 = arith.negf %158 : vector<8x128xf32>
    %162 = math.exp %161 : vector<8x128xf32>
    %cst_61 = arith.constant 1.000000e+00 : f32
    %163 = vector.broadcast %cst_61 : f32 to vector<8x128xf32>
    %164 = arith.addf %163, %162 : vector<8x128xf32>
    %165 = arith.divf %163, %164 : vector<8x128xf32>
    %166 = math.tanh %158 : vector<8x128xf32>
    %167 = arith.select %160, %165, %166 : vector<8x128xi1>, vector<8x128xf32>
    %168 = vector.extract_strided_slice %167 {offsets = [0, 0], sizes = [8, 32], strides = [1, 1]} : vector<8x128xf32> to vector<8x32xf32>
    %169 = vector.extract_strided_slice %167 {offsets = [0, 32], sizes = [8, 32], strides = [1, 1]} : vector<8x128xf32> to vector<8x32xf32>
    %170 = vector.extract_strided_slice %167 {offsets = [0, 64], sizes = [8, 32], strides = [1, 1]} : vector<8x128xf32> to vector<8x32xf32>
    %171 = vector.extract_strided_slice %167 {offsets = [0, 96], sizes = [8, 32], strides = [1, 1]} : vector<8x128xf32> to vector<8x32xf32>
    %172 = arith.mulf %169, %146 : vector<8x32xf32>
    %173 = arith.mulf %168, %171 : vector<8x32xf32>
    %174 = arith.addf %172, %173 : vector<8x32xf32>
    %175 = math.tanh %174 : vector<8x32xf32>
    %176 = arith.mulf %170, %175 : vector<8x32xf32>
    %177 = arith.index_cast %c5_i32 : i32 to index
    %c0_62 = arith.constant 0 : index
    %c0_63 = arith.constant 0 : index
    %178 = vector.load %arg11[%177, %c0_62, %c0_63] : memref<8x8x32xf32, #tpu.memory_space<vmem>>, vector<1x8x32xf32>
    %179 = vector.shape_cast %178 : vector<1x8x32xf32> to vector<8x32xf32>
    %180 = vector.shape_cast %176 : vector<8x32xf32> to vector<1x8x32xf32>
    tpu.vector_store %arg11[%177, %c0_62, %c0_63], %180 {strides = array<i32>} : memref<8x8x32xf32, #tpu.memory_space<vmem>>, vector<1x8x32xf32>,
    %c6_i32 = arith.constant 6 : i32
    %181 = arith.index_cast %c6_i32 : i32 to index
    %c0_64 = arith.constant 0 : index
    %c0_65 = arith.constant 0 : index
    %182 = vector.load %arg10[%181, %c0_64, %c0_65] : memref<8x8x128xf32, #tpu.memory_space<vmem>>, vector<1x8x128xf32>
    %183 = vector.shape_cast %182 : vector<1x8x128xf32> to vector<8x128xf32>
    %c0_66 = arith.constant 0 : index
    %c0_67 = arith.constant 0 : index
    %184 = vector.load %arg3[%c0_66, %c0_67] : memref<32x128xf32, #tpu.memory_space<vmem>>, vector<32x128xf32>
    %cst_68 = arith.constant dense<0.000000e+00> : vector<8x128xf32>
    %185 = tpu.matmul %176, %184, %cst_68 {dimension_numbers = #tpu.dot_dimension_numbers<[1], [0], [0], [1], [0, 0, 1, 1], [], []>} : vector<8x32xf32>, vector<32x128xf32>, vector<8x128xf32> -> vector<8x128xf32>
    %186 = arith.addf %183, %185 : vector<8x128xf32>
    %c96_i32_69 = arith.constant 96 : i32
    %187 = vector.broadcast %c96_i32_69 : i32 to vector<8x128xi32>
    %188 = arith.cmpi slt, %0, %187 : vector<8x128xi32>
    %189 = arith.negf %186 : vector<8x128xf32>
    %190 = math.exp %189 : vector<8x128xf32>
    %cst_70 = arith.constant 1.000000e+00 : f32
    %191 = vector.broadcast %cst_70 : f32 to vector<8x128xf32>
    %192 = arith.addf %191, %190 : vector<8x128xf32>
    %193 = arith.divf %191, %192 : vector<8x128xf32>
    %194 = math.tanh %186 : vector<8x128xf32>
    %195 = arith.select %188, %193, %194 : vector<8x128xi1>, vector<8x128xf32>
    %196 = vector.extract_strided_slice %195 {offsets = [0, 0], sizes = [8, 32], strides = [1, 1]} : vector<8x128xf32> to vector<8x32xf32>
    %197 = vector.extract_strided_slice %195 {offsets = [0, 32], sizes = [8, 32], strides = [1, 1]} : vector<8x128xf32> to vector<8x32xf32>
    %198 = vector.extract_strided_slice %195 {offsets = [0, 64], sizes = [8, 32], strides = [1, 1]} : vector<8x128xf32> to vector<8x32xf32>
    %199 = vector.extract_strided_slice %195 {offsets = [0, 96], sizes = [8, 32], strides = [1, 1]} : vector<8x128xf32> to vector<8x32xf32>
    %200 = arith.mulf %197, %174 : vector<8x32xf32>
    %201 = arith.mulf %196, %199 : vector<8x32xf32>
    %202 = arith.addf %200, %201 : vector<8x32xf32>
    %203 = math.tanh %202 : vector<8x32xf32>
    %204 = arith.mulf %198, %203 : vector<8x32xf32>
    %205 = arith.index_cast %c6_i32 : i32 to index
    %c0_71 = arith.constant 0 : index
    %c0_72 = arith.constant 0 : index
    %206 = vector.load %arg11[%205, %c0_71, %c0_72] : memref<8x8x32xf32, #tpu.memory_space<vmem>>, vector<1x8x32xf32>
    %207 = vector.shape_cast %206 : vector<1x8x32xf32> to vector<8x32xf32>
    %208 = vector.shape_cast %204 : vector<8x32xf32> to vector<1x8x32xf32>
    tpu.vector_store %arg11[%205, %c0_71, %c0_72], %208 {strides = array<i32>} : memref<8x8x32xf32, #tpu.memory_space<vmem>>, vector<1x8x32xf32>,
    %c7_i32 = arith.constant 7 : i32
    %209 = arith.index_cast %c7_i32 : i32 to index
    %c0_73 = arith.constant 0 : index
    %c0_74 = arith.constant 0 : index
    %210 = vector.load %arg10[%209, %c0_73, %c0_74] : memref<8x8x128xf32, #tpu.memory_space<vmem>>, vector<1x8x128xf32>
    %211 = vector.shape_cast %210 : vector<1x8x128xf32> to vector<8x128xf32>
    %c0_75 = arith.constant 0 : index
    %c0_76 = arith.constant 0 : index
    %212 = vector.load %arg3[%c0_75, %c0_76] : memref<32x128xf32, #tpu.memory_space<vmem>>, vector<32x128xf32>
    %cst_77 = arith.constant dense<0.000000e+00> : vector<8x128xf32>
    %213 = tpu.matmul %204, %212, %cst_77 {dimension_numbers = #tpu.dot_dimension_numbers<[1], [0], [0], [1], [0, 0, 1, 1], [], []>} : vector<8x32xf32>, vector<32x128xf32>, vector<8x128xf32> -> vector<8x128xf32>
    %214 = arith.addf %211, %213 : vector<8x128xf32>
    %c96_i32_78 = arith.constant 96 : i32
    %215 = vector.broadcast %c96_i32_78 : i32 to vector<8x128xi32>
    %216 = arith.cmpi slt, %0, %215 : vector<8x128xi32>
    %217 = arith.negf %214 : vector<8x128xf32>
    %218 = math.exp %217 : vector<8x128xf32>
    %cst_79 = arith.constant 1.000000e+00 : f32
    %219 = vector.broadcast %cst_79 : f32 to vector<8x128xf32>
    %220 = arith.addf %219, %218 : vector<8x128xf32>
    %221 = arith.divf %219, %220 : vector<8x128xf32>
    %222 = math.tanh %214 : vector<8x128xf32>
    %223 = arith.select %216, %221, %222 : vector<8x128xi1>, vector<8x128xf32>
    %224 = vector.extract_strided_slice %223 {offsets = [0, 0], sizes = [8, 32], strides = [1, 1]} : vector<8x128xf32> to vector<8x32xf32>
    %225 = vector.extract_strided_slice %223 {offsets = [0, 32], sizes = [8, 32], strides = [1, 1]} : vector<8x128xf32> to vector<8x32xf32>
    %226 = vector.extract_strided_slice %223 {offsets = [0, 64], sizes = [8, 32], strides = [1, 1]} : vector<8x128xf32> to vector<8x32xf32>
    %227 = vector.extract_strided_slice %223 {offsets = [0, 96], sizes = [8, 32], strides = [1, 1]} : vector<8x128xf32> to vector<8x32xf32>
    %228 = arith.mulf %225, %202 : vector<8x32xf32>
    %229 = arith.mulf %224, %227 : vector<8x32xf32>
    %230 = arith.addf %228, %229 : vector<8x32xf32>
    %231 = math.tanh %230 : vector<8x32xf32>
    %232 = arith.mulf %226, %231 : vector<8x32xf32>
    %233 = arith.index_cast %c7_i32 : i32 to index
    %c0_80 = arith.constant 0 : index
    %c0_81 = arith.constant 0 : index
    %234 = vector.load %arg11[%233, %c0_80, %c0_81] : memref<8x8x32xf32, #tpu.memory_space<vmem>>, vector<1x8x32xf32>
    %235 = vector.shape_cast %234 : vector<1x8x32xf32> to vector<8x32xf32>
    %236 = vector.shape_cast %232 : vector<8x32xf32> to vector<1x8x32xf32>
    tpu.vector_store %arg11[%233, %c0_80, %c0_81], %236 {strides = array<i32>} : memref<8x8x32xf32, #tpu.memory_space<vmem>>, vector<1x8x32xf32>,
    %c8_i32 = arith.constant 8 : i32
    %c0_82 = arith.constant 0 : index
    %c0_83 = arith.constant 0 : index
    %c0_84 = arith.constant 0 : index
    %237 = vector.load %arg11[%c0_82, %c0_83, %c0_84] : memref<8x8x32xf32, #tpu.memory_space<vmem>>, vector<8x8x32xf32>
    %238 = vector.shape_cast %237 : vector<8x8x32xf32> to vector<64x32xf32>
    %c0_85 = arith.constant 0 : index
    %c0_86 = arith.constant 0 : index
    %239 = vector.load %arg7[%c0_85, %c0_86] : memref<32x128xf32, #tpu.memory_space<vmem>>, vector<32x128xf32>
    %cst_87 = arith.constant dense<0.000000e+00> : vector<64x128xf32>
    %240 = tpu.matmul %238, %239, %cst_87 {dimension_numbers = #tpu.dot_dimension_numbers<[1], [0], [0], [1], [0, 0, 1, 1], [], []>} : vector<64x32xf32>, vector<32x128xf32>, vector<64x128xf32> -> vector<64x128xf32>
    %241 = vector.shape_cast %240 : vector<64x128xf32> to vector<8x8x128xf32>
    %c0_88 = arith.constant 0 : index
    %c0_89 = arith.constant 0 : index
    %c0_90 = arith.constant 0 : index
    %242 = vector.load %arg12[%c0_88, %c0_89, %c0_90] : memref<8x8x128xf32, #tpu.memory_space<vmem>>, vector<8x8x128xf32>
    tpu.vector_store %arg12[%c0_88, %c0_89, %c0_90], %241 {strides = array<i32>} : memref<8x8x128xf32, #tpu.memory_space<vmem>>, vector<8x8x128xf32>,
    %cst_91 = arith.constant 0.000000e+00 : f32
    %243 = vector.broadcast %cst_91 : f32 to vector<8x128xf32>
    %c0_92 = arith.constant 0 : index
    %c0_93 = arith.constant 0 : index
    %c0_94 = arith.constant 0 : index
    %244 = vector.load %arg9[%c0_92, %c0_93, %c0_94] : memref<8x8x128xf32, #tpu.memory_space<vmem>>, vector<1x8x128xf32>
    %245 = vector.shape_cast %244 : vector<1x8x128xf32> to vector<8x128xf32>
    %246 = vector.shape_cast %243 : vector<8x128xf32> to vector<1x8x128xf32>
    tpu.vector_store %arg9[%c0_92, %c0_93, %c0_94], %246 {strides = array<i32>} : memref<8x8x128xf32, #tpu.memory_space<vmem>>, vector<1x8x128xf32>,
    %c0_i32_95 = arith.constant 0 : i32
    %247 = vector.broadcast %c0_i32_95 : i32 to vector<8x128xi32>
    %248 = arith.cmpi eq, %1, %247 : vector<8x128xi32>
    %249 = arith.extui %248 : vector<8x128xi1> to vector<8x128xi32>
    %250 = arith.sitofp %249 : vector<8x128xi32> to vector<8x128xf32>
    %c1_i32_96 = arith.constant 1 : i32
    %251 = tpu.concatenate %250, %232 in 1 : vector<8x128xf32>, vector<8x32xf32> -> vector<8x160xf32>
    %c0_97 = arith.constant 0 : index
    %c0_98 = arith.constant 0 : index
    %252 = vector.load %arg5[%c0_97, %c0_98] : memref<160x128xf32, #tpu.memory_space<vmem>>, vector<160x128xf32>
    %cst_99 = arith.constant dense<0.000000e+00> : vector<8x128xf32>
    %253 = tpu.matmul %251, %252, %cst_99 {dimension_numbers = #tpu.dot_dimension_numbers<[1], [0], [0], [1], [0, 0, 1, 1], [], []>} : vector<8x160xf32>, vector<160x128xf32>, vector<8x128xf32> -> vector<8x128xf32>
    %c96_i32_100 = arith.constant 96 : i32
    %254 = vector.broadcast %c96_i32_100 : i32 to vector<8x128xi32>
    %255 = arith.cmpi slt, %0, %254 : vector<8x128xi32>
    %256 = arith.negf %253 : vector<8x128xf32>
    %257 = math.exp %256 : vector<8x128xf32>
    %cst_101 = arith.constant 1.000000e+00 : f32
    %258 = vector.broadcast %cst_101 : f32 to vector<8x128xf32>
    %259 = arith.addf %258, %257 : vector<8x128xf32>
    %260 = arith.divf %258, %259 : vector<8x128xf32>
    %261 = math.tanh %253 : vector<8x128xf32>
    %262 = arith.select %255, %260, %261 : vector<8x128xi1>, vector<8x128xf32>
    %263 = vector.extract_strided_slice %262 {offsets = [0, 0], sizes = [8, 32], strides = [1, 1]} : vector<8x128xf32> to vector<8x32xf32>
    %264 = vector.extract_strided_slice %262 {offsets = [0, 32], sizes = [8, 32], strides = [1, 1]} : vector<8x128xf32> to vector<8x32xf32>
    %265 = vector.extract_strided_slice %262 {offsets = [0, 64], sizes = [8, 32], strides = [1, 1]} : vector<8x128xf32> to vector<8x32xf32>
    %266 = vector.extract_strided_slice %262 {offsets = [0, 96], sizes = [8, 32], strides = [1, 1]} : vector<8x128xf32> to vector<8x32xf32>
    %267 = arith.mulf %264, %230 : vector<8x32xf32>
    %268 = arith.mulf %263, %266 : vector<8x32xf32>
    %269 = arith.addf %267, %268 : vector<8x32xf32>
    %270 = math.tanh %269 : vector<8x32xf32>
    %271 = arith.mulf %265, %270 : vector<8x32xf32>
    %c0_102 = arith.constant 0 : index
    %c0_103 = arith.constant 0 : index
    %c0_104 = arith.constant 0 : index
    %272 = vector.load %arg11[%c0_102, %c0_103, %c0_104] : memref<8x8x32xf32, #tpu.memory_space<vmem>>, vector<8x8x32xf32>
    %273 = vector.shape_cast %271 : vector<8x32xf32> to vector<1x8x32xf32>
    %274 = vector.broadcast %273 : vector<1x8x32xf32> to vector<8x8x32xf32>
    %275 = arith.mulf %272, %274 : vector<8x8x32xf32>
    %cst_105 = arith.constant dense<0.000000e+00> : vector<8x8xf32>
    %276 = vector.multi_reduction <add>, %275, %cst_105 [2] : vector<8x8x32xf32> to vector<8x8xf32>
    %277 = vector.shape_cast %276 : vector<8x8xf32> to vector<8x8x1xf32>
    %cst_106 = arith.constant dense<0xFF800000> : vector<8x1xf32>
    %278 = vector.multi_reduction <maximumf>, %277, %cst_106 [0] : vector<8x8x1xf32> to vector<8x1xf32>
    %279 = vector.shape_cast %278 : vector<8x1xf32> to vector<1x8x1xf32>
    %280 = vector.broadcast %279 : vector<1x8x1xf32> to vector<8x8x1xf32>
    %281 = arith.subf %277, %280 : vector<8x8x1xf32>
    %282 = math.exp %281 : vector<8x8x1xf32>
    %cst_107 = arith.constant dense<0.000000e+00> : vector<8x1xf32>
    %283 = vector.multi_reduction <add>, %282, %cst_107 [0] : vector<8x8x1xf32> to vector<8x1xf32>
    %284 = vector.shape_cast %283 : vector<8x1xf32> to vector<1x8x1xf32>
    %285 = vector.broadcast %284 : vector<1x8x1xf32> to vector<8x8x1xf32>
    %286 = arith.divf %282, %285 : vector<8x8x1xf32>
    %c0_108 = arith.constant 0 : index
    %c0_109 = arith.constant 0 : index
    %c0_110 = arith.constant 0 : index
    %287 = vector.load %arg12[%c0_108, %c0_109, %c0_110] : memref<8x8x128xf32, #tpu.memory_space<vmem>>, vector<8x8x128xf32>
    %288 = vector.broadcast %286 : vector<8x8x1xf32> to vector<8x8x128xf32>
    %289 = arith.mulf %288, %287 : vector<8x8x128xf32>
    %cst_111 = arith.constant dense<0.000000e+00> : vector<8x128xf32>
    %290 = vector.multi_reduction <add>, %289, %cst_111 [0] : vector<8x8x128xf32> to vector<8x128xf32>
    %c0_112 = arith.constant 0 : index
    %c0_113 = arith.constant 0 : index
    %291 = vector.load %arg6[%c0_112, %c0_113] : memref<32x128xf32, #tpu.memory_space<vmem>>, vector<32x128xf32>
    %cst_114 = arith.constant dense<0.000000e+00> : vector<8x128xf32>
    %292 = tpu.matmul %271, %291, %cst_114 {dimension_numbers = #tpu.dot_dimension_numbers<[1], [0], [0], [1], [0, 0, 1, 1], [], []>} : vector<8x32xf32>, vector<32x128xf32>, vector<8x128xf32> -> vector<8x128xf32>
    %293 = arith.addf %292, %290 : vector<8x128xf32>
    %c0_115 = arith.constant 0 : index
    %c0_116 = arith.constant 0 : index
    %294 = vector.load %arg8[%c0_115, %c0_116] : memref<1x128xf32, #tpu.memory_space<vmem>>, vector<1x128xf32>
    %295 = vector.broadcast %294 : vector<1x128xf32> to vector<8x128xf32>
    %296 = arith.addf %293, %295 : vector<8x128xf32>
    %297 = arith.index_cast %c1_i32_96 : i32 to index
    %c0_117 = arith.constant 0 : index
    %c0_118 = arith.constant 0 : index
    %298 = vector.load %arg9[%297, %c0_117, %c0_118] : memref<8x8x128xf32, #tpu.memory_space<vmem>>, vector<1x8x128xf32>
    %299 = vector.shape_cast %298 : vector<1x8x128xf32> to vector<8x128xf32>
    %300 = vector.shape_cast %296 : vector<8x128xf32> to vector<1x8x128xf32>
    tpu.vector_store %arg9[%297, %c0_117, %c0_118], %300 {strides = array<i32>} : memref<8x8x128xf32, #tpu.memory_space<vmem>>, vector<1x8x128xf32>,
    %cst_119 = arith.constant dense<0xFF800000> : vector<8xf32>
    %301 = vector.multi_reduction <maximumf>, %296, %cst_119 [1] : vector<8x128xf32> to vector<8xf32>
    %302 = vector.shape_cast %301 : vector<8xf32> to vector<8x1xf32>
    %303 = vector.broadcast %302 : vector<8x1xf32> to vector<8x128xf32>
    %304 = arith.cmpf oeq, %296, %303 : vector<8x128xf32>
    %c32_i32 = arith.constant 32 : i32
    %305 = vector.broadcast %c32_i32 : i32 to vector<8x128xi32>
    %306 = arith.cmpi slt, %1, %305 : vector<8x128xi32>
    %307 = arith.andi %304, %306 : vector<8x128xi1>
    %c128_i32 = arith.constant 128 : i32
    %308 = vector.broadcast %c128_i32 : i32 to vector<8x128xi32>
    %309 = arith.select %307, %1, %308 : vector<8x128xi1>, vector<8x128xi32>
    %cst_120 = arith.constant dense<2147483647> : vector<8xi32>
    %310 = vector.multi_reduction <minsi>, %309, %cst_120 [1] : vector<8x128xi32> to vector<8xi32>
    %311 = vector.shape_cast %310 : vector<8xi32> to vector<8x1xi32>
    %312 = vector.broadcast %311 : vector<8x1xi32> to vector<8x128xi32>
    %313 = arith.cmpi eq, %1, %312 : vector<8x128xi32>
    %314 = arith.extui %313 : vector<8x128xi1> to vector<8x128xi32>
    %315 = arith.sitofp %314 : vector<8x128xi32> to vector<8x128xf32>
    %c2_i32_121 = arith.constant 2 : i32
    %316 = tpu.concatenate %315, %271 in 1 : vector<8x128xf32>, vector<8x32xf32> -> vector<8x160xf32>
    %c0_122 = arith.constant 0 : index
    %c0_123 = arith.constant 0 : index
    %317 = vector.load %arg5[%c0_122, %c0_123] : memref<160x128xf32, #tpu.memory_space<vmem>>, vector<160x128xf32>
    %cst_124 = arith.constant dense<0.000000e+00> : vector<8x128xf32>
    %318 = tpu.matmul %316, %317, %cst_124 {dimension_numbers = #tpu.dot_dimension_numbers<[1], [0], [0], [1], [0, 0, 1, 1], [], []>} : vector<8x160xf32>, vector<160x128xf32>, vector<8x128xf32> -> vector<8x128xf32>
    %c96_i32_125 = arith.constant 96 : i32
    %319 = vector.broadcast %c96_i32_125 : i32 to vector<8x128xi32>
    %320 = arith.cmpi slt, %0, %319 : vector<8x128xi32>
    %321 = arith.negf %318 : vector<8x128xf32>
    %322 = math.exp %321 : vector<8x128xf32>
    %cst_126 = arith.constant 1.000000e+00 : f32
    %323 = vector.broadcast %cst_126 : f32 to vector<8x128xf32>
    %324 = arith.addf %323, %322 : vector<8x128xf32>
    %325 = arith.divf %323, %324 : vector<8x128xf32>
    %326 = math.tanh %318 : vector<8x128xf32>
    %327 = arith.select %320, %325, %326 : vector<8x128xi1>, vector<8x128xf32>
    %328 = vector.extract_strided_slice %327 {offsets = [0, 0], sizes = [8, 32], strides = [1, 1]} : vector<8x128xf32> to vector<8x32xf32>
    %329 = vector.extract_strided_slice %327 {offsets = [0, 32], sizes = [8, 32], strides = [1, 1]} : vector<8x128xf32> to vector<8x32xf32>
    %330 = vector.extract_strided_slice %327 {offsets = [0, 64], sizes = [8, 32], strides = [1, 1]} : vector<8x128xf32> to vector<8x32xf32>
    %331 = vector.extract_strided_slice %327 {offsets = [0, 96], sizes = [8, 32], strides = [1, 1]} : vector<8x128xf32> to vector<8x32xf32>
    %332 = arith.mulf %329, %269 : vector<8x32xf32>
    %333 = arith.mulf %328, %331 : vector<8x32xf32>
    %334 = arith.addf %332, %333 : vector<8x32xf32>
    %335 = math.tanh %334 : vector<8x32xf32>
    %336 = arith.mulf %330, %335 : vector<8x32xf32>
    %c0_127 = arith.constant 0 : index
    %c0_128 = arith.constant 0 : index
    %c0_129 = arith.constant 0 : index
    %337 = vector.load %arg11[%c0_127, %c0_128, %c0_129] : memref<8x8x32xf32, #tpu.memory_space<vmem>>, vector<8x8x32xf32>
    %338 = vector.shape_cast %336 : vector<8x32xf32> to vector<1x8x32xf32>
    %339 = vector.broadcast %338 : vector<1x8x32xf32> to vector<8x8x32xf32>
    %340 = arith.mulf %337, %339 : vector<8x8x32xf32>
    %cst_130 = arith.constant dense<0.000000e+00> : vector<8x8xf32>
    %341 = vector.multi_reduction <add>, %340, %cst_130 [2] : vector<8x8x32xf32> to vector<8x8xf32>
    %342 = vector.shape_cast %341 : vector<8x8xf32> to vector<8x8x1xf32>
    %cst_131 = arith.constant dense<0xFF800000> : vector<8x1xf32>
    %343 = vector.multi_reduction <maximumf>, %342, %cst_131 [0] : vector<8x8x1xf32> to vector<8x1xf32>
    %344 = vector.shape_cast %343 : vector<8x1xf32> to vector<1x8x1xf32>
    %345 = vector.broadcast %344 : vector<1x8x1xf32> to vector<8x8x1xf32>
    %346 = arith.subf %342, %345 : vector<8x8x1xf32>
    %347 = math.exp %346 : vector<8x8x1xf32>
    %cst_132 = arith.constant dense<0.000000e+00> : vector<8x1xf32>
    %348 = vector.multi_reduction <add>, %347, %cst_132 [0] : vector<8x8x1xf32> to vector<8x1xf32>
    %349 = vector.shape_cast %348 : vector<8x1xf32> to vector<1x8x1xf32>
    %350 = vector.broadcast %349 : vector<1x8x1xf32> to vector<8x8x1xf32>
    %351 = arith.divf %347, %350 : vector<8x8x1xf32>
    %c0_133 = arith.constant 0 : index
    %c0_134 = arith.constant 0 : index
    %c0_135 = arith.constant 0 : index
    %352 = vector.load %arg12[%c0_133, %c0_134, %c0_135] : memref<8x8x128xf32, #tpu.memory_space<vmem>>, vector<8x8x128xf32>
    %353 = vector.broadcast %351 : vector<8x8x1xf32> to vector<8x8x128xf32>
    %354 = arith.mulf %353, %352 : vector<8x8x128xf32>
    %cst_136 = arith.constant dense<0.000000e+00> : vector<8x128xf32>
    %355 = vector.multi_reduction <add>, %354, %cst_136 [0] : vector<8x8x128xf32> to vector<8x128xf32>
    %c0_137 = arith.constant 0 : index
    %c0_138 = arith.constant 0 : index
    %356 = vector.load %arg6[%c0_137, %c0_138] : memref<32x128xf32, #tpu.memory_space<vmem>>, vector<32x128xf32>
    %cst_139 = arith.constant dense<0.000000e+00> : vector<8x128xf32>
    %357 = tpu.matmul %336, %356, %cst_139 {dimension_numbers = #tpu.dot_dimension_numbers<[1], [0], [0], [1], [0, 0, 1, 1], [], []>} : vector<8x32xf32>, vector<32x128xf32>, vector<8x128xf32> -> vector<8x128xf32>
    %358 = arith.addf %357, %355 : vector<8x128xf32>
    %c0_140 = arith.constant 0 : index
    %c0_141 = arith.constant 0 : index
    %359 = vector.load %arg8[%c0_140, %c0_141] : memref<1x128xf32, #tpu.memory_space<vmem>>, vector<1x128xf32>
    %360 = vector.broadcast %359 : vector<1x128xf32> to vector<8x128xf32>
    %361 = arith.addf %358, %360 : vector<8x128xf32>
    %362 = arith.index_cast %c2_i32_121 : i32 to index
    %c0_142 = arith.constant 0 : index
    %c0_143 = arith.constant 0 : index
    %363 = vector.load %arg9[%362, %c0_142, %c0_143] : memref<8x8x128xf32, #tpu.memory_space<vmem>>, vector<1x8x128xf32>
    %364 = vector.shape_cast %363 : vector<1x8x128xf32> to vector<8x128xf32>
    %365 = vector.shape_cast %361 : vector<8x128xf32> to vector<1x8x128xf32>
    tpu.vector_store %arg9[%362, %c0_142, %c0_143], %365 {strides = array<i32>} : memref<8x8x128xf32, #tpu.memory_space<vmem>>, vector<1x8x128xf32>,
    %cst_144 = arith.constant dense<0xFF800000> : vector<8xf32>
    %366 = vector.multi_reduction <maximumf>, %361, %cst_144 [1] : vector<8x128xf32> to vector<8xf32>
    %367 = vector.shape_cast %366 : vector<8xf32> to vector<8x1xf32>
    %368 = vector.broadcast %367 : vector<8x1xf32> to vector<8x128xf32>
    %369 = arith.cmpf oeq, %361, %368 : vector<8x128xf32>
    %c32_i32_145 = arith.constant 32 : i32
    %370 = vector.broadcast %c32_i32_145 : i32 to vector<8x128xi32>
    %371 = arith.cmpi slt, %1, %370 : vector<8x128xi32>
    %372 = arith.andi %369, %371 : vector<8x128xi1>
    %c128_i32_146 = arith.constant 128 : i32
    %373 = vector.broadcast %c128_i32_146 : i32 to vector<8x128xi32>
    %374 = arith.select %372, %1, %373 : vector<8x128xi1>, vector<8x128xi32>
    %cst_147 = arith.constant dense<2147483647> : vector<8xi32>
    %375 = vector.multi_reduction <minsi>, %374, %cst_147 [1] : vector<8x128xi32> to vector<8xi32>
    %376 = vector.shape_cast %375 : vector<8xi32> to vector<8x1xi32>
    %377 = vector.broadcast %376 : vector<8x1xi32> to vector<8x128xi32>
    %378 = arith.cmpi eq, %1, %377 : vector<8x128xi32>
    %379 = arith.extui %378 : vector<8x128xi1> to vector<8x128xi32>
    %380 = arith.sitofp %379 : vector<8x128xi32> to vector<8x128xf32>
    %c3_i32_148 = arith.constant 3 : i32
    %381 = tpu.concatenate %380, %336 in 1 : vector<8x128xf32>, vector<8x32xf32> -> vector<8x160xf32>
    %c0_149 = arith.constant 0 : index
    %c0_150 = arith.constant 0 : index
    %382 = vector.load %arg5[%c0_149, %c0_150] : memref<160x128xf32, #tpu.memory_space<vmem>>, vector<160x128xf32>
    %cst_151 = arith.constant dense<0.000000e+00> : vector<8x128xf32>
    %383 = tpu.matmul %381, %382, %cst_151 {dimension_numbers = #tpu.dot_dimension_numbers<[1], [0], [0], [1], [0, 0, 1, 1], [], []>} : vector<8x160xf32>, vector<160x128xf32>, vector<8x128xf32> -> vector<8x128xf32>
    %c96_i32_152 = arith.constant 96 : i32
    %384 = vector.broadcast %c96_i32_152 : i32 to vector<8x128xi32>
    %385 = arith.cmpi slt, %0, %384 : vector<8x128xi32>
    %386 = arith.negf %383 : vector<8x128xf32>
    %387 = math.exp %386 : vector<8x128xf32>
    %cst_153 = arith.constant 1.000000e+00 : f32
    %388 = vector.broadcast %cst_153 : f32 to vector<8x128xf32>
    %389 = arith.addf %388, %387 : vector<8x128xf32>
    %390 = arith.divf %388, %389 : vector<8x128xf32>
    %391 = math.tanh %383 : vector<8x128xf32>
    %392 = arith.select %385, %390, %391 : vector<8x128xi1>, vector<8x128xf32>
    %393 = vector.extract_strided_slice %392 {offsets = [0, 0], sizes = [8, 32], strides = [1, 1]} : vector<8x128xf32> to vector<8x32xf32>
    %394 = vector.extract_strided_slice %392 {offsets = [0, 32], sizes = [8, 32], strides = [1, 1]} : vector<8x128xf32> to vector<8x32xf32>
    %395 = vector.extract_strided_slice %392 {offsets = [0, 64], sizes = [8, 32], strides = [1, 1]} : vector<8x128xf32> to vector<8x32xf32>
    %396 = vector.extract_strided_slice %392 {offsets = [0, 96], sizes = [8, 32], strides = [1, 1]} : vector<8x128xf32> to vector<8x32xf32>
    %397 = arith.mulf %394, %334 : vector<8x32xf32>
    %398 = arith.mulf %393, %396 : vector<8x32xf32>
    %399 = arith.addf %397, %398 : vector<8x32xf32>
    %400 = math.tanh %399 : vector<8x32xf32>
    %401 = arith.mulf %395, %400 : vector<8x32xf32>
    %c0_154 = arith.constant 0 : index
    %c0_155 = arith.constant 0 : index
    %c0_156 = arith.constant 0 : index
    %402 = vector.load %arg11[%c0_154, %c0_155, %c0_156] : memref<8x8x32xf32, #tpu.memory_space<vmem>>, vector<8x8x32xf32>
    %403 = vector.shape_cast %401 : vector<8x32xf32> to vector<1x8x32xf32>
    %404 = vector.broadcast %403 : vector<1x8x32xf32> to vector<8x8x32xf32>
    %405 = arith.mulf %402, %404 : vector<8x8x32xf32>
    %cst_157 = arith.constant dense<0.000000e+00> : vector<8x8xf32>
    %406 = vector.multi_reduction <add>, %405, %cst_157 [2] : vector<8x8x32xf32> to vector<8x8xf32>
    %407 = vector.shape_cast %406 : vector<8x8xf32> to vector<8x8x1xf32>
    %cst_158 = arith.constant dense<0xFF800000> : vector<8x1xf32>
    %408 = vector.multi_reduction <maximumf>, %407, %cst_158 [0] : vector<8x8x1xf32> to vector<8x1xf32>
    %409 = vector.shape_cast %408 : vector<8x1xf32> to vector<1x8x1xf32>
    %410 = vector.broadcast %409 : vector<1x8x1xf32> to vector<8x8x1xf32>
    %411 = arith.subf %407, %410 : vector<8x8x1xf32>
    %412 = math.exp %411 : vector<8x8x1xf32>
    %cst_159 = arith.constant dense<0.000000e+00> : vector<8x1xf32>
    %413 = vector.multi_reduction <add>, %412, %cst_159 [0] : vector<8x8x1xf32> to vector<8x1xf32>
    %414 = vector.shape_cast %413 : vector<8x1xf32> to vector<1x8x1xf32>
    %415 = vector.broadcast %414 : vector<1x8x1xf32> to vector<8x8x1xf32>
    %416 = arith.divf %412, %415 : vector<8x8x1xf32>
    %c0_160 = arith.constant 0 : index
    %c0_161 = arith.constant 0 : index
    %c0_162 = arith.constant 0 : index
    %417 = vector.load %arg12[%c0_160, %c0_161, %c0_162] : memref<8x8x128xf32, #tpu.memory_space<vmem>>, vector<8x8x128xf32>
    %418 = vector.broadcast %416 : vector<8x8x1xf32> to vector<8x8x128xf32>
    %419 = arith.mulf %418, %417 : vector<8x8x128xf32>
    %cst_163 = arith.constant dense<0.000000e+00> : vector<8x128xf32>
    %420 = vector.multi_reduction <add>, %419, %cst_163 [0] : vector<8x8x128xf32> to vector<8x128xf32>
    %c0_164 = arith.constant 0 : index
    %c0_165 = arith.constant 0 : index
    %421 = vector.load %arg6[%c0_164, %c0_165] : memref<32x128xf32, #tpu.memory_space<vmem>>, vector<32x128xf32>
    %cst_166 = arith.constant dense<0.000000e+00> : vector<8x128xf32>
    %422 = tpu.matmul %401, %421, %cst_166 {dimension_numbers = #tpu.dot_dimension_numbers<[1], [0], [0], [1], [0, 0, 1, 1], [], []>} : vector<8x32xf32>, vector<32x128xf32>, vector<8x128xf32> -> vector<8x128xf32>
    %423 = arith.addf %422, %420 : vector<8x128xf32>
    %c0_167 = arith.constant 0 : index
    %c0_168 = arith.constant 0 : index
    %424 = vector.load %arg8[%c0_167, %c0_168] : memref<1x128xf32, #tpu.memory_space<vmem>>, vector<1x128xf32>
    %425 = vector.broadcast %424 : vector<1x128xf32> to vector<8x128xf32>
    %426 = arith.addf %423, %425 : vector<8x128xf32>
    %427 = arith.index_cast %c3_i32_148 : i32 to index
    %c0_169 = arith.constant 0 : index
    %c0_170 = arith.constant 0 : index
    %428 = vector.load %arg9[%427, %c0_169, %c0_170] : memref<8x8x128xf32, #tpu.memory_space<vmem>>, vector<1x8x128xf32>
    %429 = vector.shape_cast %428 : vector<1x8x128xf32> to vector<8x128xf32>
    %430 = vector.shape_cast %426 : vector<8x128xf32> to vector<1x8x128xf32>
    tpu.vector_store %arg9[%427, %c0_169, %c0_170], %430 {strides = array<i32>} : memref<8x8x128xf32, #tpu.memory_space<vmem>>, vector<1x8x128xf32>,
    %cst_171 = arith.constant dense<0xFF800000> : vector<8xf32>
    %431 = vector.multi_reduction <maximumf>, %426, %cst_171 [1] : vector<8x128xf32> to vector<8xf32>
    %432 = vector.shape_cast %431 : vector<8xf32> to vector<8x1xf32>
    %433 = vector.broadcast %432 : vector<8x1xf32> to vector<8x128xf32>
    %434 = arith.cmpf oeq, %426, %433 : vector<8x128xf32>
    %c32_i32_172 = arith.constant 32 : i32
    %435 = vector.broadcast %c32_i32_172 : i32 to vector<8x128xi32>
    %436 = arith.cmpi slt, %1, %435 : vector<8x128xi32>
    %437 = arith.andi %434, %436 : vector<8x128xi1>
    %c128_i32_173 = arith.constant 128 : i32
    %438 = vector.broadcast %c128_i32_173 : i32 to vector<8x128xi32>
    %439 = arith.select %437, %1, %438 : vector<8x128xi1>, vector<8x128xi32>
    %cst_174 = arith.constant dense<2147483647> : vector<8xi32>
    %440 = vector.multi_reduction <minsi>, %439, %cst_174 [1] : vector<8x128xi32> to vector<8xi32>
    %441 = vector.shape_cast %440 : vector<8xi32> to vector<8x1xi32>
    %442 = vector.broadcast %441 : vector<8x1xi32> to vector<8x128xi32>
    %443 = arith.cmpi eq, %1, %442 : vector<8x128xi32>
    %444 = arith.extui %443 : vector<8x128xi1> to vector<8x128xi32>
    %445 = arith.sitofp %444 : vector<8x128xi32> to vector<8x128xf32>
    %c4_i32_175 = arith.constant 4 : i32
    %446 = tpu.concatenate %445, %401 in 1 : vector<8x128xf32>, vector<8x32xf32> -> vector<8x160xf32>
    %c0_176 = arith.constant 0 : index
    %c0_177 = arith.constant 0 : index
    %447 = vector.load %arg5[%c0_176, %c0_177] : memref<160x128xf32, #tpu.memory_space<vmem>>, vector<160x128xf32>
    %cst_178 = arith.constant dense<0.000000e+00> : vector<8x128xf32>
    %448 = tpu.matmul %446, %447, %cst_178 {dimension_numbers = #tpu.dot_dimension_numbers<[1], [0], [0], [1], [0, 0, 1, 1], [], []>} : vector<8x160xf32>, vector<160x128xf32>, vector<8x128xf32> -> vector<8x128xf32>
    %c96_i32_179 = arith.constant 96 : i32
    %449 = vector.broadcast %c96_i32_179 : i32 to vector<8x128xi32>
    %450 = arith.cmpi slt, %0, %449 : vector<8x128xi32>
    %451 = arith.negf %448 : vector<8x128xf32>
    %452 = math.exp %451 : vector<8x128xf32>
    %cst_180 = arith.constant 1.000000e+00 : f32
    %453 = vector.broadcast %cst_180 : f32 to vector<8x128xf32>
    %454 = arith.addf %453, %452 : vector<8x128xf32>
    %455 = arith.divf %453, %454 : vector<8x128xf32>
    %456 = math.tanh %448 : vector<8x128xf32>
    %457 = arith.select %450, %455, %456 : vector<8x128xi1>, vector<8x128xf32>
    %458 = vector.extract_strided_slice %457 {offsets = [0, 0], sizes = [8, 32], strides = [1, 1]} : vector<8x128xf32> to vector<8x32xf32>
    %459 = vector.extract_strided_slice %457 {offsets = [0, 32], sizes = [8, 32], strides = [1, 1]} : vector<8x128xf32> to vector<8x32xf32>
    %460 = vector.extract_strided_slice %457 {offsets = [0, 64], sizes = [8, 32], strides = [1, 1]} : vector<8x128xf32> to vector<8x32xf32>
    %461 = vector.extract_strided_slice %457 {offsets = [0, 96], sizes = [8, 32], strides = [1, 1]} : vector<8x128xf32> to vector<8x32xf32>
    %462 = arith.mulf %459, %399 : vector<8x32xf32>
    %463 = arith.mulf %458, %461 : vector<8x32xf32>
    %464 = arith.addf %462, %463 : vector<8x32xf32>
    %465 = math.tanh %464 : vector<8x32xf32>
    %466 = arith.mulf %460, %465 : vector<8x32xf32>
    %c0_181 = arith.constant 0 : index
    %c0_182 = arith.constant 0 : index
    %c0_183 = arith.constant 0 : index
    %467 = vector.load %arg11[%c0_181, %c0_182, %c0_183] : memref<8x8x32xf32, #tpu.memory_space<vmem>>, vector<8x8x32xf32>
    %468 = vector.shape_cast %466 : vector<8x32xf32> to vector<1x8x32xf32>
    %469 = vector.broadcast %468 : vector<1x8x32xf32> to vector<8x8x32xf32>
    %470 = arith.mulf %467, %469 : vector<8x8x32xf32>
    %cst_184 = arith.constant dense<0.000000e+00> : vector<8x8xf32>
    %471 = vector.multi_reduction <add>, %470, %cst_184 [2] : vector<8x8x32xf32> to vector<8x8xf32>
    %472 = vector.shape_cast %471 : vector<8x8xf32> to vector<8x8x1xf32>
    %cst_185 = arith.constant dense<0xFF800000> : vector<8x1xf32>
    %473 = vector.multi_reduction <maximumf>, %472, %cst_185 [0] : vector<8x8x1xf32> to vector<8x1xf32>
    %474 = vector.shape_cast %473 : vector<8x1xf32> to vector<1x8x1xf32>
    %475 = vector.broadcast %474 : vector<1x8x1xf32> to vector<8x8x1xf32>
    %476 = arith.subf %472, %475 : vector<8x8x1xf32>
    %477 = math.exp %476 : vector<8x8x1xf32>
    %cst_186 = arith.constant dense<0.000000e+00> : vector<8x1xf32>
    %478 = vector.multi_reduction <add>, %477, %cst_186 [0] : vector<8x8x1xf32> to vector<8x1xf32>
    %479 = vector.shape_cast %478 : vector<8x1xf32> to vector<1x8x1xf32>
    %480 = vector.broadcast %479 : vector<1x8x1xf32> to vector<8x8x1xf32>
    %481 = arith.divf %477, %480 : vector<8x8x1xf32>
    %c0_187 = arith.constant 0 : index
    %c0_188 = arith.constant 0 : index
    %c0_189 = arith.constant 0 : index
    %482 = vector.load %arg12[%c0_187, %c0_188, %c0_189] : memref<8x8x128xf32, #tpu.memory_space<vmem>>, vector<8x8x128xf32>
    %483 = vector.broadcast %481 : vector<8x8x1xf32> to vector<8x8x128xf32>
    %484 = arith.mulf %483, %482 : vector<8x8x128xf32>
    %cst_190 = arith.constant dense<0.000000e+00> : vector<8x128xf32>
    %485 = vector.multi_reduction <add>, %484, %cst_190 [0] : vector<8x8x128xf32> to vector<8x128xf32>
    %c0_191 = arith.constant 0 : index
    %c0_192 = arith.constant 0 : index
    %486 = vector.load %arg6[%c0_191, %c0_192] : memref<32x128xf32, #tpu.memory_space<vmem>>, vector<32x128xf32>
    %cst_193 = arith.constant dense<0.000000e+00> : vector<8x128xf32>
    %487 = tpu.matmul %466, %486, %cst_193 {dimension_numbers = #tpu.dot_dimension_numbers<[1], [0], [0], [1], [0, 0, 1, 1], [], []>} : vector<8x32xf32>, vector<32x128xf32>, vector<8x128xf32> -> vector<8x128xf32>
    %488 = arith.addf %487, %485 : vector<8x128xf32>
    %c0_194 = arith.constant 0 : index
    %c0_195 = arith.constant 0 : index
    %489 = vector.load %arg8[%c0_194, %c0_195] : memref<1x128xf32, #tpu.memory_space<vmem>>, vector<1x128xf32>
    %490 = vector.broadcast %489 : vector<1x128xf32> to vector<8x128xf32>
    %491 = arith.addf %488, %490 : vector<8x128xf32>
    %492 = arith.index_cast %c4_i32_175 : i32 to index
    %c0_196 = arith.constant 0 : index
    %c0_197 = arith.constant 0 : index
    %493 = vector.load %arg9[%492, %c0_196, %c0_197] : memref<8x8x128xf32, #tpu.memory_space<vmem>>, vector<1x8x128xf32>
    %494 = vector.shape_cast %493 : vector<1x8x128xf32> to vector<8x128xf32>
    %495 = vector.shape_cast %491 : vector<8x128xf32> to vector<1x8x128xf32>
    tpu.vector_store %arg9[%492, %c0_196, %c0_197], %495 {strides = array<i32>} : memref<8x8x128xf32, #tpu.memory_space<vmem>>, vector<1x8x128xf32>,
    %cst_198 = arith.constant dense<0xFF800000> : vector<8xf32>
    %496 = vector.multi_reduction <maximumf>, %491, %cst_198 [1] : vector<8x128xf32> to vector<8xf32>
    %497 = vector.shape_cast %496 : vector<8xf32> to vector<8x1xf32>
    %498 = vector.broadcast %497 : vector<8x1xf32> to vector<8x128xf32>
    %499 = arith.cmpf oeq, %491, %498 : vector<8x128xf32>
    %c32_i32_199 = arith.constant 32 : i32
    %500 = vector.broadcast %c32_i32_199 : i32 to vector<8x128xi32>
    %501 = arith.cmpi slt, %1, %500 : vector<8x128xi32>
    %502 = arith.andi %499, %501 : vector<8x128xi1>
    %c128_i32_200 = arith.constant 128 : i32
    %503 = vector.broadcast %c128_i32_200 : i32 to vector<8x128xi32>
    %504 = arith.select %502, %1, %503 : vector<8x128xi1>, vector<8x128xi32>
    %cst_201 = arith.constant dense<2147483647> : vector<8xi32>
    %505 = vector.multi_reduction <minsi>, %504, %cst_201 [1] : vector<8x128xi32> to vector<8xi32>
    %506 = vector.shape_cast %505 : vector<8xi32> to vector<8x1xi32>
    %507 = vector.broadcast %506 : vector<8x1xi32> to vector<8x128xi32>
    %508 = arith.cmpi eq, %1, %507 : vector<8x128xi32>
    %509 = arith.extui %508 : vector<8x128xi1> to vector<8x128xi32>
    %510 = arith.sitofp %509 : vector<8x128xi32> to vector<8x128xf32>
    %c5_i32_202 = arith.constant 5 : i32
    %511 = tpu.concatenate %510, %466 in 1 : vector<8x128xf32>, vector<8x32xf32> -> vector<8x160xf32>
    %c0_203 = arith.constant 0 : index
    %c0_204 = arith.constant 0 : index
    %512 = vector.load %arg5[%c0_203, %c0_204] : memref<160x128xf32, #tpu.memory_space<vmem>>, vector<160x128xf32>
    %cst_205 = arith.constant dense<0.000000e+00> : vector<8x128xf32>
    %513 = tpu.matmul %511, %512, %cst_205 {dimension_numbers = #tpu.dot_dimension_numbers<[1], [0], [0], [1], [0, 0, 1, 1], [], []>} : vector<8x160xf32>, vector<160x128xf32>, vector<8x128xf32> -> vector<8x128xf32>
    %c96_i32_206 = arith.constant 96 : i32
    %514 = vector.broadcast %c96_i32_206 : i32 to vector<8x128xi32>
    %515 = arith.cmpi slt, %0, %514 : vector<8x128xi32>
    %516 = arith.negf %513 : vector<8x128xf32>
    %517 = math.exp %516 : vector<8x128xf32>
    %cst_207 = arith.constant 1.000000e+00 : f32
    %518 = vector.broadcast %cst_207 : f32 to vector<8x128xf32>
    %519 = arith.addf %518, %517 : vector<8x128xf32>
    %520 = arith.divf %518, %519 : vector<8x128xf32>
    %521 = math.tanh %513 : vector<8x128xf32>
    %522 = arith.select %515, %520, %521 : vector<8x128xi1>, vector<8x128xf32>
    %523 = vector.extract_strided_slice %522 {offsets = [0, 0], sizes = [8, 32], strides = [1, 1]} : vector<8x128xf32> to vector<8x32xf32>
    %524 = vector.extract_strided_slice %522 {offsets = [0, 32], sizes = [8, 32], strides = [1, 1]} : vector<8x128xf32> to vector<8x32xf32>
    %525 = vector.extract_strided_slice %522 {offsets = [0, 64], sizes = [8, 32], strides = [1, 1]} : vector<8x128xf32> to vector<8x32xf32>
    %526 = vector.extract_strided_slice %522 {offsets = [0, 96], sizes = [8, 32], strides = [1, 1]} : vector<8x128xf32> to vector<8x32xf32>
    %527 = arith.mulf %524, %464 : vector<8x32xf32>
    %528 = arith.mulf %523, %526 : vector<8x32xf32>
    %529 = arith.addf %527, %528 : vector<8x32xf32>
    %530 = math.tanh %529 : vector<8x32xf32>
    %531 = arith.mulf %525, %530 : vector<8x32xf32>
    %c0_208 = arith.constant 0 : index
    %c0_209 = arith.constant 0 : index
    %c0_210 = arith.constant 0 : index
    %532 = vector.load %arg11[%c0_208, %c0_209, %c0_210] : memref<8x8x32xf32, #tpu.memory_space<vmem>>, vector<8x8x32xf32>
    %533 = vector.shape_cast %531 : vector<8x32xf32> to vector<1x8x32xf32>
    %534 = vector.broadcast %533 : vector<1x8x32xf32> to vector<8x8x32xf32>
    %535 = arith.mulf %532, %534 : vector<8x8x32xf32>
    %cst_211 = arith.constant dense<0.000000e+00> : vector<8x8xf32>
    %536 = vector.multi_reduction <add>, %535, %cst_211 [2] : vector<8x8x32xf32> to vector<8x8xf32>
    %537 = vector.shape_cast %536 : vector<8x8xf32> to vector<8x8x1xf32>
    %cst_212 = arith.constant dense<0xFF800000> : vector<8x1xf32>
    %538 = vector.multi_reduction <maximumf>, %537, %cst_212 [0] : vector<8x8x1xf32> to vector<8x1xf32>
    %539 = vector.shape_cast %538 : vector<8x1xf32> to vector<1x8x1xf32>
    %540 = vector.broadcast %539 : vector<1x8x1xf32> to vector<8x8x1xf32>
    %541 = arith.subf %537, %540 : vector<8x8x1xf32>
    %542 = math.exp %541 : vector<8x8x1xf32>
    %cst_213 = arith.constant dense<0.000000e+00> : vector<8x1xf32>
    %543 = vector.multi_reduction <add>, %542, %cst_213 [0] : vector<8x8x1xf32> to vector<8x1xf32>
    %544 = vector.shape_cast %543 : vector<8x1xf32> to vector<1x8x1xf32>
    %545 = vector.broadcast %544 : vector<1x8x1xf32> to vector<8x8x1xf32>
    %546 = arith.divf %542, %545 : vector<8x8x1xf32>
    %c0_214 = arith.constant 0 : index
    %c0_215 = arith.constant 0 : index
    %c0_216 = arith.constant 0 : index
    %547 = vector.load %arg12[%c0_214, %c0_215, %c0_216] : memref<8x8x128xf32, #tpu.memory_space<vmem>>, vector<8x8x128xf32>
    %548 = vector.broadcast %546 : vector<8x8x1xf32> to vector<8x8x128xf32>
    %549 = arith.mulf %548, %547 : vector<8x8x128xf32>
    %cst_217 = arith.constant dense<0.000000e+00> : vector<8x128xf32>
    %550 = vector.multi_reduction <add>, %549, %cst_217 [0] : vector<8x8x128xf32> to vector<8x128xf32>
    %c0_218 = arith.constant 0 : index
    %c0_219 = arith.constant 0 : index
    %551 = vector.load %arg6[%c0_218, %c0_219] : memref<32x128xf32, #tpu.memory_space<vmem>>, vector<32x128xf32>
    %cst_220 = arith.constant dense<0.000000e+00> : vector<8x128xf32>
    %552 = tpu.matmul %531, %551, %cst_220 {dimension_numbers = #tpu.dot_dimension_numbers<[1], [0], [0], [1], [0, 0, 1, 1], [], []>} : vector<8x32xf32>, vector<32x128xf32>, vector<8x128xf32> -> vector<8x128xf32>
    %553 = arith.addf %552, %550 : vector<8x128xf32>
    %c0_221 = arith.constant 0 : index
    %c0_222 = arith.constant 0 : index
    %554 = vector.load %arg8[%c0_221, %c0_222] : memref<1x128xf32, #tpu.memory_space<vmem>>, vector<1x128xf32>
    %555 = vector.broadcast %554 : vector<1x128xf32> to vector<8x128xf32>
    %556 = arith.addf %553, %555 : vector<8x128xf32>
    %557 = arith.index_cast %c5_i32_202 : i32 to index
    %c0_223 = arith.constant 0 : index
    %c0_224 = arith.constant 0 : index
    %558 = vector.load %arg9[%557, %c0_223, %c0_224] : memref<8x8x128xf32, #tpu.memory_space<vmem>>, vector<1x8x128xf32>
    %559 = vector.shape_cast %558 : vector<1x8x128xf32> to vector<8x128xf32>
    %560 = vector.shape_cast %556 : vector<8x128xf32> to vector<1x8x128xf32>
    tpu.vector_store %arg9[%557, %c0_223, %c0_224], %560 {strides = array<i32>} : memref<8x8x128xf32, #tpu.memory_space<vmem>>, vector<1x8x128xf32>,
    %cst_225 = arith.constant dense<0xFF800000> : vector<8xf32>
    %561 = vector.multi_reduction <maximumf>, %556, %cst_225 [1] : vector<8x128xf32> to vector<8xf32>
    %562 = vector.shape_cast %561 : vector<8xf32> to vector<8x1xf32>
    %563 = vector.broadcast %562 : vector<8x1xf32> to vector<8x128xf32>
    %564 = arith.cmpf oeq, %556, %563 : vector<8x128xf32>
    %c32_i32_226 = arith.constant 32 : i32
    %565 = vector.broadcast %c32_i32_226 : i32 to vector<8x128xi32>
    %566 = arith.cmpi slt, %1, %565 : vector<8x128xi32>
    %567 = arith.andi %564, %566 : vector<8x128xi1>
    %c128_i32_227 = arith.constant 128 : i32
    %568 = vector.broadcast %c128_i32_227 : i32 to vector<8x128xi32>
    %569 = arith.select %567, %1, %568 : vector<8x128xi1>, vector<8x128xi32>
    %cst_228 = arith.constant dense<2147483647> : vector<8xi32>
    %570 = vector.multi_reduction <minsi>, %569, %cst_228 [1] : vector<8x128xi32> to vector<8xi32>
    %571 = vector.shape_cast %570 : vector<8xi32> to vector<8x1xi32>
    %572 = vector.broadcast %571 : vector<8x1xi32> to vector<8x128xi32>
    %573 = arith.cmpi eq, %1, %572 : vector<8x128xi32>
    %574 = arith.extui %573 : vector<8x128xi1> to vector<8x128xi32>
    %575 = arith.sitofp %574 : vector<8x128xi32> to vector<8x128xf32>
    %c6_i32_229 = arith.constant 6 : i32
    %576 = tpu.concatenate %575, %531 in 1 : vector<8x128xf32>, vector<8x32xf32> -> vector<8x160xf32>
    %c0_230 = arith.constant 0 : index
    %c0_231 = arith.constant 0 : index
    %577 = vector.load %arg5[%c0_230, %c0_231] : memref<160x128xf32, #tpu.memory_space<vmem>>, vector<160x128xf32>
    %cst_232 = arith.constant dense<0.000000e+00> : vector<8x128xf32>
    %578 = tpu.matmul %576, %577, %cst_232 {dimension_numbers = #tpu.dot_dimension_numbers<[1], [0], [0], [1], [0, 0, 1, 1], [], []>} : vector<8x160xf32>, vector<160x128xf32>, vector<8x128xf32> -> vector<8x128xf32>
    %c96_i32_233 = arith.constant 96 : i32
    %579 = vector.broadcast %c96_i32_233 : i32 to vector<8x128xi32>
    %580 = arith.cmpi slt, %0, %579 : vector<8x128xi32>
    %581 = arith.negf %578 : vector<8x128xf32>
    %582 = math.exp %581 : vector<8x128xf32>
    %cst_234 = arith.constant 1.000000e+00 : f32
    %583 = vector.broadcast %cst_234 : f32 to vector<8x128xf32>
    %584 = arith.addf %583, %582 : vector<8x128xf32>
    %585 = arith.divf %583, %584 : vector<8x128xf32>
    %586 = math.tanh %578 : vector<8x128xf32>
    %587 = arith.select %580, %585, %586 : vector<8x128xi1>, vector<8x128xf32>
    %588 = vector.extract_strided_slice %587 {offsets = [0, 0], sizes = [8, 32], strides = [1, 1]} : vector<8x128xf32> to vector<8x32xf32>
    %589 = vector.extract_strided_slice %587 {offsets = [0, 32], sizes = [8, 32], strides = [1, 1]} : vector<8x128xf32> to vector<8x32xf32>
    %590 = vector.extract_strided_slice %587 {offsets = [0, 64], sizes = [8, 32], strides = [1, 1]} : vector<8x128xf32> to vector<8x32xf32>
    %591 = vector.extract_strided_slice %587 {offsets = [0, 96], sizes = [8, 32], strides = [1, 1]} : vector<8x128xf32> to vector<8x32xf32>
    %592 = arith.mulf %589, %529 : vector<8x32xf32>
    %593 = arith.mulf %588, %591 : vector<8x32xf32>
    %594 = arith.addf %592, %593 : vector<8x32xf32>
    %595 = math.tanh %594 : vector<8x32xf32>
    %596 = arith.mulf %590, %595 : vector<8x32xf32>
    %c0_235 = arith.constant 0 : index
    %c0_236 = arith.constant 0 : index
    %c0_237 = arith.constant 0 : index
    %597 = vector.load %arg11[%c0_235, %c0_236, %c0_237] : memref<8x8x32xf32, #tpu.memory_space<vmem>>, vector<8x8x32xf32>
    %598 = vector.shape_cast %596 : vector<8x32xf32> to vector<1x8x32xf32>
    %599 = vector.broadcast %598 : vector<1x8x32xf32> to vector<8x8x32xf32>
    %600 = arith.mulf %597, %599 : vector<8x8x32xf32>
    %cst_238 = arith.constant dense<0.000000e+00> : vector<8x8xf32>
    %601 = vector.multi_reduction <add>, %600, %cst_238 [2] : vector<8x8x32xf32> to vector<8x8xf32>
    %602 = vector.shape_cast %601 : vector<8x8xf32> to vector<8x8x1xf32>
    %cst_239 = arith.constant dense<0xFF800000> : vector<8x1xf32>
    %603 = vector.multi_reduction <maximumf>, %602, %cst_239 [0] : vector<8x8x1xf32> to vector<8x1xf32>
    %604 = vector.shape_cast %603 : vector<8x1xf32> to vector<1x8x1xf32>
    %605 = vector.broadcast %604 : vector<1x8x1xf32> to vector<8x8x1xf32>
    %606 = arith.subf %602, %605 : vector<8x8x1xf32>
    %607 = math.exp %606 : vector<8x8x1xf32>
    %cst_240 = arith.constant dense<0.000000e+00> : vector<8x1xf32>
    %608 = vector.multi_reduction <add>, %607, %cst_240 [0] : vector<8x8x1xf32> to vector<8x1xf32>
    %609 = vector.shape_cast %608 : vector<8x1xf32> to vector<1x8x1xf32>
    %610 = vector.broadcast %609 : vector<1x8x1xf32> to vector<8x8x1xf32>
    %611 = arith.divf %607, %610 : vector<8x8x1xf32>
    %c0_241 = arith.constant 0 : index
    %c0_242 = arith.constant 0 : index
    %c0_243 = arith.constant 0 : index
    %612 = vector.load %arg12[%c0_241, %c0_242, %c0_243] : memref<8x8x128xf32, #tpu.memory_space<vmem>>, vector<8x8x128xf32>
    %613 = vector.broadcast %611 : vector<8x8x1xf32> to vector<8x8x128xf32>
    %614 = arith.mulf %613, %612 : vector<8x8x128xf32>
    %cst_244 = arith.constant dense<0.000000e+00> : vector<8x128xf32>
    %615 = vector.multi_reduction <add>, %614, %cst_244 [0] : vector<8x8x128xf32> to vector<8x128xf32>
    %c0_245 = arith.constant 0 : index
    %c0_246 = arith.constant 0 : index
    %616 = vector.load %arg6[%c0_245, %c0_246] : memref<32x128xf32, #tpu.memory_space<vmem>>, vector<32x128xf32>
    %cst_247 = arith.constant dense<0.000000e+00> : vector<8x128xf32>
    %617 = tpu.matmul %596, %616, %cst_247 {dimension_numbers = #tpu.dot_dimension_numbers<[1], [0], [0], [1], [0, 0, 1, 1], [], []>} : vector<8x32xf32>, vector<32x128xf32>, vector<8x128xf32> -> vector<8x128xf32>
    %618 = arith.addf %617, %615 : vector<8x128xf32>
    %c0_248 = arith.constant 0 : index
    %c0_249 = arith.constant 0 : index
    %619 = vector.load %arg8[%c0_248, %c0_249] : memref<1x128xf32, #tpu.memory_space<vmem>>, vector<1x128xf32>
    %620 = vector.broadcast %619 : vector<1x128xf32> to vector<8x128xf32>
    %621 = arith.addf %618, %620 : vector<8x128xf32>
    %622 = arith.index_cast %c6_i32_229 : i32 to index
    %c0_250 = arith.constant 0 : index
    %c0_251 = arith.constant 0 : index
    %623 = vector.load %arg9[%622, %c0_250, %c0_251] : memref<8x8x128xf32, #tpu.memory_space<vmem>>, vector<1x8x128xf32>
    %624 = vector.shape_cast %623 : vector<1x8x128xf32> to vector<8x128xf32>
    %625 = vector.shape_cast %621 : vector<8x128xf32> to vector<1x8x128xf32>
    tpu.vector_store %arg9[%622, %c0_250, %c0_251], %625 {strides = array<i32>} : memref<8x8x128xf32, #tpu.memory_space<vmem>>, vector<1x8x128xf32>,
    %cst_252 = arith.constant dense<0xFF800000> : vector<8xf32>
    %626 = vector.multi_reduction <maximumf>, %621, %cst_252 [1] : vector<8x128xf32> to vector<8xf32>
    %627 = vector.shape_cast %626 : vector<8xf32> to vector<8x1xf32>
    %628 = vector.broadcast %627 : vector<8x1xf32> to vector<8x128xf32>
    %629 = arith.cmpf oeq, %621, %628 : vector<8x128xf32>
    %c32_i32_253 = arith.constant 32 : i32
    %630 = vector.broadcast %c32_i32_253 : i32 to vector<8x128xi32>
    %631 = arith.cmpi slt, %1, %630 : vector<8x128xi32>
    %632 = arith.andi %629, %631 : vector<8x128xi1>
    %c128_i32_254 = arith.constant 128 : i32
    %633 = vector.broadcast %c128_i32_254 : i32 to vector<8x128xi32>
    %634 = arith.select %632, %1, %633 : vector<8x128xi1>, vector<8x128xi32>
    %cst_255 = arith.constant dense<2147483647> : vector<8xi32>
    %635 = vector.multi_reduction <minsi>, %634, %cst_255 [1] : vector<8x128xi32> to vector<8xi32>
    %636 = vector.shape_cast %635 : vector<8xi32> to vector<8x1xi32>
    %637 = vector.broadcast %636 : vector<8x1xi32> to vector<8x128xi32>
    %638 = arith.cmpi eq, %1, %637 : vector<8x128xi32>
    %639 = arith.extui %638 : vector<8x128xi1> to vector<8x128xi32>
    %640 = arith.sitofp %639 : vector<8x128xi32> to vector<8x128xf32>
    %c7_i32_256 = arith.constant 7 : i32
    %641 = tpu.concatenate %640, %596 in 1 : vector<8x128xf32>, vector<8x32xf32> -> vector<8x160xf32>
    %c0_257 = arith.constant 0 : index
    %c0_258 = arith.constant 0 : index
    %642 = vector.load %arg5[%c0_257, %c0_258] : memref<160x128xf32, #tpu.memory_space<vmem>>, vector<160x128xf32>
    %cst_259 = arith.constant dense<0.000000e+00> : vector<8x128xf32>
    %643 = tpu.matmul %641, %642, %cst_259 {dimension_numbers = #tpu.dot_dimension_numbers<[1], [0], [0], [1], [0, 0, 1, 1], [], []>} : vector<8x160xf32>, vector<160x128xf32>, vector<8x128xf32> -> vector<8x128xf32>
    %c96_i32_260 = arith.constant 96 : i32
    %644 = vector.broadcast %c96_i32_260 : i32 to vector<8x128xi32>
    %645 = arith.cmpi slt, %0, %644 : vector<8x128xi32>
    %646 = arith.negf %643 : vector<8x128xf32>
    %647 = math.exp %646 : vector<8x128xf32>
    %cst_261 = arith.constant 1.000000e+00 : f32
    %648 = vector.broadcast %cst_261 : f32 to vector<8x128xf32>
    %649 = arith.addf %648, %647 : vector<8x128xf32>
    %650 = arith.divf %648, %649 : vector<8x128xf32>
    %651 = math.tanh %643 : vector<8x128xf32>
    %652 = arith.select %645, %650, %651 : vector<8x128xi1>, vector<8x128xf32>
    %653 = vector.extract_strided_slice %652 {offsets = [0, 0], sizes = [8, 32], strides = [1, 1]} : vector<8x128xf32> to vector<8x32xf32>
    %654 = vector.extract_strided_slice %652 {offsets = [0, 32], sizes = [8, 32], strides = [1, 1]} : vector<8x128xf32> to vector<8x32xf32>
    %655 = vector.extract_strided_slice %652 {offsets = [0, 64], sizes = [8, 32], strides = [1, 1]} : vector<8x128xf32> to vector<8x32xf32>
    %656 = vector.extract_strided_slice %652 {offsets = [0, 96], sizes = [8, 32], strides = [1, 1]} : vector<8x128xf32> to vector<8x32xf32>
    %657 = arith.mulf %654, %594 : vector<8x32xf32>
    %658 = arith.mulf %653, %656 : vector<8x32xf32>
    %659 = arith.addf %657, %658 : vector<8x32xf32>
    %660 = math.tanh %659 : vector<8x32xf32>
    %661 = arith.mulf %655, %660 : vector<8x32xf32>
    %c0_262 = arith.constant 0 : index
    %c0_263 = arith.constant 0 : index
    %c0_264 = arith.constant 0 : index
    %662 = vector.load %arg11[%c0_262, %c0_263, %c0_264] : memref<8x8x32xf32, #tpu.memory_space<vmem>>, vector<8x8x32xf32>
    %663 = vector.shape_cast %661 : vector<8x32xf32> to vector<1x8x32xf32>
    %664 = vector.broadcast %663 : vector<1x8x32xf32> to vector<8x8x32xf32>
    %665 = arith.mulf %662, %664 : vector<8x8x32xf32>
    %cst_265 = arith.constant dense<0.000000e+00> : vector<8x8xf32>
    %666 = vector.multi_reduction <add>, %665, %cst_265 [2] : vector<8x8x32xf32> to vector<8x8xf32>
    %667 = vector.shape_cast %666 : vector<8x8xf32> to vector<8x8x1xf32>
    %cst_266 = arith.constant dense<0xFF800000> : vector<8x1xf32>
    %668 = vector.multi_reduction <maximumf>, %667, %cst_266 [0] : vector<8x8x1xf32> to vector<8x1xf32>
    %669 = vector.shape_cast %668 : vector<8x1xf32> to vector<1x8x1xf32>
    %670 = vector.broadcast %669 : vector<1x8x1xf32> to vector<8x8x1xf32>
    %671 = arith.subf %667, %670 : vector<8x8x1xf32>
    %672 = math.exp %671 : vector<8x8x1xf32>
    %cst_267 = arith.constant dense<0.000000e+00> : vector<8x1xf32>
    %673 = vector.multi_reduction <add>, %672, %cst_267 [0] : vector<8x8x1xf32> to vector<8x1xf32>
    %674 = vector.shape_cast %673 : vector<8x1xf32> to vector<1x8x1xf32>
    %675 = vector.broadcast %674 : vector<1x8x1xf32> to vector<8x8x1xf32>
    %676 = arith.divf %672, %675 : vector<8x8x1xf32>
    %c0_268 = arith.constant 0 : index
    %c0_269 = arith.constant 0 : index
    %c0_270 = arith.constant 0 : index
    %677 = vector.load %arg12[%c0_268, %c0_269, %c0_270] : memref<8x8x128xf32, #tpu.memory_space<vmem>>, vector<8x8x128xf32>
    %678 = vector.broadcast %676 : vector<8x8x1xf32> to vector<8x8x128xf32>
    %679 = arith.mulf %678, %677 : vector<8x8x128xf32>
    %cst_271 = arith.constant dense<0.000000e+00> : vector<8x128xf32>
    %680 = vector.multi_reduction <add>, %679, %cst_271 [0] : vector<8x8x128xf32> to vector<8x128xf32>
    %c0_272 = arith.constant 0 : index
    %c0_273 = arith.constant 0 : index
    %681 = vector.load %arg6[%c0_272, %c0_273] : memref<32x128xf32, #tpu.memory_space<vmem>>, vector<32x128xf32>
    %cst_274 = arith.constant dense<0.000000e+00> : vector<8x128xf32>
    %682 = tpu.matmul %661, %681, %cst_274 {dimension_numbers = #tpu.dot_dimension_numbers<[1], [0], [0], [1], [0, 0, 1, 1], [], []>} : vector<8x32xf32>, vector<32x128xf32>, vector<8x128xf32> -> vector<8x128xf32>
    %683 = arith.addf %682, %680 : vector<8x128xf32>
    %c0_275 = arith.constant 0 : index
    %c0_276 = arith.constant 0 : index
    %684 = vector.load %arg8[%c0_275, %c0_276] : memref<1x128xf32, #tpu.memory_space<vmem>>, vector<1x128xf32>
    %685 = vector.broadcast %684 : vector<1x128xf32> to vector<8x128xf32>
    %686 = arith.addf %683, %685 : vector<8x128xf32>
    %687 = arith.index_cast %c7_i32_256 : i32 to index
    %c0_277 = arith.constant 0 : index
    %c0_278 = arith.constant 0 : index
    %688 = vector.load %arg9[%687, %c0_277, %c0_278] : memref<8x8x128xf32, #tpu.memory_space<vmem>>, vector<1x8x128xf32>
    %689 = vector.shape_cast %688 : vector<1x8x128xf32> to vector<8x128xf32>
    %690 = vector.shape_cast %686 : vector<8x128xf32> to vector<1x8x128xf32>
    tpu.vector_store %arg9[%687, %c0_277, %c0_278], %690 {strides = array<i32>} : memref<8x8x128xf32, #tpu.memory_space<vmem>>, vector<1x8x128xf32>,
    %cst_279 = arith.constant dense<0xFF800000> : vector<8xf32>
    %691 = vector.multi_reduction <maximumf>, %686, %cst_279 [1] : vector<8x128xf32> to vector<8xf32>
    %692 = vector.shape_cast %691 : vector<8xf32> to vector<8x1xf32>
    %693 = vector.broadcast %692 : vector<8x1xf32> to vector<8x128xf32>
    %694 = arith.cmpf oeq, %686, %693 : vector<8x128xf32>
    %c32_i32_280 = arith.constant 32 : i32
    %695 = vector.broadcast %c32_i32_280 : i32 to vector<8x128xi32>
    %696 = arith.cmpi slt, %1, %695 : vector<8x128xi32>
    %697 = arith.andi %694, %696 : vector<8x128xi1>
    %c128_i32_281 = arith.constant 128 : i32
    %698 = vector.broadcast %c128_i32_281 : i32 to vector<8x128xi32>
    %699 = arith.select %697, %1, %698 : vector<8x128xi1>, vector<8x128xi32>
    %cst_282 = arith.constant dense<2147483647> : vector<8xi32>
    %700 = vector.multi_reduction <minsi>, %699, %cst_282 [1] : vector<8x128xi32> to vector<8xi32>
    %701 = vector.shape_cast %700 : vector<8xi32> to vector<8x1xi32>
    %702 = vector.broadcast %701 : vector<8x1xi32> to vector<8x128xi32>
    %703 = arith.cmpi eq, %1, %702 : vector<8x128xi32>
    %704 = arith.extui %703 : vector<8x128xi1> to vector<8x128xi32>
    %705 = arith.sitofp %704 : vector<8x128xi32> to vector<8x128xf32>
    %c7_i32_283 = arith.constant 7 : i32
    return
  }
  func.func @transform_0(%arg0: i32) -> (i32, i32, i32) {
    %c0_i32 = arith.constant 0 : i32
    %c0_i32_0 = arith.constant 0 : i32
    %c0_i32_1 = arith.constant 0 : i32
    return %c0_i32, %arg0, %c0_i32_0 : i32, i32, i32
  }
  func.func @transform_1(%arg0: i32) -> (i32, i32) {
    %c0_i32 = arith.constant 0 : i32
    %c0_i32_0 = arith.constant 0 : i32
    %c0_i32_1 = arith.constant 0 : i32
    return %c0_i32, %c0_i32_0 : i32, i32
  }
  func.func @transform_2(%arg0: i32) -> (i32, i32) {
    %c0_i32 = arith.constant 0 : i32
    %c0_i32_0 = arith.constant 0 : i32
    %c0_i32_1 = arith.constant 0 : i32
    return %c0_i32, %c0_i32_0 : i32, i32
  }
  func.func @transform_3(%arg0: i32) -> (i32, i32) {
    %c0_i32 = arith.constant 0 : i32
    %c0_i32_0 = arith.constant 0 : i32
    %c0_i32_1 = arith.constant 0 : i32
    return %c0_i32, %c0_i32_0 : i32, i32
  }
  func.func @transform_4(%arg0: i32) -> (i32, i32) {
    %c0_i32 = arith.constant 0 : i32
    %c0_i32_0 = arith.constant 0 : i32
    %c0_i32_1 = arith.constant 0 : i32
    return %c0_i32, %c0_i32_0 : i32, i32
  }
  func.func @transform_5(%arg0: i32) -> (i32, i32) {
    %c0_i32 = arith.constant 0 : i32
    %c0_i32_0 = arith.constant 0 : i32
    %c0_i32_1 = arith.constant 0 : i32
    return %c0_i32, %c0_i32_0 : i32, i32
  }
  func.func @transform_6(%arg0: i32) -> (i32, i32) {
    %c0_i32 = arith.constant 0 : i32
    %c0_i32_0 = arith.constant 0 : i32
    %c0_i32_1 = arith.constant 0 : i32
    return %c0_i32, %c0_i32_0 : i32, i32
  }
  func.func @transform_7(%arg0: i32) -> (i32, i32) {
    %c0_i32 = arith.constant 0 : i32
    %c0_i32_0 = arith.constant 0 : i32
    %c0_i32_1 = arith.constant 0 : i32
    return %c0_i32, %c0_i32_0 : i32, i32
  }
  func.func @transform_8(%arg0: i32) -> (i32, i32, i32) {
    %c0_i32 = arith.constant 0 : i32
    %c0_i32_0 = arith.constant 0 : i32
    %c0_i32_1 = arith.constant 0 : i32
    return %c0_i32, %arg0, %c0_i32_0 : i32, i32, i32
  }
}

</mosaic_0001>

<llo_original>
// kernel: full_model_forward.1
$region0: #{full_model_forward.1}
  #allocation0 [shape = 'u32[]', space=smem, size = 0x4, offset = 0x4, fixed_abs, tag = 'smem constant byte address 0x4 - core index']
  #allocation1 [shape = 'u32[144,128]{1,0:T(1,128)}', space=vmem, size = 0x12000, scoped, tag = 'internal scratch']
  #allocation2 [shape = 'f32[8,8,128]{2,1,0:T(8,128)}', space=vmem, size = 0x8000, scoped, tag = 'scratch operand']
  #allocation3 [shape = 'f32[8,8,32]{2,1,0:T(8,128)}', space=vmem, size = 0x8000, scoped, tag = 'scratch operand']
  #allocation4 [shape = 'f32[8,8,128]{2,1,0:T(8,128)}', space=vmem, size = 0x8000, scoped, tag = 'scratch operand']
  %s0 = inlined_call_operand.vmem [shape: f32[8,16,32], index: 0, kind: input, shape index: {}]
  %s1 = inlined_call_operand.vmem [shape: f32[32,128], index: 1, kind: input, shape index: {}]
  %s2 = inlined_call_operand.vmem [shape: f32[32,128], index: 2, kind: input, shape index: {}]
  %s3 = inlined_call_operand.vmem [shape: f32[1,128], index: 3, kind: input, shape index: {}]
  %s4 = inlined_call_operand.vmem [shape: f32[160,128], index: 4, kind: input, shape index: {}]
  %s5 = inlined_call_operand.vmem [shape: f32[32,128], index: 5, kind: input, shape index: {}]
  %s6 = inlined_call_operand.vmem [shape: f32[32,128], index: 6, kind: input, shape index: {}]
  %s7 = inlined_call_operand.vmem [shape: f32[1,128], index: 7, kind: input, shape index: {}]
  %s8 = inlined_call_operand.hbm [shape: f32[8,16,128], index: 8, kind: output, shape index: {}]
  %s9 = sld [smem:[#allocation0]]
  $region103: #{full_model_forward.1} parent=0
    _
  %s11 = ssub.s32 1, %s9
  %s12 = scalar_select 0, %s11, %s9
  $region1: #{full_model_forward.1} parent=0
    #allocation5 [shape = 'u8[65536]{0}', space=vmem, size = 0x10000, scoped, tag = 'input window, operand 0']
    #allocation6 [shape = 'u8[65536]{0}', space=vmem, size = 0x10000, scoped, tag = 'output window, operand 0']
    #allocation7 [shape = 's32[2]{0}', space=sflag, size = 0x8, scoped, tag = 'scoped memory for full_model_forward.1']
    %13 = vsyncpa [#allocation7], 0
    %s14 = scalar_lea.sflag [#allocation7], 1
    %15 = vsyncpa %s14, 0
    loop: start=0, step=1, limit=4
    $region2: #{full_model_forward.1} parent=1 // loop_pre_header
      _
    $region3: #{full_model_forward.1} parent=1 // loop_header
      %s17 = sphi 0, %s21
      %p18 = scmp.ge.s32.totalorder %s17, 4
      %s27 = sphi 0, %s29
      %s30 = sphi 0, %s27
      %s31 = sphi 0, %s30
      %s47 = sphi 0, %s31
      %s51 = sphi 0, %s51
      %s53 = sphi 0, %s51
      %s54 = sphi 0, %s53
      %s68 = sphi 0, %s54
      %s72 = sphi 0, %s72
      %s74 = sphi 0, %s72
      %s75 = sphi 0, %s74
      %s89 = sphi 0, %s75
      %s93 = sphi 0, %s93
      %s95 = sphi 0, %s93
      %s96 = sphi 0, %s95
      %s110 = sphi 0, %s96
      %s114 = sphi 0, %s114
      %s116 = sphi 0, %s114
      %s117 = sphi 0, %s116
      %s131 = sphi 0, %s117
      %s135 = sphi 0, %s135
      %s137 = sphi 0, %s135
      %s138 = sphi 0, %s137
      %s152 = sphi 0, %s138
      %s156 = sphi 0, %s156
      %s158 = sphi 0, %s156
      %s159 = sphi 0, %s158
      %s173 = sphi 0, %s159
      %s177 = sphi 0, %s177
      %s179 = sphi 0, %s177
      %s180 = sphi 0, %s179
      %s194 = sphi 0, %s180
      %s200 = sphi 0, %s202
      %s203 = sphi 0, %s200
      %s204 = sphi 0, %s203
      %s220 = sphi 0, %s204
    $region4: #{full_model_forward.1} parent=1 // loop_header_branch
      %20 = sbr.rel (%p18) target = $region8
    $region5: #{full_model_forward.1} parent=1 // loop_body
      %s22 = ssub.s32 %s17, 1
      %s23 = ssub.s32 %s17, 2
      %s24 = sadd.s32 %s17, 1
      %s25 = ssub.s32 %s17, %s24
      %p26 = scmp.eq.s32.totalorder %s25, 0
      %s28 = sadd.s32 %s27, 1
      %s29 = scalar_select %p26, %s27, %s28
      %p32 = pneg %p26
      %p33 = scmp.eq.s32.totalorder %s17, 1
      %p34 = por %p32, %p33
      %p35 = scmp.ne.s32.totalorder %s27, %s30
      %p36 = scmp.eq.s32.totalorder %s17, 0
      %p37 = por %p35, %p36
      %p38 = scmp.ne.s32.totalorder %s27, %s30
      %p39 = scmp.eq.s32.totalorder %s22, 1
      %p40 = por %p38, %p39
      %p41 = scmp.ne.s32.totalorder %s30, %s31
      %p42 = scmp.eq.s32.totalorder %s22, 0
      %p43 = por %p41, %p42
      %p44 = scmp.ne.s32.totalorder %s30, %s31
      %p45 = scmp.eq.s32.totalorder %s23, 1
      %p46 = por %p44, %p45
      %p48 = scmp.ne.s32.totalorder %s31, %s47
      %p49 = scmp.eq.s32.totalorder %s23, 0
      %p50 = por %p48, %p49
      %s52 = sadd.s32 %s51, 1
      %p55 = scmp.eq.s32.totalorder %s17, 1
      %p56 = scmp.ne.s32.totalorder %s51, %s53
      %p57 = scmp.eq.s32.totalorder %s17, 0
      %p58 = por %p56, %p57
      %p59 = scmp.ne.s32.totalorder %s51, %s53
      %p60 = scmp.eq.s32.totalorder %s22, 1
      %p61 = por %p59, %p60
      %p62 = scmp.ne.s32.totalorder %s53, %s54
      %p63 = scmp.eq.s32.totalorder %s22, 0
      %p64 = por %p62, %p63
      %p65 = scmp.ne.s32.totalorder %s53, %s54
      %p66 = scmp.eq.s32.totalorder %s23, 1
      %p67 = por %p65, %p66
      %p69 = scmp.ne.s32.totalorder %s54, %s68
      %p70 = scmp.eq.s32.totalorder %s23, 0
      %p71 = por %p69, %p70
      %s73 = sadd.s32 %s72, 1
      %p76 = scmp.eq.s32.totalorder %s17, 1
      %p77 = scmp.ne.s32.totalorder %s72, %s74
      %p78 = scmp.eq.s32.totalorder %s17, 0
      %p79 = por %p77, %p78
      %p80 = scmp.ne.s32.totalorder %s72, %s74
      %p81 = scmp.eq.s32.totalorder %s22, 1
      %p82 = por %p80, %p81
      %p83 = scmp.ne.s32.totalorder %s74, %s75
      %p84 = scmp.eq.s32.totalorder %s22, 0
      %p85 = por %p83, %p84
      %p86 = scmp.ne.s32.totalorder %s74, %s75
      %p87 = scmp.eq.s32.totalorder %s23, 1
      %p88 = por %p86, %p87
      %p90 = scmp.ne.s32.totalorder %s75, %s89
      %p91 = scmp.eq.s32.totalorder %s23, 0
      %p92 = por %p90, %p91
      %s94 = sadd.s32 %s93, 1
      %p97 = scmp.eq.s32.totalorder %s17, 1
      %p98 = scmp.ne.s32.totalorder %s93, %s95
      %p99 = scmp.eq.s32.totalorder %s17, 0
      %p100 = por %p98, %p99
      %p101 = scmp.ne.s32.totalorder %s93, %s95
      %p102 = scmp.eq.s32.totalorder %s22, 1
      %p103 = por %p101, %p102
      %p104 = scmp.ne.s32.totalorder %s95, %s96
      %p105 = scmp.eq.s32.totalorder %s22, 0
      %p106 = por %p104, %p105
      %p107 = scmp.ne.s32.totalorder %s95, %s96
      %p108 = scmp.eq.s32.totalorder %s23, 1
      %p109 = por %p107, %p108
      %p111 = scmp.ne.s32.totalorder %s96, %s110
      %p112 = scmp.eq.s32.totalorder %s23, 0
      %p113 = por %p111, %p112
      %s115 = sadd.s32 %s114, 1
      %p118 = scmp.eq.s32.totalorder %s17, 1
      %p119 = scmp.ne.s32.totalorder %s114, %s116
      %p120 = scmp.eq.s32.totalorder %s17, 0
      %p121 = por %p119, %p120
      %p122 = scmp.ne.s32.totalorder %s114, %s116
      %p123 = scmp.eq.s32.totalorder %s22, 1
      %p124 = por %p122, %p123
      %p125 = scmp.ne.s32.totalorder %s116, %s117
      %p126 = scmp.eq.s32.totalorder %s22, 0
      %p127 = por %p125, %p126
      %p128 = scmp.ne.s32.totalorder %s116, %s117
      %p129 = scmp.eq.s32.totalorder %s23, 1
      %p130 = por %p128, %p129
      %p132 = scmp.ne.s32.totalorder %s117, %s131
      %p133 = scmp.eq.s32.totalorder %s23, 0
      %p134 = por %p132, %p133
      %s136 = sadd.s32 %s135, 1
      %p139 = scmp.eq.s32.totalorder %s17, 1
      %p140 = scmp.ne.s32.totalorder %s135, %s137
      %p141 = scmp.eq.s32.totalorder %s17, 0
      %p142 = por %p140, %p141
      %p143 = scmp.ne.s32.totalorder %s135, %s137
      %p144 = scmp.eq.s32.totalorder %s22, 1
      %p145 = por %p143, %p144
      %p146 = scmp.ne.s32.totalorder %s137, %s138
      %p147 = scmp.eq.s32.totalorder %s22, 0
      %p148 = por %p146, %p147
      %p149 = scmp.ne.s32.totalorder %s137, %s138
      %p150 = scmp.eq.s32.totalorder %s23, 1
      %p151 = por %p149, %p150
      %p153 = scmp.ne.s32.totalorder %s138, %s152
      %p154 = scmp.eq.s32.totalorder %s23, 0
      %p155 = por %p153, %p154
      %s157 = sadd.s32 %s156, 1
      %p160 = scmp.eq.s32.totalorder %s17, 1
      %p161 = scmp.ne.s32.totalorder %s156, %s158
      %p162 = scmp.eq.s32.totalorder %s17, 0
      %p163 = por %p161, %p162
      %p164 = scmp.ne.s32.totalorder %s156, %s158
      %p165 = scmp.eq.s32.totalorder %s22, 1
      %p166 = por %p164, %p165
      %p167 = scmp.ne.s32.totalorder %s158, %s159
      %p168 = scmp.eq.s32.totalorder %s22, 0
      %p169 = por %p167, %p168
      %p170 = scmp.ne.s32.totalorder %s158, %s159
      %p171 = scmp.eq.s32.totalorder %s23, 1
      %p172 = por %p170, %p171
      %p174 = scmp.ne.s32.totalorder %s159, %s173
      %p175 = scmp.eq.s32.totalorder %s23, 0
      %p176 = por %p174, %p175
      %s178 = sadd.s32 %s177, 1
      %p181 = scmp.eq.s32.totalorder %s17, 1
      %p182 = scmp.ne.s32.totalorder %s177, %s179
      %p183 = scmp.eq.s32.totalorder %s17, 0
      %p184 = por %p182, %p183
      %p185 = scmp.ne.s32.totalorder %s177, %s179
      %p186 = scmp.eq.s32.totalorder %s22, 1
      %p187 = por %p185, %p186
      %p188 = scmp.ne.s32.totalorder %s179, %s180
      %p189 = scmp.eq.s32.totalorder %s22, 0
      %p190 = por %p188, %p189
      %p191 = scmp.ne.s32.totalorder %s179, %s180
      %p192 = scmp.eq.s32.totalorder %s23, 1
      %p193 = por %p191, %p192
      %p195 = scmp.ne.s32.totalorder %s180, %s194
      %p196 = scmp.eq.s32.totalorder %s23, 0
      %p197 = por %p195, %p196
      %s198 = ssub.s32 %s17, %s24
      %p199 = scmp.eq.s32.totalorder %s198, 0
      %s201 = sadd.s32 %s200, 1
      %s202 = scalar_select %p199, %s200, %s201
      %p205 = pneg %p199
      %p206 = scmp.eq.s32.totalorder %s17, 1
      %p207 = por %p205, %p206
      %p208 = scmp.ne.s32.totalorder %s200, %s203
      %p209 = scmp.eq.s32.totalorder %s17, 0
      %p210 = por %p208, %p209
      %p211 = scmp.ne.s32.totalorder %s200, %s203
      %p212 = scmp.eq.s32.totalorder %s22, 1
      %p213 = por %p211, %p212
      %p214 = scmp.ne.s32.totalorder %s203, %s204
      %p215 = scmp.eq.s32.totalorder %s22, 0
      %p216 = por %p214, %p215
      %p217 = scmp.ne.s32.totalorder %s203, %s204
      %p218 = scmp.eq.s32.totalorder %s23, 1
      %p219 = por %p217, %p218
      %p221 = scmp.ne.s32.totalorder %s204, %s220
      %p222 = scmp.eq.s32.totalorder %s23, 0
      %p223 = por %p221, %p222
      %p224 = scmp.le.s32.totalorder 1, %s17
      %p225 = scmp.lt.s32.totalorder %s17, 3
      %p226 = pnand %p224, %p225
      %p227 = pneg %p226
      // Predicated region
      $region9: #{full_model_forward.1} parent=5 // pred_check
        _
      $region10: #{full_model_forward.1} parent=5 // pred_check_branch
        %229 = sbr.rel (%p226) target = $region12
      $region11: #{full_model_forward.1} parent=5 // pred_region
        %s230 = ssub.s32 %s17, 1
        // Predicated region
        $region13: #{full_model_forward.1} parent=11 // pred_check
          %p231 = pneg %p64
        $region14: #{full_model_forward.1} parent=11 // pred_check_branch
          %233 = sbr.rel (%p231) target = $region16
        $region15: #{full_model_forward.1} parent=11 // pred_region
          _
        $region16: #{full_model_forward.1} parent=11 // pred_fallthru
          _
        // Predicated region
        $region17: #{full_model_forward.1} parent=11 // pred_check
          %p234 = pneg %p85
        $region18: #{full_model_forward.1} parent=11 // pred_check_branch
          %236 = sbr.rel (%p234) target = $region20
        $region19: #{full_model_forward.1} parent=11 // pred_region
          _
        $region20: #{full_model_forward.1} parent=11 // pred_fallthru
          _
        // Predicated region
        $region21: #{full_model_forward.1} parent=11 // pred_check
          %p237 = pneg %p106
        $region22: #{full_model_forward.1} parent=11 // pred_check_branch
          %239 = sbr.rel (%p237) target = $region24
        $region23: #{full_model_forward.1} parent=11 // pred_region
          _
        $region24: #{full_model_forward.1} parent=11 // pred_fallthru
          _
        // Predicated region
        $region25: #{full_model_forward.1} parent=11 // pred_check
          %p240 = pneg %p127
        $region26: #{full_model_forward.1} parent=11 // pred_check_branch
          %242 = sbr.rel (%p240) target = $region28
        $region27: #{full_model_forward.1} parent=11 // pred_region
          _
        $region28: #{full_model_forward.1} parent=11 // pred_fallthru
          _
        // Predicated region
        $region29: #{full_model_forward.1} parent=11 // pred_check
          %p243 = pneg %p148
        $region30: #{full_model_forward.1} parent=11 // pred_check_branch
          %245 = sbr.rel (%p243) target = $region32
        $region31: #{full_model_forward.1} parent=11 // pred_region
          _
        $region32: #{full_model_forward.1} parent=11 // pred_fallthru
          _
        // Predicated region
        $region33: #{full_model_forward.1} parent=11 // pred_check
          %p246 = pneg %p169
        $region34: #{full_model_forward.1} parent=11 // pred_check_branch
          %248 = sbr.rel (%p246) target = $region36
        $region35: #{full_model_forward.1} parent=11 // pred_region
          _
        $region36: #{full_model_forward.1} parent=11 // pred_fallthru
          _
        // Predicated region
        $region37: #{full_model_forward.1} parent=11 // pred_check
          %p249 = pneg %p190
        $region38: #{full_model_forward.1} parent=11 // pred_check_branch
          %251 = sbr.rel (%p249) target = $region40
        $region39: #{full_model_forward.1} parent=11 // pred_region
          _
        $region40: #{full_model_forward.1} parent=11 // pred_fallthru
          _
      $region12: #{full_model_forward.1} parent=5 // pred_fallthru
        _
      %p252 = scmp.lt.s32.totalorder %s17, 2
      // Predicated region
      $region41: #{full_model_forward.1} parent=5 // pred_check
        %p253 = pneg %p252
      $region42: #{full_model_forward.1} parent=5 // pred_check_branch
        %255 = sbr.rel (%p253) target = $region44
      $region43: #{full_model_forward.1} parent=5 // pred_region
        // Predicated region
        $region45: #{full_model_forward.1} parent=43 // pred_check
          %p256 = pneg %p37
        $region46: #{full_model_forward.1} parent=43 // pred_check_branch
          %258 = sbr.rel (%p256) target = $region48
        $region47: #{full_model_forward.1} parent=43 // pred_region
          %s259 = sand.u32 %s27, 1
          %s260 = sand.u32 %s27, 1
          %s261 = smul.addr %s260, 64
          %s262 = scalar_lea.vmem [#allocation5], %s261
          %s263 = smul.addr %s17, 8
          %s264 = scalar_lea.vmem %s0, %s263
          // Predicated region
          $region49: #{full_model_forward.1} parent=47 // pred_check
            _
          $region50: #{full_model_forward.1} parent=47 // pred_check_branch
            %266 = sbr.rel (0) target = $region52
          $region51: #{full_model_forward.1} parent=47 // pred_region
            // Predicated region
            $region53: #{full_model_forward.1} parent=51 // pred_check
              _
            $region54: #{full_model_forward.1} parent=51 // pred_check_branch
              %268 = sbr.rel (0) target = $region56
            $region55: #{full_model_forward.1} parent=51 // pred_region
              // Predicated region
              $region68: #{full_model_forward.1} parent=55 // pred_check
                _
              $region69: #{full_model_forward.1} parent=55 // pred_check_branch
                %298 = sbr.rel (0) target = $region71
              $region70: #{full_model_forward.1} parent=55 // pred_region
                loop: start=0, step=1, limit=1
                $region72: #{full_model_forward.1} parent=70 // loop_pre_header
                  _
                $region73: #{full_model_forward.1} parent=70 // loop_header
                  %s300 = sphi 0, %s304
                  %p301 = scmp.ge.s32.totalorder %s300, 1
                  %s305 = sphi %s264, %s264
                  %s306 = sphi %s262, %s262
                $region74: #{full_model_forward.1} parent=70 // loop_header_branch
                  %303 = sbr.rel (%p301) target = $region78
                $region75: #{full_model_forward.1} parent=70 // loop_body
                  %v307 = vld [vmem:[%s305] sm:$0xff]
                  %308 = vst [vmem:[%s306] sm:$0xff] %v307
                  %v309 = vld [vmem:[%s305 + $0x10] sm:$0xff]
                  %310 = vst [vmem:[%s306 + $0x8] sm:$0xff] %v309
                  %v311 = vld [vmem:[%s305 + $0x20] sm:$0xff]
                  %312 = vst [vmem:[%s306 + $0x10] sm:$0xff] %v311
                  %v313 = vld [vmem:[%s305 + $0x30] sm:$0xff]
                  %314 = vst [vmem:[%s306 + $0x18] sm:$0xff] %v313
                  %v315 = vld [vmem:[%s305 + $0x40] sm:$0xff]
                  %316 = vst [vmem:[%s306 + $0x20] sm:$0xff] %v315
                  %v317 = vld [vmem:[%s305 + $0x50] sm:$0xff]
                  %318 = vst [vmem:[%s306 + $0x28] sm:$0xff] %v317
                  %v319 = vld [vmem:[%s305 + $0x60] sm:$0xff]
                  %320 = vst [vmem:[%s306 + $0x30] sm:$0xff] %v319
                  %v321 = vld [vmem:[%s305 + $0x70] sm:$0xff]
                  %322 = vst [vmem:[%s306 + $0x38] sm:$0xff] %v321
                $region76: #{full_model_forward.1} parent=70 // loop_footer
                  %s304 = sadd.s32 1, %s300
                $region77: #{full_model_forward.1} parent=70 // loop_footer_branch
                  %299 = sbr.rel target = $region73
                $region78: #{full_model_forward.1} parent=70 // loop_exit
                  _
              $region71: #{full_model_forward.1} parent=55 // pred_fallthru
                _
              // Predicated region
              $region79: #{full_model_forward.1} parent=55 // pred_check
                _
              $region80: #{full_model_forward.1} parent=55 // pred_check_branch
                %324 = sbr.rel target = $region82
              $region81: #{full_model_forward.1} parent=55 // pred_region
                _
              $region82: #{full_model_forward.1} parent=55 // pred_fallthru
                _
            $region56: #{full_model_forward.1} parent=51 // pred_fallthru
              _
            // Predicated region
            $region57: #{full_model_forward.1} parent=51 // pred_check
              _
            $region58: #{full_model_forward.1} parent=51 // pred_check_branch
              %270 = sbr.rel target = $region60
            $region59: #{full_model_forward.1} parent=51 // pred_region
              %s272 = ssub.s32 256, 1
              loop: start=0, step=1, limit=1
              $region61: #{full_model_forward.1} parent=59 // loop_pre_header
                _
              $region62: #{full_model_forward.1} parent=59 // loop_header
                %s274 = sphi 0, %s278
                %p275 = scmp.ge.s32.totalorder %s274, 1
                %s279 = sphi %s264, %s264
                %s280 = sphi %s262, %s262
              $region63: #{full_model_forward.1} parent=59 // loop_header_branch
                %277 = sbr.rel (%p275) target = $region67
              $region64: #{full_model_forward.1} parent=59 // loop_body
                %v281 = vld [vmem:[%s279] sm:%s272]
                %282 = vst [vmem:[%s280] sm:%s272] %v281
                %v283 = vld [vmem:[%s279 + $0x10] sm:%s272]
                %284 = vst [vmem:[%s280 + $0x8] sm:%s272] %v283
                %v285 = vld [vmem:[%s279 + $0x20] sm:%s272]
                %286 = vst [vmem:[%s280 + $0x10] sm:%s272] %v285
                %v287 = vld [vmem:[%s279 + $0x30] sm:%s272]
                %288 = vst [vmem:[%s280 + $0x18] sm:%s272] %v287
                %v289 = vld [vmem:[%s279 + $0x40] sm:%s272]
                %290 = vst [vmem:[%s280 + $0x20] sm:%s272] %v289
                %v291 = vld [vmem:[%s279 + $0x50] sm:%s272]
                %292 = vst [vmem:[%s280 + $0x28] sm:%s272] %v291
                %v293 = vld [vmem:[%s279 + $0x60] sm:%s272]
                %294 = vst [vmem:[%s280 + $0x30] sm:%s272] %v293
                %v295 = vld [vmem:[%s279 + $0x70] sm:%s272]
                %296 = vst [vmem:[%s280 + $0x38] sm:%s272] %v295
              $region65: #{full_model_forward.1} parent=59 // loop_footer
                %s278 = sadd.s32 1, %s274
              $region66: #{full_model_forward.1} parent=59 // loop_footer_branch
                %273 = sbr.rel target = $region62
              $region67: #{full_model_forward.1} parent=59 // loop_exit
                _
            $region60: #{full_model_forward.1} parent=51 // pred_fallthru
              _
          $region52: #{full_model_forward.1} parent=47 // pred_fallthru
            _
          %325 = vnop
        $region48: #{full_model_forward.1} parent=43 // pred_fallthru
          _
      $region44: #{full_model_forward.1} parent=5 // pred_fallthru
        _
      %p326 = scmp.le.s32.totalorder 1, %s17
      %p327 = scmp.lt.s32.totalorder %s17, 3
      %p328 = pnand %p326, %p327
      %p329 = pneg %p328
      // Predicated region
      $region83: #{full_model_forward.1} parent=5 // pred_check
        _
      $region84: #{full_model_forward.1} parent=5 // pred_check_branch
        %331 = sbr.rel (%p328) target = $region86
      $region85: #{full_model_forward.1} parent=5 // pred_region
        %s332 = ssub.s32 %s17, 1
        %s333 = sand.u32 %s30, 1
        %s334 = sand.u32 %s30, 1
        %s335 = smul.addr %s334, 64
        %s336 = scalar_lea.vmem [#allocation5], %s335
        // Predicated region
        $region87: #{full_model_forward.1} parent=85 // pred_check
          %p337 = pneg %p43
        $region88: #{full_model_forward.1} parent=85 // pred_check_branch
          %339 = sbr.rel (%p337) target = $region90
        $region89: #{full_model_forward.1} parent=85 // pred_region
          _
        $region90: #{full_model_forward.1} parent=85 // pred_fallthru
          _
        %s340 = sand.u32 %s30, 1
        %s341 = sand.u32 %s30, 1
        %s342 = smul.addr %s341, 64
        %s343 = scalar_lea.vmem [#allocation5], %s342
        %p344 = pneg %p43
        %p345 = pneg %p40
        %p346 = pneg %p64
        %p347 = pneg %p61
        %p348 = pneg %p85
        %p349 = pneg %p82
        %p350 = pneg %p106
        %p351 = pneg %p103
        %p352 = pneg %p127
        %p353 = pneg %p124
        %p354 = pneg %p148
        %p355 = pneg %p145
        %p356 = pneg %p169
        %p357 = pneg %p166
        %p358 = pneg %p190
        %p359 = pneg %p187
        %p360 = pneg %p216
        %p361 = pneg %p213
        %s362 = sand.u32 %s203, 1
        %s363 = scalar_lea.sflag [#allocation7], %s362
        %s364 = sand.u32 %s203, 1
        %s365 = smul.addr %s364, 64
        %s366 = scalar_lea.vmem [#allocation6], %s365
        %v367 = vlaneseq
        %v368 = vand.u32 %v367, 127
        %v369 = vld [vmem:[%s336] sm:$0xff]
        %v370 = vld [vmem:[%s336 + $0x8] sm:$0xff]
        %v371 = vld [vmem:[%s336 + $0x10] sm:$0xff]
        %v372 = vld [vmem:[%s336 + $0x18] sm:$0xff]
        %v373 = vld [vmem:[%s336 + $0x20] sm:$0xff]
        %v374 = vld [vmem:[%s336 + $0x28] sm:$0xff]
        %v375 = vld [vmem:[%s336 + $0x30] sm:$0xff]
        %v376 = vld [vmem:[%s336 + $0x38] sm:$0xff]
        %v377 = vld [vmem:[%s1] sm:$0xff]
        %v378 = vld [vmem:[%s1 + $0x8] sm:$0xff]
        %v379 = vld [vmem:[%s1 + $0x10] sm:$0xff]
        %v380 = vld [vmem:[%s1 + $0x18] sm:$0xff]
        %v381 = vld [vmem:[%s3] sm:$0x1]
        %v383 = vlaneseq
        %v384 = vshrl.u32 %v383, 7
        %v385 = vsub.s32 0, %v384
        %v386 = vrot.slane %v381, %v385
        %vm388 = vcmask 261120
        %v390 = vsel %vm388, %v369, 0
        %v393 = vsel %vm388, %v370, 0
        %v396 = vsel %vm388, %v371, 0
        %v399 = vsel %vm388, %v372, 0
        %v402 = vsel %vm388, %v373, 0
        %v405 = vsel %vm388, %v374, 0
        %v408 = vsel %vm388, %v375, 0
        %v411 = vsel %vm388, %v376, 0
        %413 = vmatprep.subr.mxu0 0.0
        %414 = vmatpush1.msra.mxu0 0.0
        %415 = vmatprep.subr.mxu0 0.0
        %416 = vmatpush1.msra.mxu0 0.0
        %417 = vmatprep.subr.mxu0 0.0
        %418 = vmatpush1.msra.mxu0 0.0
        %419 = vmatprep.subr.mxu0 0.0
        %420 = vmatpush1.msra.mxu0 0.0
        %421 = vmatprep.subr.mxu0 0.0
        %422 = vmatpush1.msra.mxu0 0.0
        %423 = vmatprep.subr.mxu0 0.0
        %424 = vmatpush1.msra.mxu0 0.0
        %425 = vmatprep.subr.mxu0 0.0
        %426 = vmatpush1.msra.mxu0 0.0
        %427 = vmatprep.subr.mxu0 0.0
        %428 = vmatpush1.msra.mxu0 0.0
        %429 = vmatprep.subr.mxu0 0.0
        %430 = vmatpush1.msra.mxu0 0.0
        %431 = vmatprep.subr.mxu0 0.0
        %432 = vmatpush1.msra.mxu0 0.0
        %433 = vmatprep.subr.mxu0 0.0
        %434 = vmatpush1.msra.mxu0 0.0
        %435 = vmatprep.subr.mxu0 0.0
        %436 = vmatpush1.msra.mxu0 0.0
        %437 = vmatprep.subr.mxu0 0.0
        %438 = vmatpush1.msra.mxu0 %v380
        %439 = vmatprep.subr.mxu0 0.0
        %440 = vmatpush1.msra.mxu0 %v379
        %441 = vmatprep.subr.mxu0 0.0
        %442 = vmatpush1.msra.mxu0 %v378
        %443 = vmatprep.subr.mxu0 0.0
        %444 = vmatpush1.msra.mxu0 %v377
        %445 = vmatprep.subr.mxu0 0.0
        %446 = vmatpush2.msra.mxu0 0.0
        %447 = vmatprep.subr.mxu0 0.0
        %448 = vmatpush2.msra.mxu0 0.0
        %449 = vmatprep.subr.mxu0 0.0
        %450 = vmatpush2.msra.mxu0 0.0
        %451 = vmatprep.subr.mxu0 0.0
        %452 = vmatpush2.msra.mxu0 0.0
        %453 = vmatprep.subr.mxu0 0.0
        %454 = vmatpush2.msra.mxu0 0.0
        %455 = vmatprep.subr.mxu0 0.0
        %456 = vmatpush2.msra.mxu0 0.0
        %457 = vmatprep.subr.mxu0 0.0
        %458 = vmatpush2.msra.mxu0 0.0
        %459 = vmatprep.subr.mxu0 0.0
        %460 = vmatpush2.msra.mxu0 0.0
        %461 = vmatprep.subr.mxu0 0.0
        %462 = vmatpush2.msra.mxu0 0.0
        %463 = vmatprep.subr.mxu0 0.0
        %464 = vmatpush2.msra.mxu0 0.0
        %465 = vmatprep.subr.mxu0 0.0
        %466 = vmatpush2.msra.mxu0 0.0
        %467 = vmatprep.subr.mxu0 0.0
        %468 = vmatpush2.msra.mxu0 0.0
        %469 = vmatprep.subr.mxu0 0.0
        %470 = vmatpush2.msra.mxu0 0.0
        %471 = vmatprep.subr.mxu0 0.0
        %472 = vmatpush2.msra.mxu0 0.0
        %473 = vmatprep.subr.mxu0 0.0
        %474 = vmatpush2.msra.mxu0 0.0
        %475 = vmatprep.subr.mxu0 0.0
        %476 = vmatpush2.msra.mxu0 0.0
        %477 = vmatprep.mubr.f32.mxu0 0.0
        %478 = vmatmul.mubr.f32.gmra.mxu0 %v390
        %v479 = vpop.f32.mrf.mxu0
        %v480 = vadd.f32 %v386, %v479
        %v481 = vpop.f32.mrf.mxu0
        %482 = vmatprep.mubr.f32.mxu0 0.0
        %483 = vmatmul.mubr.f32.gmra.mxu0 %v393
        %v484 = vpop.f32.mrf.mxu0
        %v485 = vadd.f32 %v386, %v484
        %v486 = vpop.f32.mrf.mxu0
        %487 = vmatprep.mubr.f32.mxu0 0.0
        %488 = vmatmul.mubr.f32.gmra.mxu0 %v396
        %v489 = vpop.f32.mrf.mxu0
        %v490 = vadd.f32 %v386, %v489
        %v491 = vpop.f32.mrf.mxu0
        %492 = vmatprep.mubr.f32.mxu0 0.0
        %493 = vmatmul.mubr.f32.gmra.mxu0 %v399
        %v494 = vpop.f32.mrf.mxu0
        %v495 = vadd.f32 %v386, %v494
        %v496 = vpop.f32.mrf.mxu0
        %497 = vmatprep.mubr.f32.mxu0 0.0
        %498 = vmatmul.mubr.f32.gmra.mxu0 %v402
        %v499 = vpop.f32.mrf.mxu0
        %v500 = vadd.f32 %v386, %v499
        %v501 = vpop.f32.mrf.mxu0
        %502 = vmatprep.mubr.f32.mxu0 0.0
        %503 = vmatmul.mubr.f32.gmra.mxu0 %v405
        %v504 = vpop.f32.mrf.mxu0
        %v505 = vadd.f32 %v386, %v504
        %v506 = vpop.f32.mrf.mxu0
        %507 = vmatprep.mubr.f32.mxu0 0.0
        %508 = vmatmul.mubr.f32.gmra.mxu0 %v408
        %v509 = vpop.f32.mrf.mxu0
        %v510 = vadd.f32 %v386, %v509
        %v511 = vpop.f32.mrf.mxu0
        %512 = vmatprep.mubr.f32.mxu0 0.0
        %513 = vmatmul.mubr.f32.gmra.mxu0 %v411
        %v514 = vpop.f32.mrf.mxu0
        %v515 = vadd.f32 %v386, %v514
        %v516 = vpop.f32.mrf.mxu0
        %517 = vdwg.mxu0
        %518 = vst [vmem:[#allocation2] sm:$0xff] %v480
        %519 = vst [vmem:[#allocation2 + $0x8] sm:$0xff] %v485
        %520 = vst [vmem:[#allocation2 + $0x10] sm:$0xff] %v490
        %521 = vst [vmem:[#allocation2 + $0x18] sm:$0xff] %v495
        %522 = vst [vmem:[#allocation2 + $0x20] sm:$0xff] %v500
        %523 = vst [vmem:[#allocation2 + $0x28] sm:$0xff] %v505
        %524 = vst [vmem:[#allocation2 + $0x30] sm:$0xff] %v510
        %525 = vst [vmem:[#allocation2 + $0x38] sm:$0xff] %v515
        %v526 = vld [vmem:[#allocation2] sm:$0xff]
        %v527 = vld [vmem:[%s2] sm:$0xff]
        %v528 = vld [vmem:[%s2 + $0x8] sm:$0xff]
        %v529 = vld [vmem:[%s2 + $0x10] sm:$0xff]
        %v530 = vld [vmem:[%s2 + $0x18] sm:$0xff]
        %v532 = vsel %vm388, 0.0, 0
        %534 = vmatprep.subr.mxu0 0.0
        %535 = vmatpush1.msra.mxu0 0.0
        %536 = vmatprep.subr.mxu0 0.0
        %537 = vmatpush1.msra.mxu0 0.0
        %538 = vmatprep.subr.mxu0 0.0
        %539 = vmatpush1.msra.mxu0 0.0
        %540 = vmatprep.subr.mxu0 0.0
        %541 = vmatpush1.msra.mxu0 0.0
        %542 = vmatprep.subr.mxu0 0.0
        %543 = vmatpush1.msra.mxu0 0.0
        %544 = vmatprep.subr.mxu0 0.0
        %545 = vmatpush1.msra.mxu0 0.0
        %546 = vmatprep.subr.mxu0 0.0
        %547 = vmatpush1.msra.mxu0 0.0
        %548 = vmatprep.subr.mxu0 0.0
        %549 = vmatpush1.msra.mxu0 0.0
        %550 = vmatprep.subr.mxu0 0.0
        %551 = vmatpush1.msra.mxu0 0.0
        %552 = vmatprep.subr.mxu0 0.0
        %553 = vmatpush1.msra.mxu0 0.0
        %554 = vmatprep.subr.mxu0 0.0
        %555 = vmatpush1.msra.mxu0 0.0
        %556 = vmatprep.subr.mxu0 0.0
        %557 = vmatpush1.msra.mxu0 0.0
        %558 = vmatprep.subr.mxu0 0.0
        %559 = vmatpush1.msra.mxu0 %v530
        %560 = vmatprep.subr.mxu0 0.0
        %561 = vmatpush1.msra.mxu0 %v529
        %562 = vmatprep.subr.mxu0 0.0
        %563 = vmatpush1.msra.mxu0 %v528
        %564 = vmatprep.subr.mxu0 0.0
        %565 = vmatpush1.msra.mxu0 %v527
        %566 = vmatprep.subr.mxu0 0.0
        %567 = vmatpush2.msra.mxu0 0.0
        %568 = vmatprep.subr.mxu0 0.0
        %569 = vmatpush2.msra.mxu0 0.0
        %570 = vmatprep.subr.mxu0 0.0
        %571 = vmatpush2.msra.mxu0 0.0
        %572 = vmatprep.subr.mxu0 0.0
        %573 = vmatpush2.msra.mxu0 0.0
        %574 = vmatprep.subr.mxu0 0.0
        %575 = vmatpush2.msra.mxu0 0.0
        %576 = vmatprep.subr.mxu0 0.0
        %577 = vmatpush2.msra.mxu0 0.0
        %578 = vmatprep.subr.mxu0 0.0
        %579 = vmatpush2.msra.mxu0 0.0
        %580 = vmatprep.subr.mxu0 0.0
        %581 = vmatpush2.msra.mxu0 0.0
        %582 = vmatprep.subr.mxu0 0.0
        %583 = vmatpush2.msra.mxu0 0.0
        %584 = vmatprep.subr.mxu0 0.0
        %585 = vmatpush2.msra.mxu0 0.0
        %586 = vmatprep.subr.mxu0 0.0
        %587 = vmatpush2.msra.mxu0 0.0
        %588 = vmatprep.subr.mxu0 0.0
        %589 = vmatpush2.msra.mxu0 0.0
        %590 = vmatprep.subr.mxu0 0.0
        %591 = vmatpush2.msra.mxu0 0.0
        %592 = vmatprep.subr.mxu0 0.0
        %593 = vmatpush2.msra.mxu0 0.0
        %594 = vmatprep.subr.mxu0 0.0
        %595 = vmatpush2.msra.mxu0 0.0
        %596 = vmatprep.subr.mxu0 0.0
        %597 = vmatpush2.msra.mxu0 0.0
        %598 = vmatprep.mubr.f32.mxu0 0.0
        %599 = vmatmul.mubr.f32.gmra.mxu0 %v532
        %v600 = vpop.f32.mrf.mxu0
        %v601 = vadd.f32 0.0, %v600
        %v602 = vpop.f32.mrf.mxu0
        %603 = vdwg.mxu0
        %v604 = vadd.f32 %v526, %v601
        %vm605 = vcmp.lt.s32.totalorder %v368, 96
        %v606 = vxor.u32 %v604, 2147483648
        %v607 = vmul.f32 %v606, 1.442695
        %v608 = vpow.pop %v607
        %v609 = vadd.f32 %v608, 1.0
        %v610 = vrcp.pop %v609
        %v611 = vmul.f32 1.0, %v610
        %v612 = vtanh.pop %v604
        %v613 = vsel %vm605, %v611, %v612
        %v614 = vmul.f32 %v613, 0.0
        %616 = vrot.lane.b32.xlu0 %v613, 32
        %v617 = vpop.permute.xlu0 %616
        %v619 = vmul.f32 %v613, %v617
        %621 = vrot.lane.b32.xlu0 %v619, 32
        %v622 = vpop.permute.xlu0 %621
        %v624 = vadd.f32 %v614, %v622
        %v625 = vtanh.pop %v624
        %627 = vrot.lane.b32.xlu0 %v625, 32
        %v628 = vpop.permute.xlu0 %627
        %v630 = vmul.f32 %v613, %v628
        %632 = vrot.lane.b32.xlu0 %v630, 64
        %v633 = vpop.permute.xlu0 %632
        %635 = vst.msk [vmem:[#allocation3] sm:$0xff] %vm388, %v633
        %s636 = scalar_lea.vmem [#allocation2], 8
        %v637 = vld [vmem:[%s636] sm:$0xff]
        %v638 = vld [vmem:[%s2] sm:$0xff]
        %v639 = vld [vmem:[%s2 + $0x8] sm:$0xff]
        %v640 = vld [vmem:[%s2 + $0x10] sm:$0xff]
        %v641 = vld [vmem:[%s2 + $0x18] sm:$0xff]
        %v642 = vsel %vm388, %v633, 0
        %644 = vmatprep.subr.mxu0 0.0
        %645 = vmatpush1.msra.mxu0 0.0
        %646 = vmatprep.subr.mxu0 0.0
        %647 = vmatpush1.msra.mxu0 0.0
        %648 = vmatprep.subr.mxu0 0.0
        %649 = vmatpush1.msra.mxu0 0.0
        %650 = vmatprep.subr.mxu0 0.0
        %651 = vmatpush1.msra.mxu0 0.0
        %652 = vmatprep.subr.mxu0 0.0
        %653 = vmatpush1.msra.mxu0 0.0
        %654 = vmatprep.subr.mxu0 0.0
        %655 = vmatpush1.msra.mxu0 0.0
        %656 = vmatprep.subr.mxu0 0.0
        %657 = vmatpush1.msra.mxu0 0.0
        %658 = vmatprep.subr.mxu0 0.0
        %659 = vmatpush1.msra.mxu0 0.0
        %660 = vmatprep.subr.mxu0 0.0
        %661 = vmatpush1.msra.mxu0 0.0
        %662 = vmatprep.subr.mxu0 0.0
        %663 = vmatpush1.msra.mxu0 0.0
        %664 = vmatprep.subr.mxu0 0.0
        %665 = vmatpush1.msra.mxu0 0.0
        %666 = vmatprep.subr.mxu0 0.0
        %667 = vmatpush1.msra.mxu0 0.0
        %668 = vmatprep.subr.mxu0 0.0
        %669 = vmatpush1.msra.mxu0 %v641
        %670 = vmatprep.subr.mxu0 0.0
        %671 = vmatpush1.msra.mxu0 %v640
        %672 = vmatprep.subr.mxu0 0.0
        %673 = vmatpush1.msra.mxu0 %v639
        %674 = vmatprep.subr.mxu0 0.0
        %675 = vmatpush1.msra.mxu0 %v638
        %676 = vmatprep.subr.mxu0 0.0
        %677 = vmatpush2.msra.mxu0 0.0
        %678 = vmatprep.subr.mxu0 0.0
        %679 = vmatpush2.msra.mxu0 0.0
        %680 = vmatprep.subr.mxu0 0.0
        %681 = vmatpush2.msra.mxu0 0.0
        %682 = vmatprep.subr.mxu0 0.0
        %683 = vmatpush2.msra.mxu0 0.0
        %684 = vmatprep.subr.mxu0 0.0
        %685 = vmatpush2.msra.mxu0 0.0
        %686 = vmatprep.subr.mxu0 0.0
        %687 = vmatpush2.msra.mxu0 0.0
        %688 = vmatprep.subr.mxu0 0.0
        %689 = vmatpush2.msra.mxu0 0.0
        %690 = vmatprep.subr.mxu0 0.0
        %691 = vmatpush2.msra.mxu0 0.0
        %692 = vmatprep.subr.mxu0 0.0
        %693 = vmatpush2.msra.mxu0 0.0
        %694 = vmatprep.subr.mxu0 0.0
        %695 = vmatpush2.msra.mxu0 0.0
        %696 = vmatprep.subr.mxu0 0.0
        %697 = vmatpush2.msra.mxu0 0.0
        %698 = vmatprep.subr.mxu0 0.0
        %699 = vmatpush2.msra.mxu0 0.0
        %700 = vmatprep.subr.mxu0 0.0
        %701 = vmatpush2.msra.mxu0 0.0
        %702 = vmatprep.subr.mxu0 0.0
        %703 = vmatpush2.msra.mxu0 0.0
        %704 = vmatprep.subr.mxu0 0.0
        %705 = vmatpush2.msra.mxu0 0.0
        %706 = vmatprep.subr.mxu0 0.0
        %707 = vmatpush2.msra.mxu0 0.0
        %708 = vmatprep.mubr.f32.mxu0 0.0
        %709 = vmatmul.mubr.f32.gmra.mxu0 %v642
        %v710 = vpop.f32.mrf.mxu0
        %v711 = vadd.f32 0.0, %v710
        %v712 = vpop.f32.mrf.mxu0
        %713 = vdwg.mxu0
        %v714 = vadd.f32 %v637, %v711
        %v715 = vxor.u32 %v714, 2147483648
        %v716 = vmul.f32 %v715, 1.442695
        %v717 = vpow.pop %v716
        %v718 = vadd.f32 %v717, 1.0
        %v719 = vrcp.pop %v718
        %v720 = vmul.f32 1.0, %v719
        %v721 = vtanh.pop %v714
        %v722 = vsel %vm605, %v720, %v721
        %v723 = vmul.f32 %v722, %v624
        %725 = vrot.lane.b32.xlu0 %v722, 32
        %v726 = vpop.permute.xlu0 %725
        %v728 = vmul.f32 %v722, %v726
        %730 = vrot.lane.b32.xlu0 %v728, 32
        %v731 = vpop.permute.xlu0 %730
        %v733 = vadd.f32 %v723, %v731
        %v734 = vtanh.pop %v733
        %736 = vrot.lane.b32.xlu0 %v734, 32
        %v737 = vpop.permute.xlu0 %736
        %v739 = vmul.f32 %v722, %v737
        %741 = vrot.lane.b32.xlu0 %v739, 64
        %v742 = vpop.permute.xlu0 %741
        %s744 = scalar_lea.vmem [#allocation3], 8
        %745 = vst.msk [vmem:[%s744] sm:$0xff] %vm388, %v742
        %s746 = scalar_lea.vmem [#allocation2], 16
        %v747 = vld [vmem:[%s746] sm:$0xff]
        %v748 = vld [vmem:[%s2] sm:$0xff]
        %v749 = vld [vmem:[%s2 + $0x8] sm:$0xff]
        %v750 = vld [vmem:[%s2 + $0x10] sm:$0xff]
        %v751 = vld [vmem:[%s2 + $0x18] sm:$0xff]
        %v752 = vsel %vm388, %v742, 0
        %754 = vmatprep.subr.mxu0 0.0
        %755 = vmatpush1.msra.mxu0 0.0
        %756 = vmatprep.subr.mxu0 0.0
        %757 = vmatpush1.msra.mxu0 0.0
        %758 = vmatprep.subr.mxu0 0.0
        %759 = vmatpush1.msra.mxu0 0.0
        %760 = vmatprep.subr.mxu0 0.0
        %761 = vmatpush1.msra.mxu0 0.0
        %762 = vmatprep.subr.mxu0 0.0
        %763 = vmatpush1.msra.mxu0 0.0
        %764 = vmatprep.subr.mxu0 0.0
        %765 = vmatpush1.msra.mxu0 0.0
        %766 = vmatprep.subr.mxu0 0.0
        %767 = vmatpush1.msra.mxu0 0.0
        %768 = vmatprep.subr.mxu0 0.0
        %769 = vmatpush1.msra.mxu0 0.0
        %770 = vmatprep.subr.mxu0 0.0
        %771 = vmatpush1.msra.mxu0 0.0
        %772 = vmatprep.subr.mxu0 0.0
        %773 = vmatpush1.msra.mxu0 0.0
        %774 = vmatprep.subr.mxu0 0.0
        %775 = vmatpush1.msra.mxu0 0.0
        %776 = vmatprep.subr.mxu0 0.0
        %777 = vmatpush1.msra.mxu0 0.0
        %778 = vmatprep.subr.mxu0 0.0
        %779 = vmatpush1.msra.mxu0 %v751
        %780 = vmatprep.subr.mxu0 0.0
        %781 = vmatpush1.msra.mxu0 %v750
        %782 = vmatprep.subr.mxu0 0.0
        %783 = vmatpush1.msra.mxu0 %v749
        %784 = vmatprep.subr.mxu0 0.0
        %785 = vmatpush1.msra.mxu0 %v748
        %786 = vmatprep.subr.mxu0 0.0
        %787 = vmatpush2.msra.mxu0 0.0
        %788 = vmatprep.subr.mxu0 0.0
        %789 = vmatpush2.msra.mxu0 0.0
        %790 = vmatprep.subr.mxu0 0.0
        %791 = vmatpush2.msra.mxu0 0.0
        %792 = vmatprep.subr.mxu0 0.0
        %793 = vmatpush2.msra.mxu0 0.0
        %794 = vmatprep.subr.mxu0 0.0
        %795 = vmatpush2.msra.mxu0 0.0
        %796 = vmatprep.subr.mxu0 0.0
        %797 = vmatpush2.msra.mxu0 0.0
        %798 = vmatprep.subr.mxu0 0.0
        %799 = vmatpush2.msra.mxu0 0.0
        %800 = vmatprep.subr.mxu0 0.0
        %801 = vmatpush2.msra.mxu0 0.0
        %802 = vmatprep.subr.mxu0 0.0
        %803 = vmatpush2.msra.mxu0 0.0
        %804 = vmatprep.subr.mxu0 0.0
        %805 = vmatpush2.msra.mxu0 0.0
        %806 = vmatprep.subr.mxu0 0.0
        %807 = vmatpush2.msra.mxu0 0.0
        %808 = vmatprep.subr.mxu0 0.0
        %809 = vmatpush2.msra.mxu0 0.0
        %810 = vmatprep.subr.mxu0 0.0
        %811 = vmatpush2.msra.mxu0 0.0
        %812 = vmatprep.subr.mxu0 0.0
        %813 = vmatpush2.msra.mxu0 0.0
        %814 = vmatprep.subr.mxu0 0.0
        %815 = vmatpush2.msra.mxu0 0.0
        %816 = vmatprep.subr.mxu0 0.0
        %817 = vmatpush2.msra.mxu0 0.0
        %818 = vmatprep.mubr.f32.mxu0 0.0
        %819 = vmatmul.mubr.f32.gmra.mxu0 %v752
        %v820 = vpop.f32.mrf.mxu0
        %v821 = vadd.f32 0.0, %v820
        %v822 = vpop.f32.mrf.mxu0
        %823 = vdwg.mxu0
        %v824 = vadd.f32 %v747, %v821
        %v825 = vxor.u32 %v824, 2147483648
        %v826 = vmul.f32 %v825, 1.442695
        %v827 = vpow.pop %v826
        %v828 = vadd.f32 %v827, 1.0
        %v829 = vrcp.pop %v828
        %v830 = vmul.f32 1.0, %v829
        %v831 = vtanh.pop %v824
        %v832 = vsel %vm605, %v830, %v831
        %v833 = vmul.f32 %v832, %v733
        %835 = vrot.lane.b32.xlu0 %v832, 32
        %v836 = vpop.permute.xlu0 %835
        %v838 = vmul.f32 %v832, %v836
        %840 = vrot.lane.b32.xlu0 %v838, 32
        %v841 = vpop.permute.xlu0 %840
        %v843 = vadd.f32 %v833, %v841
        %v844 = vtanh.pop %v843
        %846 = vrot.lane.b32.xlu0 %v844, 32
        %v847 = vpop.permute.xlu0 %846
        %v849 = vmul.f32 %v832, %v847
        %851 = vrot.lane.b32.xlu0 %v849, 64
        %v852 = vpop.permute.xlu0 %851
        %s854 = scalar_lea.vmem [#allocation3], 16
        %855 = vst.msk [vmem:[%s854] sm:$0xff] %vm388, %v852
        %s856 = scalar_lea.vmem [#allocation2], 24
        %v857 = vld [vmem:[%s856] sm:$0xff]
        %v858 = vld [vmem:[%s2] sm:$0xff]
        %v859 = vld [vmem:[%s2 + $0x8] sm:$0xff]
        %v860 = vld [vmem:[%s2 + $0x10] sm:$0xff]
        %v861 = vld [vmem:[%s2 + $0x18] sm:$0xff]
        %v862 = vsel %vm388, %v852, 0
        %864 = vmatprep.subr.mxu0 0.0
        %865 = vmatpush1.msra.mxu0 0.0
        %866 = vmatprep.subr.mxu0 0.0
        %867 = vmatpush1.msra.mxu0 0.0
        %868 = vmatprep.subr.mxu0 0.0
        %869 = vmatpush1.msra.mxu0 0.0
        %870 = vmatprep.subr.mxu0 0.0
        %871 = vmatpush1.msra.mxu0 0.0
        %872 = vmatprep.subr.mxu0 0.0
        %873 = vmatpush1.msra.mxu0 0.0
        %874 = vmatprep.subr.mxu0 0.0
        %875 = vmatpush1.msra.mxu0 0.0
        %876 = vmatprep.subr.mxu0 0.0
        %877 = vmatpush1.msra.mxu0 0.0
        %878 = vmatprep.subr.mxu0 0.0
        %879 = vmatpush1.msra.mxu0 0.0
        %880 = vmatprep.subr.mxu0 0.0
        %881 = vmatpush1.msra.mxu0 0.0
        %882 = vmatprep.subr.mxu0 0.0
        %883 = vmatpush1.msra.mxu0 0.0
        %884 = vmatprep.subr.mxu0 0.0
        %885 = vmatpush1.msra.mxu0 0.0
        %886 = vmatprep.subr.mxu0 0.0
        %887 = vmatpush1.msra.mxu0 0.0
        %888 = vmatprep.subr.mxu0 0.0
        %889 = vmatpush1.msra.mxu0 %v861
        %890 = vmatprep.subr.mxu0 0.0
        %891 = vmatpush1.msra.mxu0 %v860
        %892 = vmatprep.subr.mxu0 0.0
        %893 = vmatpush1.msra.mxu0 %v859
        %894 = vmatprep.subr.mxu0 0.0
        %895 = vmatpush1.msra.mxu0 %v858
        %896 = vmatprep.subr.mxu0 0.0
        %897 = vmatpush2.msra.mxu0 0.0
        %898 = vmatprep.subr.mxu0 0.0
        %899 = vmatpush2.msra.mxu0 0.0
        %900 = vmatprep.subr.mxu0 0.0
        %901 = vmatpush2.msra.mxu0 0.0
        %902 = vmatprep.subr.mxu0 0.0
        %903 = vmatpush2.msra.mxu0 0.0
        %904 = vmatprep.subr.mxu0 0.0
        %905 = vmatpush2.msra.mxu0 0.0
        %906 = vmatprep.subr.mxu0 0.0
        %907 = vmatpush2.msra.mxu0 0.0
        %908 = vmatprep.subr.mxu0 0.0
        %909 = vmatpush2.msra.mxu0 0.0
        %910 = vmatprep.subr.mxu0 0.0
        %911 = vmatpush2.msra.mxu0 0.0
        %912 = vmatprep.subr.mxu0 0.0
        %913 = vmatpush2.msra.mxu0 0.0
        %914 = vmatprep.subr.mxu0 0.0
        %915 = vmatpush2.msra.mxu0 0.0
        %916 = vmatprep.subr.mxu0 0.0
        %917 = vmatpush2.msra.mxu0 0.0
        %918 = vmatprep.subr.mxu0 0.0
        %919 = vmatpush2.msra.mxu0 0.0
        %920 = vmatprep.subr.mxu0 0.0
        %921 = vmatpush2.msra.mxu0 0.0
        %922 = vmatprep.subr.mxu0 0.0
        %923 = vmatpush2.msra.mxu0 0.0
        %924 = vmatprep.subr.mxu0 0.0
        %925 = vmatpush2.msra.mxu0 0.0
        %926 = vmatprep.subr.mxu0 0.0
        %927 = vmatpush2.msra.mxu0 0.0
        %928 = vmatprep.mubr.f32.mxu0 0.0
        %929 = vmatmul.mubr.f32.gmra.mxu0 %v862
        %v930 = vpop.f32.mrf.mxu0
        %v931 = vadd.f32 0.0, %v930
        %v932 = vpop.f32.mrf.mxu0
        %933 = vdwg.mxu0
        %v934 = vadd.f32 %v857, %v931
        %v935 = vxor.u32 %v934, 2147483648
        %v936 = vmul.f32 %v935, 1.442695
        %v937 = vpow.pop %v936
        %v938 = vadd.f32 %v937, 1.0
        %v939 = vrcp.pop %v938
        %v940 = vmul.f32 1.0, %v939
        %v941 = vtanh.pop %v934
        %v942 = vsel %vm605, %v940, %v941
        %v943 = vmul.f32 %v942, %v843
        %945 = vrot.lane.b32.xlu0 %v942, 32
        %v946 = vpop.permute.xlu0 %945
        %v948 = vmul.f32 %v942, %v946
        %950 = vrot.lane.b32.xlu0 %v948, 32
        %v951 = vpop.permute.xlu0 %950
        %v953 = vadd.f32 %v943, %v951
        %v954 = vtanh.pop %v953
        %956 = vrot.lane.b32.xlu0 %v954, 32
        %v957 = vpop.permute.xlu0 %956
        %v959 = vmul.f32 %v942, %v957
        %961 = vrot.lane.b32.xlu0 %v959, 64
        %v962 = vpop.permute.xlu0 %961
        %s964 = scalar_lea.vmem [#allocation3], 24
        %965 = vst.msk [vmem:[%s964] sm:$0xff] %vm388, %v962
        %s966 = scalar_lea.vmem [#allocation2], 32
        %v967 = vld [vmem:[%s966] sm:$0xff]
        %v968 = vld [vmem:[%s2] sm:$0xff]
        %v969 = vld [vmem:[%s2 + $0x8] sm:$0xff]
        %v970 = vld [vmem:[%s2 + $0x10] sm:$0xff]
        %v971 = vld [vmem:[%s2 + $0x18] sm:$0xff]
        %v972 = vsel %vm388, %v962, 0
        %974 = vmatprep.subr.mxu0 0.0
        %975 = vmatpush1.msra.mxu0 0.0
        %976 = vmatprep.subr.mxu0 0.0
        %977 = vmatpush1.msra.mxu0 0.0
        %978 = vmatprep.subr.mxu0 0.0
        %979 = vmatpush1.msra.mxu0 0.0
        %980 = vmatprep.subr.mxu0 0.0
        %981 = vmatpush1.msra.mxu0 0.0
        %982 = vmatprep.subr.mxu0 0.0
        %983 = vmatpush1.msra.mxu0 0.0
        %984 = vmatprep.subr.mxu0 0.0
        %985 = vmatpush1.msra.mxu0 0.0
        %986 = vmatprep.subr.mxu0 0.0
        %987 = vmatpush1.msra.mxu0 0.0
        %988 = vmatprep.subr.mxu0 0.0
        %989 = vmatpush1.msra.mxu0 0.0
        %990 = vmatprep.subr.mxu0 0.0
        %991 = vmatpush1.msra.mxu0 0.0
        %992 = vmatprep.subr.mxu0 0.0
        %993 = vmatpush1.msra.mxu0 0.0
        %994 = vmatprep.subr.mxu0 0.0
        %995 = vmatpush1.msra.mxu0 0.0
        %996 = vmatprep.subr.mxu0 0.0
        %997 = vmatpush1.msra.mxu0 0.0
        %998 = vmatprep.subr.mxu0 0.0
        %999 = vmatpush1.msra.mxu0 %v971
        %1000 = vmatprep.subr.mxu0 0.0
        %1001 = vmatpush1.msra.mxu0 %v970
        %1002 = vmatprep.subr.mxu0 0.0
        %1003 = vmatpush1.msra.mxu0 %v969
        %1004 = vmatprep.subr.mxu0 0.0
        %1005 = vmatpush1.msra.mxu0 %v968
        %1006 = vmatprep.subr.mxu0 0.0
        %1007 = vmatpush2.msra.mxu0 0.0
        %1008 = vmatprep.subr.mxu0 0.0
        %1009 = vmatpush2.msra.mxu0 0.0
        %1010 = vmatprep.subr.mxu0 0.0
        %1011 = vmatpush2.msra.mxu0 0.0
        %1012 = vmatprep.subr.mxu0 0.0
        %1013 = vmatpush2.msra.mxu0 0.0
        %1014 = vmatprep.subr.mxu0 0.0
        %1015 = vmatpush2.msra.mxu0 0.0
        %1016 = vmatprep.subr.mxu0 0.0
        %1017 = vmatpush2.msra.mxu0 0.0
        %1018 = vmatprep.subr.mxu0 0.0
        %1019 = vmatpush2.msra.mxu0 0.0
        %1020 = vmatprep.subr.mxu0 0.0
        %1021 = vmatpush2.msra.mxu0 0.0
        %1022 = vmatprep.subr.mxu0 0.0
        %1023 = vmatpush2.msra.mxu0 0.0
        %1024 = vmatprep.subr.mxu0 0.0
        %1025 = vmatpush2.msra.mxu0 0.0
        %1026 = vmatprep.subr.mxu0 0.0
        %1027 = vmatpush2.msra.mxu0 0.0
        %1028 = vmatprep.subr.mxu0 0.0
        %1029 = vmatpush2.msra.mxu0 0.0
        %1030 = vmatprep.subr.mxu0 0.0
        %1031 = vmatpush2.msra.mxu0 0.0
        %1032 = vmatprep.subr.mxu0 0.0
        %1033 = vmatpush2.msra.mxu0 0.0
        %1034 = vmatprep.subr.mxu0 0.0
        %1035 = vmatpush2.msra.mxu0 0.0
        %1036 = vmatprep.subr.mxu0 0.0
        %1037 = vmatpush2.msra.mxu0 0.0
        %1038 = vmatprep.mubr.f32.mxu0 0.0
        %1039 = vmatmul.mubr.f32.gmra.mxu0 %v972
        %v1040 = vpop.f32.mrf.mxu0
        %v1041 = vadd.f32 0.0, %v1040
        %v1042 = vpop.f32.mrf.mxu0
        %1043 = vdwg.mxu0
        %v1044 = vadd.f32 %v967, %v1041
        %v1045 = vxor.u32 %v1044, 2147483648
        %v1046 = vmul.f32 %v1045, 1.442695
        %v1047 = vpow.pop %v1046
        %v1048 = vadd.f32 %v1047, 1.0
        %v1049 = vrcp.pop %v1048
        %v1050 = vmul.f32 1.0, %v1049
        %v1051 = vtanh.pop %v1044
        %v1052 = vsel %vm605, %v1050, %v1051
        %v1053 = vmul.f32 %v1052, %v953
        %1055 = vrot.lane.b32.xlu0 %v1052, 32
        %v1056 = vpop.permute.xlu0 %1055
        %v1058 = vmul.f32 %v1052, %v1056
        %1060 = vrot.lane.b32.xlu0 %v1058, 32
        %v1061 = vpop.permute.xlu0 %1060
        %v1063 = vadd.f32 %v1053, %v1061
        %v1064 = vtanh.pop %v1063
        %1066 = vrot.lane.b32.xlu0 %v1064, 32
        %v1067 = vpop.permute.xlu0 %1066
        %v1069 = vmul.f32 %v1052, %v1067
        %1071 = vrot.lane.b32.xlu0 %v1069, 64
        %v1072 = vpop.permute.xlu0 %1071
        %s1074 = scalar_lea.vmem [#allocation3], 32
        %1075 = vst.msk [vmem:[%s1074] sm:$0xff] %vm388, %v1072
        %s1076 = scalar_lea.vmem [#allocation2], 40
        %v1077 = vld [vmem:[%s1076] sm:$0xff]
        %v1078 = vld [vmem:[%s2] sm:$0xff]
        %v1079 = vld [vmem:[%s2 + $0x8] sm:$0xff]
        %v1080 = vld [vmem:[%s2 + $0x10] sm:$0xff]
        %v1081 = vld [vmem:[%s2 + $0x18] sm:$0xff]
        %v1082 = vsel %vm388, %v1072, 0
        %1084 = vmatprep.subr.mxu0 0.0
        %1085 = vmatpush1.msra.mxu0 0.0
        %1086 = vmatprep.subr.mxu0 0.0
        %1087 = vmatpush1.msra.mxu0 0.0
        %1088 = vmatprep.subr.mxu0 0.0
        %1089 = vmatpush1.msra.mxu0 0.0
        %1090 = vmatprep.subr.mxu0 0.0
        %1091 = vmatpush1.msra.mxu0 0.0
        %1092 = vmatprep.subr.mxu0 0.0
        %1093 = vmatpush1.msra.mxu0 0.0
        %1094 = vmatprep.subr.mxu0 0.0
        %1095 = vmatpush1.msra.mxu0 0.0
        %1096 = vmatprep.subr.mxu0 0.0
        %1097 = vmatpush1.msra.mxu0 0.0
        %1098 = vmatprep.subr.mxu0 0.0
        %1099 = vmatpush1.msra.mxu0 0.0
        %1100 = vmatprep.subr.mxu0 0.0
        %1101 = vmatpush1.msra.mxu0 0.0
        %1102 = vmatprep.subr.mxu0 0.0
        %1103 = vmatpush1.msra.mxu0 0.0
        %1104 = vmatprep.subr.mxu0 0.0
        %1105 = vmatpush1.msra.mxu0 0.0
        %1106 = vmatprep.subr.mxu0 0.0
        %1107 = vmatpush1.msra.mxu0 0.0
        %1108 = vmatprep.subr.mxu0 0.0
        %1109 = vmatpush1.msra.mxu0 %v1081
        %1110 = vmatprep.subr.mxu0 0.0
        %1111 = vmatpush1.msra.mxu0 %v1080
        %1112 = vmatprep.subr.mxu0 0.0
        %1113 = vmatpush1.msra.mxu0 %v1079
        %1114 = vmatprep.subr.mxu0 0.0
        %1115 = vmatpush1.msra.mxu0 %v1078
        %1116 = vmatprep.subr.mxu0 0.0
        %1117 = vmatpush2.msra.mxu0 0.0
        %1118 = vmatprep.subr.mxu0 0.0
        %1119 = vmatpush2.msra.mxu0 0.0
        %1120 = vmatprep.subr.mxu0 0.0
        %1121 = vmatpush2.msra.mxu0 0.0
        %1122 = vmatprep.subr.mxu0 0.0
        %1123 = vmatpush2.msra.mxu0 0.0
        %1124 = vmatprep.subr.mxu0 0.0
        %1125 = vmatpush2.msra.mxu0 0.0
        %1126 = vmatprep.subr.mxu0 0.0
        %1127 = vmatpush2.msra.mxu0 0.0
        %1128 = vmatprep.subr.mxu0 0.0
        %1129 = vmatpush2.msra.mxu0 0.0
        %1130 = vmatprep.subr.mxu0 0.0
        %1131 = vmatpush2.msra.mxu0 0.0
        %1132 = vmatprep.subr.mxu0 0.0
        %1133 = vmatpush2.msra.mxu0 0.0
        %1134 = vmatprep.subr.mxu0 0.0
        %1135 = vmatpush2.msra.mxu0 0.0
        %1136 = vmatprep.subr.mxu0 0.0
        %1137 = vmatpush2.msra.mxu0 0.0
        %1138 = vmatprep.subr.mxu0 0.0
        %1139 = vmatpush2.msra.mxu0 0.0
        %1140 = vmatprep.subr.mxu0 0.0
        %1141 = vmatpush2.msra.mxu0 0.0
        %1142 = vmatprep.subr.mxu0 0.0
        %1143 = vmatpush2.msra.mxu0 0.0
        %1144 = vmatprep.subr.mxu0 0.0
        %1145 = vmatpush2.msra.mxu0 0.0
        %1146 = vmatprep.subr.mxu0 0.0
        %1147 = vmatpush2.msra.mxu0 0.0
        %1148 = vmatprep.mubr.f32.mxu0 0.0
        %1149 = vmatmul.mubr.f32.gmra.mxu0 %v1082
        %v1150 = vpop.f32.mrf.mxu0
        %v1151 = vadd.f32 0.0, %v1150
        %v1152 = vpop.f32.mrf.mxu0
        %1153 = vdwg.mxu0
        %v1154 = vadd.f32 %v1077, %v1151
        %v1155 = vxor.u32 %v1154, 2147483648
        %v1156 = vmul.f32 %v1155, 1.442695
        %v1157 = vpow.pop %v1156
        %v1158 = vadd.f32 %v1157, 1.0
        %v1159 = vrcp.pop %v1158
        %v1160 = vmul.f32 1.0, %v1159
        %v1161 = vtanh.pop %v1154
        %v1162 = vsel %vm605, %v1160, %v1161
        %v1163 = vmul.f32 %v1162, %v1063
        %1165 = vrot.lane.b32.xlu0 %v1162, 32
        %v1166 = vpop.permute.xlu0 %1165
        %v1168 = vmul.f32 %v1162, %v1166
        %1170 = vrot.lane.b32.xlu0 %v1168, 32
        %v1171 = vpop.permute.xlu0 %1170
        %v1173 = vadd.f32 %v1163, %v1171
        %v1174 = vtanh.pop %v1173
        %1176 = vrot.lane.b32.xlu0 %v1174, 32
        %v1177 = vpop.permute.xlu0 %1176
        %v1179 = vmul.f32 %v1162, %v1177
        %1181 = vrot.lane.b32.xlu0 %v1179, 64
        %v1182 = vpop.permute.xlu0 %1181
        %s1184 = scalar_lea.vmem [#allocation3], 40
        %1185 = vst.msk [vmem:[%s1184] sm:$0xff] %vm388, %v1182
        %s1186 = scalar_lea.vmem [#allocation2], 48
        %v1187 = vld [vmem:[%s1186] sm:$0xff]
        %v1188 = vld [vmem:[%s2] sm:$0xff]
        %v1189 = vld [vmem:[%s2 + $0x8] sm:$0xff]
        %v1190 = vld [vmem:[%s2 + $0x10] sm:$0xff]
        %v1191 = vld [vmem:[%s2 + $0x18] sm:$0xff]
        %v1192 = vsel %vm388, %v1182, 0
        %1194 = vmatprep.subr.mxu0 0.0
        %1195 = vmatpush1.msra.mxu0 0.0
        %1196 = vmatprep.subr.mxu0 0.0
        %1197 = vmatpush1.msra.mxu0 0.0
        %1198 = vmatprep.subr.mxu0 0.0
        %1199 = vmatpush1.msra.mxu0 0.0
        %1200 = vmatprep.subr.mxu0 0.0
        %1201 = vmatpush1.msra.mxu0 0.0
        %1202 = vmatprep.subr.mxu0 0.0
        %1203 = vmatpush1.msra.mxu0 0.0
        %1204 = vmatprep.subr.mxu0 0.0
        %1205 = vmatpush1.msra.mxu0 0.0
        %1206 = vmatprep.subr.mxu0 0.0
        %1207 = vmatpush1.msra.mxu0 0.0
        %1208 = vmatprep.subr.mxu0 0.0
        %1209 = vmatpush1.msra.mxu0 0.0
        %1210 = vmatprep.subr.mxu0 0.0
        %1211 = vmatpush1.msra.mxu0 0.0
        %1212 = vmatprep.subr.mxu0 0.0
        %1213 = vmatpush1.msra.mxu0 0.0
        %1214 = vmatprep.subr.mxu0 0.0
        %1215 = vmatpush1.msra.mxu0 0.0
        %1216 = vmatprep.subr.mxu0 0.0
        %1217 = vmatpush1.msra.mxu0 0.0
        %1218 = vmatprep.subr.mxu0 0.0
        %1219 = vmatpush1.msra.mxu0 %v1191
        %1220 = vmatprep.subr.mxu0 0.0
        %1221 = vmatpush1.msra.mxu0 %v1190
        %1222 = vmatprep.subr.mxu0 0.0
        %1223 = vmatpush1.msra.mxu0 %v1189
        %1224 = vmatprep.subr.mxu0 0.0
        %1225 = vmatpush1.msra.mxu0 %v1188
        %1226 = vmatprep.subr.mxu0 0.0
        %1227 = vmatpush2.msra.mxu0 0.0
        %1228 = vmatprep.subr.mxu0 0.0
        %1229 = vmatpush2.msra.mxu0 0.0
        %1230 = vmatprep.subr.mxu0 0.0
        %1231 = vmatpush2.msra.mxu0 0.0
        %1232 = vmatprep.subr.mxu0 0.0
        %1233 = vmatpush2.msra.mxu0 0.0
        %1234 = vmatprep.subr.mxu0 0.0
        %1235 = vmatpush2.msra.mxu0 0.0
        %1236 = vmatprep.subr.mxu0 0.0
        %1237 = vmatpush2.msra.mxu0 0.0
        %1238 = vmatprep.subr.mxu0 0.0
        %1239 = vmatpush2.msra.mxu0 0.0
        %1240 = vmatprep.subr.mxu0 0.0
        %1241 = vmatpush2.msra.mxu0 0.0
        %1242 = vmatprep.subr.mxu0 0.0
        %1243 = vmatpush2.msra.mxu0 0.0
        %1244 = vmatprep.subr.mxu0 0.0
        %1245 = vmatpush2.msra.mxu0 0.0
        %1246 = vmatprep.subr.mxu0 0.0
        %1247 = vmatpush2.msra.mxu0 0.0
        %1248 = vmatprep.subr.mxu0 0.0
        %1249 = vmatpush2.msra.mxu0 0.0
        %1250 = vmatprep.subr.mxu0 0.0
        %1251 = vmatpush2.msra.mxu0 0.0
        %1252 = vmatprep.subr.mxu0 0.0
        %1253 = vmatpush2.msra.mxu0 0.0
        %1254 = vmatprep.subr.mxu0 0.0
        %1255 = vmatpush2.msra.mxu0 0.0
        %1256 = vmatprep.subr.mxu0 0.0
        %1257 = vmatpush2.msra.mxu0 0.0
        %1258 = vmatprep.mubr.f32.mxu0 0.0
        %1259 = vmatmul.mubr.f32.gmra.mxu0 %v1192
        %v1260 = vpop.f32.mrf.mxu0
        %v1261 = vadd.f32 0.0, %v1260
        %v1262 = vpop.f32.mrf.mxu0
        %1263 = vdwg.mxu0
        %v1264 = vadd.f32 %v1187, %v1261
        %v1265 = vxor.u32 %v1264, 2147483648
        %v1266 = vmul.f32 %v1265, 1.442695
        %v1267 = vpow.pop %v1266
        %v1268 = vadd.f32 %v1267, 1.0
        %v1269 = vrcp.pop %v1268
        %v1270 = vmul.f32 1.0, %v1269
        %v1271 = vtanh.pop %v1264
        %v1272 = vsel %vm605, %v1270, %v1271
        %v1273 = vmul.f32 %v1272, %v1173
        %1275 = vrot.lane.b32.xlu0 %v1272, 32
        %v1276 = vpop.permute.xlu0 %1275
        %v1278 = vmul.f32 %v1272, %v1276
        %1280 = vrot.lane.b32.xlu0 %v1278, 32
        %v1281 = vpop.permute.xlu0 %1280
        %v1283 = vadd.f32 %v1273, %v1281
        %v1284 = vtanh.pop %v1283
        %1286 = vrot.lane.b32.xlu0 %v1284, 32
        %v1287 = vpop.permute.xlu0 %1286
        %v1289 = vmul.f32 %v1272, %v1287
        %1291 = vrot.lane.b32.xlu0 %v1289, 64
        %v1292 = vpop.permute.xlu0 %1291
        %s1294 = scalar_lea.vmem [#allocation3], 48
        %1295 = vst.msk [vmem:[%s1294] sm:$0xff] %vm388, %v1292
        %s1296 = scalar_lea.vmem [#allocation2], 56
        %v1297 = vld [vmem:[%s1296] sm:$0xff]
        %v1298 = vld [vmem:[%s2] sm:$0xff]
        %v1299 = vld [vmem:[%s2 + $0x8] sm:$0xff]
        %v1300 = vld [vmem:[%s2 + $0x10] sm:$0xff]
        %v1301 = vld [vmem:[%s2 + $0x18] sm:$0xff]
        %v1302 = vsel %vm388, %v1292, 0
        %1304 = vmatprep.subr.mxu0 0.0
        %1305 = vmatpush1.msra.mxu0 0.0
        %1306 = vmatprep.subr.mxu0 0.0
        %1307 = vmatpush1.msra.mxu0 0.0
        %1308 = vmatprep.subr.mxu0 0.0
        %1309 = vmatpush1.msra.mxu0 0.0
        %1310 = vmatprep.subr.mxu0 0.0
        %1311 = vmatpush1.msra.mxu0 0.0
        %1312 = vmatprep.subr.mxu0 0.0
        %1313 = vmatpush1.msra.mxu0 0.0
        %1314 = vmatprep.subr.mxu0 0.0
        %1315 = vmatpush1.msra.mxu0 0.0
        %1316 = vmatprep.subr.mxu0 0.0
        %1317 = vmatpush1.msra.mxu0 0.0
        %1318 = vmatprep.subr.mxu0 0.0
        %1319 = vmatpush1.msra.mxu0 0.0
        %1320 = vmatprep.subr.mxu0 0.0
        %1321 = vmatpush1.msra.mxu0 0.0
        %1322 = vmatprep.subr.mxu0 0.0
        %1323 = vmatpush1.msra.mxu0 0.0
        %1324 = vmatprep.subr.mxu0 0.0
        %1325 = vmatpush1.msra.mxu0 0.0
        %1326 = vmatprep.subr.mxu0 0.0
        %1327 = vmatpush1.msra.mxu0 0.0
        %1328 = vmatprep.subr.mxu0 0.0
        %1329 = vmatpush1.msra.mxu0 %v1301
        %1330 = vmatprep.subr.mxu0 0.0
        %1331 = vmatpush1.msra.mxu0 %v1300
        %1332 = vmatprep.subr.mxu0 0.0
        %1333 = vmatpush1.msra.mxu0 %v1299
        %1334 = vmatprep.subr.mxu0 0.0
        %1335 = vmatpush1.msra.mxu0 %v1298
        %1336 = vmatprep.subr.mxu0 0.0
        %1337 = vmatpush2.msra.mxu0 0.0
        %1338 = vmatprep.subr.mxu0 0.0
        %1339 = vmatpush2.msra.mxu0 0.0
        %1340 = vmatprep.subr.mxu0 0.0
        %1341 = vmatpush2.msra.mxu0 0.0
        %1342 = vmatprep.subr.mxu0 0.0
        %1343 = vmatpush2.msra.mxu0 0.0
        %1344 = vmatprep.subr.mxu0 0.0
        %1345 = vmatpush2.msra.mxu0 0.0
        %1346 = vmatprep.subr.mxu0 0.0
        %1347 = vmatpush2.msra.mxu0 0.0
        %1348 = vmatprep.subr.mxu0 0.0
        %1349 = vmatpush2.msra.mxu0 0.0
        %1350 = vmatprep.subr.mxu0 0.0
        %1351 = vmatpush2.msra.mxu0 0.0
        %1352 = vmatprep.subr.mxu0 0.0
        %1353 = vmatpush2.msra.mxu0 0.0
        %1354 = vmatprep.subr.mxu0 0.0
        %1355 = vmatpush2.msra.mxu0 0.0
        %1356 = vmatprep.subr.mxu0 0.0
        %1357 = vmatpush2.msra.mxu0 0.0
        %1358 = vmatprep.subr.mxu0 0.0
        %1359 = vmatpush2.msra.mxu0 0.0
        %1360 = vmatprep.subr.mxu0 0.0
        %1361 = vmatpush2.msra.mxu0 0.0
        %1362 = vmatprep.subr.mxu0 0.0
        %1363 = vmatpush2.msra.mxu0 0.0
        %1364 = vmatprep.subr.mxu0 0.0
        %1365 = vmatpush2.msra.mxu0 0.0
        %1366 = vmatprep.subr.mxu0 0.0
        %1367 = vmatpush2.msra.mxu0 0.0
        %1368 = vmatprep.mubr.f32.mxu0 0.0
        %1369 = vmatmul.mubr.f32.gmra.mxu0 %v1302
        %v1370 = vpop.f32.mrf.mxu0
        %v1371 = vadd.f32 0.0, %v1370
        %v1372 = vpop.f32.mrf.mxu0
        %1373 = vdwg.mxu0
        %v1374 = vadd.f32 %v1297, %v1371
        %v1375 = vxor.u32 %v1374, 2147483648
        %v1376 = vmul.f32 %v1375, 1.442695
        %v1377 = vpow.pop %v1376
        %v1378 = vadd.f32 %v1377, 1.0
        %v1379 = vrcp.pop %v1378
        %v1380 = vmul.f32 1.0, %v1379
        %v1381 = vtanh.pop %v1374
        %v1382 = vsel %vm605, %v1380, %v1381
        %v1383 = vmul.f32 %v1382, %v1283
        %1385 = vrot.lane.b32.xlu0 %v1382, 32
        %v1386 = vpop.permute.xlu0 %1385
        %v1388 = vmul.f32 %v1382, %v1386
        %1390 = vrot.lane.b32.xlu0 %v1388, 32
        %v1391 = vpop.permute.xlu0 %1390
        %v1393 = vadd.f32 %v1383, %v1391
        %v1394 = vtanh.pop %v1393
        %1396 = vrot.lane.b32.xlu0 %v1394, 32
        %v1397 = vpop.permute.xlu0 %1396
        %v1399 = vmul.f32 %v1382, %v1397
        %1401 = vrot.lane.b32.xlu0 %v1399, 64
        %v1402 = vpop.permute.xlu0 %1401
        %s1404 = scalar_lea.vmem [#allocation3], 56
        %1405 = vst.msk [vmem:[%s1404] sm:$0xff] %vm388, %v1402
        %v1406 = vld [vmem:[#allocation3] sm:$0xff]
        %v1407 = vld [vmem:[#allocation3 + $0x8] sm:$0xff]
        %v1408 = vld [vmem:[#allocation3 + $0x10] sm:$0xff]
        %v1409 = vld [vmem:[#allocation3 + $0x18] sm:$0xff]
        %v1410 = vld [vmem:[#allocation3 + $0x20] sm:$0xff]
        %v1411 = vld [vmem:[#allocation3 + $0x28] sm:$0xff]
        %v1412 = vld [vmem:[#allocation3 + $0x30] sm:$0xff]
        %v1413 = vld [vmem:[#allocation3 + $0x38] sm:$0xff]
        %v1414 = vld [vmem:[%s6] sm:$0xff]
        %v1415 = vld [vmem:[%s6 + $0x8] sm:$0xff]
        %v1416 = vld [vmem:[%s6 + $0x10] sm:$0xff]
        %v1417 = vld [vmem:[%s6 + $0x18] sm:$0xff]
        %v1419 = vsel %vm388, %v1406, 0
        %v1422 = vsel %vm388, %v1407, 0
        %v1425 = vsel %vm388, %v1408, 0
        %v1428 = vsel %vm388, %v1409, 0
        %v1431 = vsel %vm388, %v1410, 0
        %v1434 = vsel %vm388, %v1411, 0
        %v1437 = vsel %vm388, %v1412, 0
        %v1440 = vsel %vm388, %v1413, 0
        %1442 = vmatprep.subr.mxu0 0.0
        %1443 = vmatpush1.msra.mxu0 0.0
        %1444 = vmatprep.subr.mxu0 0.0
        %1445 = vmatpush1.msra.mxu0 0.0
        %1446 = vmatprep.subr.mxu0 0.0
        %1447 = vmatpush1.msra.mxu0 0.0
        %1448 = vmatprep.subr.mxu0 0.0
        %1449 = vmatpush1.msra.mxu0 0.0
        %1450 = vmatprep.subr.mxu0 0.0
        %1451 = vmatpush1.msra.mxu0 0.0
        %1452 = vmatprep.subr.mxu0 0.0
        %1453 = vmatpush1.msra.mxu0 0.0
        %1454 = vmatprep.subr.mxu0 0.0
        %1455 = vmatpush1.msra.mxu0 0.0
        %1456 = vmatprep.subr.mxu0 0.0
        %1457 = vmatpush1.msra.mxu0 0.0
        %1458 = vmatprep.subr.mxu0 0.0
        %1459 = vmatpush1.msra.mxu0 0.0
        %1460 = vmatprep.subr.mxu0 0.0
        %1461 = vmatpush1.msra.mxu0 0.0
        %1462 = vmatprep.subr.mxu0 0.0
        %1463 = vmatpush1.msra.mxu0 0.0
        %1464 = vmatprep.subr.mxu0 0.0
        %1465 = vmatpush1.msra.mxu0 0.0
        %1466 = vmatprep.subr.mxu0 0.0
        %1467 = vmatpush1.msra.mxu0 %v1417
        %1468 = vmatprep.subr.mxu0 0.0
        %1469 = vmatpush1.msra.mxu0 %v1416
        %1470 = vmatprep.subr.mxu0 0.0
        %1471 = vmatpush1.msra.mxu0 %v1415
        %1472 = vmatprep.subr.mxu0 0.0
        %1473 = vmatpush1.msra.mxu0 %v1414
        %1474 = vmatprep.subr.mxu0 0.0
        %1475 = vmatpush2.msra.mxu0 0.0
        %1476 = vmatprep.subr.mxu0 0.0
        %1477 = vmatpush2.msra.mxu0 0.0
        %1478 = vmatprep.subr.mxu0 0.0
        %1479 = vmatpush2.msra.mxu0 0.0
        %1480 = vmatprep.subr.mxu0 0.0
        %1481 = vmatpush2.msra.mxu0 0.0
        %1482 = vmatprep.subr.mxu0 0.0
        %1483 = vmatpush2.msra.mxu0 0.0
        %1484 = vmatprep.subr.mxu0 0.0
        %1485 = vmatpush2.msra.mxu0 0.0
        %1486 = vmatprep.subr.mxu0 0.0
        %1487 = vmatpush2.msra.mxu0 0.0
        %1488 = vmatprep.subr.mxu0 0.0
        %1489 = vmatpush2.msra.mxu0 0.0
        %1490 = vmatprep.subr.mxu0 0.0
        %1491 = vmatpush2.msra.mxu0 0.0
        %1492 = vmatprep.subr.mxu0 0.0
        %1493 = vmatpush2.msra.mxu0 0.0
        %1494 = vmatprep.subr.mxu0 0.0
        %1495 = vmatpush2.msra.mxu0 0.0
        %1496 = vmatprep.subr.mxu0 0.0
        %1497 = vmatpush2.msra.mxu0 0.0
        %1498 = vmatprep.subr.mxu0 0.0
        %1499 = vmatpush2.msra.mxu0 0.0
        %1500 = vmatprep.subr.mxu0 0.0
        %1501 = vmatpush2.msra.mxu0 0.0
        %1502 = vmatprep.subr.mxu0 0.0
        %1503 = vmatpush2.msra.mxu0 0.0
        %1504 = vmatprep.subr.mxu0 0.0
        %1505 = vmatpush2.msra.mxu0 0.0
        %1506 = vmatprep.mubr.f32.mxu0 0.0
        %1507 = vmatmul.mubr.f32.gmra.mxu0 %v1419
        %v1508 = vpop.f32.mrf.mxu0
        %v1509 = vadd.f32 0.0, %v1508
        %v1510 = vpop.f32.mrf.mxu0
        %1511 = vmatprep.mubr.f32.mxu0 0.0
        %1512 = vmatmul.mubr.f32.gmra.mxu0 %v1422
        %v1513 = vpop.f32.mrf.mxu0
        %v1514 = vadd.f32 0.0, %v1513
        %v1515 = vpop.f32.mrf.mxu0
        %1516 = vmatprep.mubr.f32.mxu0 0.0
        %1517 = vmatmul.mubr.f32.gmra.mxu0 %v1425
        %v1518 = vpop.f32.mrf.mxu0
        %v1519 = vadd.f32 0.0, %v1518
        %v1520 = vpop.f32.mrf.mxu0
        %1521 = vmatprep.mubr.f32.mxu0 0.0
        %1522 = vmatmul.mubr.f32.gmra.mxu0 %v1428
        %v1523 = vpop.f32.mrf.mxu0
        %v1524 = vadd.f32 0.0, %v1523
        %v1525 = vpop.f32.mrf.mxu0
        %1526 = vmatprep.mubr.f32.mxu0 0.0
        %1527 = vmatmul.mubr.f32.gmra.mxu0 %v1431
        %v1528 = vpop.f32.mrf.mxu0
        %v1529 = vadd.f32 0.0, %v1528
        %v1530 = vpop.f32.mrf.mxu0
        %1531 = vmatprep.mubr.f32.mxu0 0.0
        %1532 = vmatmul.mubr.f32.gmra.mxu0 %v1434
        %v1533 = vpop.f32.mrf.mxu0
        %v1534 = vadd.f32 0.0, %v1533
        %v1535 = vpop.f32.mrf.mxu0
        %1536 = vmatprep.mubr.f32.mxu0 0.0
        %1537 = vmatmul.mubr.f32.gmra.mxu0 %v1437
        %v1538 = vpop.f32.mrf.mxu0
        %v1539 = vadd.f32 0.0, %v1538
        %v1540 = vpop.f32.mrf.mxu0
        %1541 = vmatprep.mubr.f32.mxu0 0.0
        %1542 = vmatmul.mubr.f32.gmra.mxu0 %v1440
        %v1543 = vpop.f32.mrf.mxu0
        %v1544 = vadd.f32 0.0, %v1543
        %v1545 = vpop.f32.mrf.mxu0
        %1546 = vdwg.mxu0
        %1547 = vst [vmem:[#allocation4] sm:$0xff] %v1509
        %1548 = vst [vmem:[#allocation4 + $0x8] sm:$0xff] %v1514
        %1549 = vst [vmem:[#allocation4 + $0x10] sm:$0xff] %v1519
        %1550 = vst [vmem:[#allocation4 + $0x18] sm:$0xff] %v1524
        %1551 = vst [vmem:[#allocation4 + $0x20] sm:$0xff] %v1529
        %1552 = vst [vmem:[#allocation4 + $0x28] sm:$0xff] %v1534
        %1553 = vst [vmem:[#allocation4 + $0x30] sm:$0xff] %v1539
        %1554 = vst [vmem:[#allocation4 + $0x38] sm:$0xff] %v1544
        %1555 = vst [vmem:[%s366] sm:$0xff] 0.0
        %vm1556 = vcmp.eq.s32.totalorder %v368, 0
        %v1557 = vsel %vm1556, 1, 0
        %v1558 = vcvt.s32.f32 %v1557
        %v1559 = vld [vmem:[%s4] sm:$0xff]
        %v1560 = vld [vmem:[%s4 + $0x8] sm:$0xff]
        %v1561 = vld [vmem:[%s4 + $0x10] sm:$0xff]
        %v1562 = vld [vmem:[%s4 + $0x18] sm:$0xff]
        %v1563 = vld [vmem:[%s4 + $0x20] sm:$0xff]
        %v1564 = vld [vmem:[%s4 + $0x28] sm:$0xff]
        %v1565 = vld [vmem:[%s4 + $0x30] sm:$0xff]
        %v1566 = vld [vmem:[%s4 + $0x38] sm:$0xff]
        %v1567 = vld [vmem:[%s4 + $0x40] sm:$0xff]
        %v1568 = vld [vmem:[%s4 + $0x48] sm:$0xff]
        %v1569 = vld [vmem:[%s4 + $0x50] sm:$0xff]
        %v1570 = vld [vmem:[%s4 + $0x58] sm:$0xff]
        %v1571 = vld [vmem:[%s4 + $0x60] sm:$0xff]
        %v1572 = vld [vmem:[%s4 + $0x68] sm:$0xff]
        %v1573 = vld [vmem:[%s4 + $0x70] sm:$0xff]
        %v1574 = vld [vmem:[%s4 + $0x78] sm:$0xff]
        %v1575 = vld [vmem:[%s4 + $0x80] sm:$0xff]
        %v1576 = vld [vmem:[%s4 + $0x88] sm:$0xff]
        %v1577 = vld [vmem:[%s4 + $0x90] sm:$0xff]
        %v1578 = vld [vmem:[%s4 + $0x98] sm:$0xff]
        %v1579 = vsel %vm388, %v1402, 0
        %1581 = vmatprep.subr.mxu0 0.0
        %1582 = vmatpush1.msra.mxu0 %v1574
        %1583 = vmatprep.subr.mxu0 0.0
        %1584 = vmatpush1.msra.mxu0 %v1573
        %1585 = vmatprep.subr.mxu0 0.0
        %1586 = vmatpush1.msra.mxu0 %v1572
        %1587 = vmatprep.subr.mxu0 0.0
        %1588 = vmatpush1.msra.mxu0 %v1571
        %1589 = vmatprep.subr.mxu0 0.0
        %1590 = vmatpush1.msra.mxu0 %v1570
        %1591 = vmatprep.subr.mxu0 0.0
        %1592 = vmatpush1.msra.mxu0 %v1569
        %1593 = vmatprep.subr.mxu0 0.0
        %1594 = vmatpush1.msra.mxu0 %v1568
        %1595 = vmatprep.subr.mxu0 0.0
        %1596 = vmatpush1.msra.mxu0 %v1567
        %1597 = vmatprep.subr.mxu0 0.0
        %1598 = vmatpush1.msra.mxu0 %v1566
        %1599 = vmatprep.subr.mxu0 0.0
        %1600 = vmatpush1.msra.mxu0 %v1565
        %1601 = vmatprep.subr.mxu0 0.0
        %1602 = vmatpush1.msra.mxu0 %v1564
        %1603 = vmatprep.subr.mxu0 0.0
        %1604 = vmatpush1.msra.mxu0 %v1563
        %1605 = vmatprep.subr.mxu0 0.0
        %1606 = vmatpush1.msra.mxu0 %v1562
        %1607 = vmatprep.subr.mxu0 0.0
        %1608 = vmatpush1.msra.mxu0 %v1561
        %1609 = vmatprep.subr.mxu0 0.0
        %1610 = vmatpush1.msra.mxu0 %v1560
        %1611 = vmatprep.subr.mxu0 0.0
        %1612 = vmatpush1.msra.mxu0 %v1559
        %1613 = vmatprep.subr.mxu0 0.0
        %1614 = vmatpush2.msra.mxu0 0.0
        %1615 = vmatprep.subr.mxu0 0.0
        %1616 = vmatpush2.msra.mxu0 0.0
        %1617 = vmatprep.subr.mxu0 0.0
        %1618 = vmatpush2.msra.mxu0 0.0
        %1619 = vmatprep.subr.mxu0 0.0
        %1620 = vmatpush2.msra.mxu0 0.0
        %1621 = vmatprep.subr.mxu0 0.0
        %1622 = vmatpush2.msra.mxu0 0.0
        %1623 = vmatprep.subr.mxu0 0.0
        %1624 = vmatpush2.msra.mxu0 0.0
        %1625 = vmatprep.subr.mxu0 0.0
        %1626 = vmatpush2.msra.mxu0 0.0
        %1627 = vmatprep.subr.mxu0 0.0
        %1628 = vmatpush2.msra.mxu0 0.0
        %1629 = vmatprep.subr.mxu0 0.0
        %1630 = vmatpush2.msra.mxu0 0.0
        %1631 = vmatprep.subr.mxu0 0.0
        %1632 = vmatpush2.msra.mxu0 0.0
        %1633 = vmatprep.subr.mxu0 0.0
        %1634 = vmatpush2.msra.mxu0 0.0
        %1635 = vmatprep.subr.mxu0 0.0
        %1636 = vmatpush2.msra.mxu0 0.0
        %1637 = vmatprep.subr.mxu0 0.0
        %1638 = vmatpush2.msra.mxu0 %v1578
        %1639 = vmatprep.subr.mxu0 0.0
        %1640 = vmatpush2.msra.mxu0 %v1577
        %1641 = vmatprep.subr.mxu0 0.0
        %1642 = vmatpush2.msra.mxu0 %v1576
        %1643 = vmatprep.subr.mxu0 0.0
        %1644 = vmatpush2.msra.mxu0 %v1575
        %1645 = vmatprep.mubr.f32.mxu0 %v1579
        %1646 = vmatmul.mubr.f32.gmra.mxu0 %v1558
        %v1647 = vpop.f32.mrf.mxu0
        %v1648 = vadd.f32 0.0, %v1647
        %v1649 = vpop.f32.mrf.mxu0
        %1650 = vdwg.mxu0
        %v1651 = vxor.u32 %v1648, 2147483648
        %v1652 = vmul.f32 %v1651, 1.442695
        %v1653 = vpow.pop %v1652
        %v1654 = vadd.f32 %v1653, 1.0
        %v1655 = vrcp.pop %v1654
        %v1656 = vmul.f32 1.0, %v1655
        %v1657 = vtanh.pop %v1648
        %v1658 = vsel %vm605, %v1656, %v1657
        %v1659 = vmul.f32 %v1658, %v1393
        %1661 = vrot.lane.b32.xlu0 %v1658, 32
        %v1662 = vpop.permute.xlu0 %1661
        %v1664 = vmul.f32 %v1658, %v1662
        %1666 = vrot.lane.b32.xlu0 %v1664, 32
        %v1667 = vpop.permute.xlu0 %1666
        %v1669 = vadd.f32 %v1659, %v1667
        %v1670 = vtanh.pop %v1669
        %1672 = vrot.lane.b32.xlu0 %v1670, 32
        %v1673 = vpop.permute.xlu0 %1672
        %v1675 = vmul.f32 %v1658, %v1673
        %v1676 = vld [vmem:[#allocation3] sm:$0xff]
        %v1677 = vld [vmem:[#allocation3 + $0x8] sm:$0xff]
        %v1678 = vld [vmem:[#allocation3 + $0x10] sm:$0xff]
        %v1679 = vld [vmem:[#allocation3 + $0x18] sm:$0xff]
        %v1680 = vld [vmem:[#allocation3 + $0x20] sm:$0xff]
        %v1681 = vld [vmem:[#allocation3 + $0x28] sm:$0xff]
        %v1682 = vld [vmem:[#allocation3 + $0x30] sm:$0xff]
        %v1683 = vld [vmem:[#allocation3 + $0x38] sm:$0xff]
        %1685 = vrot.lane.b32.xlu0 %v1675, 64
        %v1686 = vpop.permute.xlu0 %1685
        %v1688 = vmul.f32 %v1676, %v1686
        %v1689 = vmul.f32 %v1677, %v1686
        %v1690 = vmul.f32 %v1678, %v1686
        %v1691 = vmul.f32 %v1679, %v1686
        %v1692 = vmul.f32 %v1680, %v1686
        %v1693 = vmul.f32 %v1681, %v1686
        %v1694 = vmul.f32 %v1682, %v1686
        %v1695 = vmul.f32 %v1683, %v1686
        %v1696 = vsel %vm388, %v1688, 0.0
        %1697 = vadd.xlane.f32.xlu0 %v1696
        %v1698 = vpop.xlane.xlu0 %1697
        %v1699 = vsel %vm388, %v1689, 0.0
        %1700 = vadd.xlane.f32.xlu0 %v1699
        %v1701 = vpop.xlane.xlu0 %1700
        %v1702 = vsel %vm388, %v1690, 0.0
        %1703 = vadd.xlane.f32.xlu0 %v1702
        %v1704 = vpop.xlane.xlu0 %1703
        %v1705 = vsel %vm388, %v1691, 0.0
        %1706 = vadd.xlane.f32.xlu0 %v1705
        %v1707 = vpop.xlane.xlu0 %1706
        %v1708 = vsel %vm388, %v1692, 0.0
        %1709 = vadd.xlane.f32.xlu0 %v1708
        %v1710 = vpop.xlane.xlu0 %1709
        %v1711 = vsel %vm388, %v1693, 0.0
        %1712 = vadd.xlane.f32.xlu0 %v1711
        %v1713 = vpop.xlane.xlu0 %1712
        %v1714 = vsel %vm388, %v1694, 0.0
        %1715 = vadd.xlane.f32.xlu0 %v1714
        %v1716 = vpop.xlane.xlu0 %1715
        %v1717 = vsel %vm388, %v1695, 0.0
        %1718 = vadd.xlane.f32.xlu0 %v1717
        %v1719 = vpop.xlane.xlu0 %1718
        %v1720 = vmax.f32 %v1698, %v1710
        %v1721 = vmax.f32 %v1701, %v1713
        %v1722 = vmax.f32 %v1704, %v1716
        %v1723 = vmax.f32 %v1707, %v1719
        %v1724 = vmax.f32 %v1720, %v1721
        %v1725 = vmax.f32 %v1722, %v1723
        %v1726 = vmax.f32 %v1724, %v1725
        %v1727 = vsub.f32 %v1698, %v1726
        %v1728 = vsub.f32 %v1701, %v1726
        %v1729 = vsub.f32 %v1704, %v1726
        %v1730 = vsub.f32 %v1707, %v1726
        %v1731 = vsub.f32 %v1710, %v1726
        %v1732 = vsub.f32 %v1713, %v1726
        %v1733 = vsub.f32 %v1716, %v1726
        %v1734 = vsub.f32 %v1719, %v1726
        %v1735 = vmul.f32 %v1727, 1.442695
        %v1736 = vpow.pop %v1735
        %v1737 = vmul.f32 %v1728, 1.442695
        %v1738 = vpow.pop %v1737
        %v1739 = vmul.f32 %v1729, 1.442695
        %v1740 = vpow.pop %v1739
        %v1741 = vmul.f32 %v1730, 1.442695
        %v1742 = vpow.pop %v1741
        %v1743 = vmul.f32 %v1731, 1.442695
        %v1744 = vpow.pop %v1743
        %v1745 = vmul.f32 %v1732, 1.442695
        %v1746 = vpow.pop %v1745
        %v1747 = vmul.f32 %v1733, 1.442695
        %v1748 = vpow.pop %v1747
        %v1749 = vmul.f32 %v1734, 1.442695
        %v1750 = vpow.pop %v1749
        %v1751 = vadd.f32 %v1736, %v1738
        %v1752 = vadd.f32 %v1751, %v1740
        %v1753 = vadd.f32 %v1752, %v1742
        %v1754 = vadd.f32 %v1753, %v1744
        %v1755 = vadd.f32 %v1754, %v1746
        %v1756 = vadd.f32 %v1755, %v1748
        %v1757 = vadd.f32 %v1756, %v1750
        %v1758 = vrcp.pop %v1757
        %v1759 = vmul.f32 %v1736, %v1758
        %v1760 = vmul.f32 %v1738, %v1758
        %v1761 = vmul.f32 %v1740, %v1758
        %v1762 = vmul.f32 %v1742, %v1758
        %v1763 = vmul.f32 %v1744, %v1758
        %v1764 = vmul.f32 %v1746, %v1758
        %v1765 = vmul.f32 %v1748, %v1758
        %v1766 = vmul.f32 %v1750, %v1758
        %v1767 = vld [vmem:[#allocation4] sm:$0xff]
        %v1768 = vld [vmem:[#allocation4 + $0x8] sm:$0xff]
        %v1769 = vld [vmem:[#allocation4 + $0x10] sm:$0xff]
        %v1770 = vld [vmem:[#allocation4 + $0x18] sm:$0xff]
        %v1771 = vld [vmem:[#allocation4 + $0x20] sm:$0xff]
        %v1772 = vld [vmem:[#allocation4 + $0x28] sm:$0xff]
        %v1773 = vld [vmem:[#allocation4 + $0x30] sm:$0xff]
        %v1774 = vld [vmem:[#allocation4 + $0x38] sm:$0xff]
        %v1775 = vmul.f32 %v1759, %v1767
        %v1776 = vmul.f32 %v1760, %v1768
        %v1777 = vmul.f32 %v1761, %v1769
        %v1778 = vmul.f32 %v1762, %v1770
        %v1779 = vmul.f32 %v1763, %v1771
        %v1780 = vmul.f32 %v1764, %v1772
        %v1781 = vmul.f32 %v1765, %v1773
        %v1782 = vmul.f32 %v1766, %v1774
        %v1783 = vadd.f32 %v1775, %v1776
        %v1784 = vadd.f32 %v1783, %v1777
        %v1785 = vadd.f32 %v1784, %v1778
        %v1786 = vadd.f32 %v1785, %v1779
        %v1787 = vadd.f32 %v1786, %v1780
        %v1788 = vadd.f32 %v1787, %v1781
        %v1789 = vadd.f32 %v1788, %v1782
        %v1790 = vld [vmem:[%s5] sm:$0xff]
        %v1791 = vld [vmem:[%s5 + $0x8] sm:$0xff]
        %v1792 = vld [vmem:[%s5 + $0x10] sm:$0xff]
        %v1793 = vld [vmem:[%s5 + $0x18] sm:$0xff]
        %v1794 = vsel %vm388, %v1686, 0
        %1796 = vmatprep.subr.mxu0 0.0
        %1797 = vmatpush1.msra.mxu0 0.0
        %1798 = vmatprep.subr.mxu0 0.0
        %1799 = vmatpush1.msra.mxu0 0.0
        %1800 = vmatprep.subr.mxu0 0.0
        %1801 = vmatpush1.msra.mxu0 0.0
        %1802 = vmatprep.subr.mxu0 0.0
        %1803 = vmatpush1.msra.mxu0 0.0
        %1804 = vmatprep.subr.mxu0 0.0
        %1805 = vmatpush1.msra.mxu0 0.0
        %1806 = vmatprep.subr.mxu0 0.0
        %1807 = vmatpush1.msra.mxu0 0.0
        %1808 = vmatprep.subr.mxu0 0.0
        %1809 = vmatpush1.msra.mxu0 0.0
        %1810 = vmatprep.subr.mxu0 0.0
        %1811 = vmatpush1.msra.mxu0 0.0
        %1812 = vmatprep.subr.mxu0 0.0
        %1813 = vmatpush1.msra.mxu0 0.0
        %1814 = vmatprep.subr.mxu0 0.0
        %1815 = vmatpush1.msra.mxu0 0.0
        %1816 = vmatprep.subr.mxu0 0.0
        %1817 = vmatpush1.msra.mxu0 0.0
        %1818 = vmatprep.subr.mxu0 0.0
        %1819 = vmatpush1.msra.mxu0 0.0
        %1820 = vmatprep.subr.mxu0 0.0
        %1821 = vmatpush1.msra.mxu0 %v1793
        %1822 = vmatprep.subr.mxu0 0.0
        %1823 = vmatpush1.msra.mxu0 %v1792
        %1824 = vmatprep.subr.mxu0 0.0
        %1825 = vmatpush1.msra.mxu0 %v1791
        %1826 = vmatprep.subr.mxu0 0.0
        %1827 = vmatpush1.msra.mxu0 %v1790
        %1828 = vmatprep.subr.mxu0 0.0
        %1829 = vmatpush2.msra.mxu0 0.0
        %1830 = vmatprep.subr.mxu0 0.0
        %1831 = vmatpush2.msra.mxu0 0.0
        %1832 = vmatprep.subr.mxu0 0.0
        %1833 = vmatpush2.msra.mxu0 0.0
        %1834 = vmatprep.subr.mxu0 0.0
        %1835 = vmatpush2.msra.mxu0 0.0
        %1836 = vmatprep.subr.mxu0 0.0
        %1837 = vmatpush2.msra.mxu0 0.0
        %1838 = vmatprep.subr.mxu0 0.0
        %1839 = vmatpush2.msra.mxu0 0.0
        %1840 = vmatprep.subr.mxu0 0.0
        %1841 = vmatpush2.msra.mxu0 0.0
        %1842 = vmatprep.subr.mxu0 0.0
        %1843 = vmatpush2.msra.mxu0 0.0
        %1844 = vmatprep.subr.mxu0 0.0
        %1845 = vmatpush2.msra.mxu0 0.0
        %1846 = vmatprep.subr.mxu0 0.0
        %1847 = vmatpush2.msra.mxu0 0.0
        %1848 = vmatprep.subr.mxu0 0.0
        %1849 = vmatpush2.msra.mxu0 0.0
        %1850 = vmatprep.subr.mxu0 0.0
        %1851 = vmatpush2.msra.mxu0 0.0
        %1852 = vmatprep.subr.mxu0 0.0
        %1853 = vmatpush2.msra.mxu0 0.0
        %1854 = vmatprep.subr.mxu0 0.0
        %1855 = vmatpush2.msra.mxu0 0.0
        %1856 = vmatprep.subr.mxu0 0.0
        %1857 = vmatpush2.msra.mxu0 0.0
        %1858 = vmatprep.subr.mxu0 0.0
        %1859 = vmatpush2.msra.mxu0 0.0
        %1860 = vmatprep.mubr.f32.mxu0 0.0
        %1861 = vmatmul.mubr.f32.gmra.mxu0 %v1794
        %v1862 = vpop.f32.mrf.mxu0
        %v1863 = vadd.f32 %v1789, %v1862
        %v1864 = vpop.f32.mrf.mxu0
        %1865 = vdwg.mxu0
        %v1866 = vld [vmem:[%s7] sm:$0x1]
        %v1868 = vlaneseq
        %v1869 = vshrl.u32 %v1868, 7
        %v1870 = vsub.s32 0, %v1869
        %v1871 = vrot.slane %v1866, %v1870
        %v1873 = vadd.f32 %v1863, %v1871
        %s1874 = scalar_lea.vmem %s366, 8 [#allocation6]
        %1875 = vst [vmem:[%s1874] sm:$0xff] %v1873
        %1876 = vmax.xlane.f32.xlu0 %v1873
        %v1877 = vpop.xlane.xlu0 %1876
        %vm1878 = vcmp.eq.f32.partialorder %v1873, %v1877
        %vm1879 = vcmp.lt.s32.totalorder %v368, 32
        %vm1880 = vmand %vm1878, %vm1879
        %v1881 = vsel %vm1880, %v368, 128
        %v1882 = vand.u32 %v1881, 65535
        %v1883 = vshra.s32 %v1881, 16
        %v1884 = vcvt.s32.f32 %v1882
        %v1885 = vcvt.s32.f32 %v1883
        %1886 = vmin.xlane.f32.xlu0 %v1885
        %v1887 = vpop.xlane.xlu0 %1886
        %vm1888 = vcmp.eq.f32.partialorder %v1885, %v1887
        %v1889 = vsel %vm1888, %v1884, inf
        %1890 = vmin.xlane.f32.xlu0 %v1889
        %v1891 = vpop.xlane.xlu0 %1890
        %v1892 = vcvt.f32.s32 %v1891
        %v1893 = vcvt.f32.s32 %v1887
        %v1894 = vshll.u32 %v1893, 16
        %v1895 = vadd.s32 %v1894, %v1892
        %vm1896 = vcmp.eq.s32.totalorder %v368, %v1895
        %v1897 = vsel %vm1896, 1, 0
        %v1898 = vcvt.s32.f32 %v1897
        %v1899 = vld [vmem:[%s4] sm:$0xff]
        %v1900 = vld [vmem:[%s4 + $0x8] sm:$0xff]
        %v1901 = vld [vmem:[%s4 + $0x10] sm:$0xff]
        %v1902 = vld [vmem:[%s4 + $0x18] sm:$0xff]
        %v1903 = vld [vmem:[%s4 + $0x20] sm:$0xff]
        %v1904 = vld [vmem:[%s4 + $0x28] sm:$0xff]
        %v1905 = vld [vmem:[%s4 + $0x30] sm:$0xff]
        %v1906 = vld [vmem:[%s4 + $0x38] sm:$0xff]
        %v1907 = vld [vmem:[%s4 + $0x40] sm:$0xff]
        %v1908 = vld [vmem:[%s4 + $0x48] sm:$0xff]
        %v1909 = vld [vmem:[%s4 + $0x50] sm:$0xff]
        %v1910 = vld [vmem:[%s4 + $0x58] sm:$0xff]
        %v1911 = vld [vmem:[%s4 + $0x60] sm:$0xff]
        %v1912 = vld [vmem:[%s4 + $0x68] sm:$0xff]
        %v1913 = vld [vmem:[%s4 + $0x70] sm:$0xff]
        %v1914 = vld [vmem:[%s4 + $0x78] sm:$0xff]
        %v1915 = vld [vmem:[%s4 + $0x80] sm:$0xff]
        %v1916 = vld [vmem:[%s4 + $0x88] sm:$0xff]
        %v1917 = vld [vmem:[%s4 + $0x90] sm:$0xff]
        %v1918 = vld [vmem:[%s4 + $0x98] sm:$0xff]
        %1919 = vmatprep.subr.mxu0 0.0
        %1920 = vmatpush1.msra.mxu0 %v1914
        %1921 = vmatprep.subr.mxu0 0.0
        %1922 = vmatpush1.msra.mxu0 %v1913
        %1923 = vmatprep.subr.mxu0 0.0
        %1924 = vmatpush1.msra.mxu0 %v1912
        %1925 = vmatprep.subr.mxu0 0.0
        %1926 = vmatpush1.msra.mxu0 %v1911
        %1927 = vmatprep.subr.mxu0 0.0
        %1928 = vmatpush1.msra.mxu0 %v1910
        %1929 = vmatprep.subr.mxu0 0.0
        %1930 = vmatpush1.msra.mxu0 %v1909
        %1931 = vmatprep.subr.mxu0 0.0
        %1932 = vmatpush1.msra.mxu0 %v1908
        %1933 = vmatprep.subr.mxu0 0.0
        %1934 = vmatpush1.msra.mxu0 %v1907
        %1935 = vmatprep.subr.mxu0 0.0
        %1936 = vmatpush1.msra.mxu0 %v1906
        %1937 = vmatprep.subr.mxu0 0.0
        %1938 = vmatpush1.msra.mxu0 %v1905
        %1939 = vmatprep.subr.mxu0 0.0
        %1940 = vmatpush1.msra.mxu0 %v1904
        %1941 = vmatprep.subr.mxu0 0.0
        %1942 = vmatpush1.msra.mxu0 %v1903
        %1943 = vmatprep.subr.mxu0 0.0
        %1944 = vmatpush1.msra.mxu0 %v1902
        %1945 = vmatprep.subr.mxu0 0.0
        %1946 = vmatpush1.msra.mxu0 %v1901
        %1947 = vmatprep.subr.mxu0 0.0
        %1948 = vmatpush1.msra.mxu0 %v1900
        %1949 = vmatprep.subr.mxu0 0.0
        %1950 = vmatpush1.msra.mxu0 %v1899
        %1951 = vmatprep.subr.mxu0 0.0
        %1952 = vmatpush2.msra.mxu0 0.0
        %1953 = vmatprep.subr.mxu0 0.0
        %1954 = vmatpush2.msra.mxu0 0.0
        %1955 = vmatprep.subr.mxu0 0.0
        %1956 = vmatpush2.msra.mxu0 0.0
        %1957 = vmatprep.subr.mxu0 0.0
        %1958 = vmatpush2.msra.mxu0 0.0
        %1959 = vmatprep.subr.mxu0 0.0
        %1960 = vmatpush2.msra.mxu0 0.0
        %1961 = vmatprep.subr.mxu0 0.0
        %1962 = vmatpush2.msra.mxu0 0.0
        %1963 = vmatprep.subr.mxu0 0.0
        %1964 = vmatpush2.msra.mxu0 0.0
        %1965 = vmatprep.subr.mxu0 0.0
        %1966 = vmatpush2.msra.mxu0 0.0
        %1967 = vmatprep.subr.mxu0 0.0
        %1968 = vmatpush2.msra.mxu0 0.0
        %1969 = vmatprep.subr.mxu0 0.0
        %1970 = vmatpush2.msra.mxu0 0.0
        %1971 = vmatprep.subr.mxu0 0.0
        %1972 = vmatpush2.msra.mxu0 0.0
        %1973 = vmatprep.subr.mxu0 0.0
        %1974 = vmatpush2.msra.mxu0 0.0
        %1975 = vmatprep.subr.mxu0 0.0
        %1976 = vmatpush2.msra.mxu0 %v1918
        %1977 = vmatprep.subr.mxu0 0.0
        %1978 = vmatpush2.msra.mxu0 %v1917
        %1979 = vmatprep.subr.mxu0 0.0
        %1980 = vmatpush2.msra.mxu0 %v1916
        %1981 = vmatprep.subr.mxu0 0.0
        %1982 = vmatpush2.msra.mxu0 %v1915
        %1983 = vmatprep.mubr.f32.mxu0 %v1794
        %1984 = vmatmul.mubr.f32.gmra.mxu0 %v1898
        %v1985 = vpop.f32.mrf.mxu0
        %v1986 = vadd.f32 0.0, %v1985
        %v1987 = vpop.f32.mrf.mxu0
        %1988 = vdwg.mxu0
        %v1989 = vxor.u32 %v1986, 2147483648
        %v1990 = vmul.f32 %v1989, 1.442695
        %v1991 = vpow.pop %v1990
        %v1992 = vadd.f32 %v1991, 1.0
        %v1993 = vrcp.pop %v1992
        %v1994 = vmul.f32 1.0, %v1993
        %v1995 = vtanh.pop %v1986
        %v1996 = vsel %vm605, %v1994, %v1995
        %v1997 = vmul.f32 %v1996, %v1669
        %1999 = vrot.lane.b32.xlu0 %v1996, 32
        %v2000 = vpop.permute.xlu0 %1999
        %v2002 = vmul.f32 %v1996, %v2000
        %2004 = vrot.lane.b32.xlu0 %v2002, 32
        %v2005 = vpop.permute.xlu0 %2004
        %v2007 = vadd.f32 %v1997, %v2005
        %v2008 = vtanh.pop %v2007
        %2010 = vrot.lane.b32.xlu0 %v2008, 32
        %v2011 = vpop.permute.xlu0 %2010
        %v2013 = vmul.f32 %v1996, %v2011
        %v2014 = vld [vmem:[#allocation3] sm:$0xff]
        %v2015 = vld [vmem:[#allocation3 + $0x8] sm:$0xff]
        %v2016 = vld [vmem:[#allocation3 + $0x10] sm:$0xff]
        %v2017 = vld [vmem:[#allocation3 + $0x18] sm:$0xff]
        %v2018 = vld [vmem:[#allocation3 + $0x20] sm:$0xff]
        %v2019 = vld [vmem:[#allocation3 + $0x28] sm:$0xff]
        %v2020 = vld [vmem:[#allocation3 + $0x30] sm:$0xff]
        %v2021 = vld [vmem:[#allocation3 + $0x38] sm:$0xff]
        %2023 = vrot.lane.b32.xlu0 %v2013, 64
        %v2024 = vpop.permute.xlu0 %2023
        %v2026 = vmul.f32 %v2014, %v2024
        %v2027 = vmul.f32 %v2015, %v2024
        %v2028 = vmul.f32 %v2016, %v2024
        %v2029 = vmul.f32 %v2017, %v2024
        %v2030 = vmul.f32 %v2018, %v2024
        %v2031 = vmul.f32 %v2019, %v2024
        %v2032 = vmul.f32 %v2020, %v2024
        %v2033 = vmul.f32 %v2021, %v2024
        %v2034 = vsel %vm388, %v2026, 0.0
        %2035 = vadd.xlane.f32.xlu0 %v2034
        %v2036 = vpop.xlane.xlu0 %2035
        %v2037 = vsel %vm388, %v2027, 0.0
        %2038 = vadd.xlane.f32.xlu0 %v2037
        %v2039 = vpop.xlane.xlu0 %2038
        %v2040 = vsel %vm388, %v2028, 0.0
        %2041 = vadd.xlane.f32.xlu0 %v2040
        %v2042 = vpop.xlane.xlu0 %2041
        %v2043 = vsel %vm388, %v2029, 0.0
        %2044 = vadd.xlane.f32.xlu0 %v2043
        %v2045 = vpop.xlane.xlu0 %2044
        %v2046 = vsel %vm388, %v2030, 0.0
        %2047 = vadd.xlane.f32.xlu0 %v2046
        %v2048 = vpop.xlane.xlu0 %2047
        %v2049 = vsel %vm388, %v2031, 0.0
        %2050 = vadd.xlane.f32.xlu0 %v2049
        %v2051 = vpop.xlane.xlu0 %2050
        %v2052 = vsel %vm388, %v2032, 0.0
        %2053 = vadd.xlane.f32.xlu0 %v2052
        %v2054 = vpop.xlane.xlu0 %2053
        %v2055 = vsel %vm388, %v2033, 0.0
        %2056 = vadd.xlane.f32.xlu0 %v2055
        %v2057 = vpop.xlane.xlu0 %2056
        %v2058 = vmax.f32 %v2036, %v2048
        %v2059 = vmax.f32 %v2039, %v2051
        %v2060 = vmax.f32 %v2042, %v2054
        %v2061 = vmax.f32 %v2045, %v2057
        %v2062 = vmax.f32 %v2058, %v2059
        %v2063 = vmax.f32 %v2060, %v2061
        %v2064 = vmax.f32 %v2062, %v2063
        %v2065 = vsub.f32 %v2036, %v2064
        %v2066 = vsub.f32 %v2039, %v2064
        %v2067 = vsub.f32 %v2042, %v2064
        %v2068 = vsub.f32 %v2045, %v2064
        %v2069 = vsub.f32 %v2048, %v2064
        %v2070 = vsub.f32 %v2051, %v2064
        %v2071 = vsub.f32 %v2054, %v2064
        %v2072 = vsub.f32 %v2057, %v2064
        %v2073 = vmul.f32 %v2065, 1.442695
        %v2074 = vpow.pop %v2073
        %v2075 = vmul.f32 %v2066, 1.442695
        %v2076 = vpow.pop %v2075
        %v2077 = vmul.f32 %v2067, 1.442695
        %v2078 = vpow.pop %v2077
        %v2079 = vmul.f32 %v2068, 1.442695
        %v2080 = vpow.pop %v2079
        %v2081 = vmul.f32 %v2069, 1.442695
        %v2082 = vpow.pop %v2081
        %v2083 = vmul.f32 %v2070, 1.442695
        %v2084 = vpow.pop %v2083
        %v2085 = vmul.f32 %v2071, 1.442695
        %v2086 = vpow.pop %v2085
        %v2087 = vmul.f32 %v2072, 1.442695
        %v2088 = vpow.pop %v2087
        %v2089 = vadd.f32 %v2074, %v2076
        %v2090 = vadd.f32 %v2089, %v2078
        %v2091 = vadd.f32 %v2090, %v2080
        %v2092 = vadd.f32 %v2091, %v2082
        %v2093 = vadd.f32 %v2092, %v2084
        %v2094 = vadd.f32 %v2093, %v2086
        %v2095 = vadd.f32 %v2094, %v2088
        %v2096 = vrcp.pop %v2095
        %v2097 = vmul.f32 %v2074, %v2096
        %v2098 = vmul.f32 %v2076, %v2096
        %v2099 = vmul.f32 %v2078, %v2096
        %v2100 = vmul.f32 %v2080, %v2096
        %v2101 = vmul.f32 %v2082, %v2096
        %v2102 = vmul.f32 %v2084, %v2096
        %v2103 = vmul.f32 %v2086, %v2096
        %v2104 = vmul.f32 %v2088, %v2096
        %v2105 = vld [vmem:[#allocation4] sm:$0xff]
        %v2106 = vld [vmem:[#allocation4 + $0x8] sm:$0xff]
        %v2107 = vld [vmem:[#allocation4 + $0x10] sm:$0xff]
        %v2108 = vld [vmem:[#allocation4 + $0x18] sm:$0xff]
        %v2109 = vld [vmem:[#allocation4 + $0x20] sm:$0xff]
        %v2110 = vld [vmem:[#allocation4 + $0x28] sm:$0xff]
        %v2111 = vld [vmem:[#allocation4 + $0x30] sm:$0xff]
        %v2112 = vld [vmem:[#allocation4 + $0x38] sm:$0xff]
        %v2113 = vmul.f32 %v2097, %v2105
        %v2114 = vmul.f32 %v2098, %v2106
        %v2115 = vmul.f32 %v2099, %v2107
        %v2116 = vmul.f32 %v2100, %v2108
        %v2117 = vmul.f32 %v2101, %v2109
        %v2118 = vmul.f32 %v2102, %v2110
        %v2119 = vmul.f32 %v2103, %v2111
        %v2120 = vmul.f32 %v2104, %v2112
        %v2121 = vadd.f32 %v2113, %v2114
        %v2122 = vadd.f32 %v2121, %v2115
        %v2123 = vadd.f32 %v2122, %v2116
        %v2124 = vadd.f32 %v2123, %v2117
        %v2125 = vadd.f32 %v2124, %v2118
        %v2126 = vadd.f32 %v2125, %v2119
        %v2127 = vadd.f32 %v2126, %v2120
        %v2128 = vld [vmem:[%s5] sm:$0xff]
        %v2129 = vld [vmem:[%s5 + $0x8] sm:$0xff]
        %v2130 = vld [vmem:[%s5 + $0x10] sm:$0xff]
        %v2131 = vld [vmem:[%s5 + $0x18] sm:$0xff]
        %v2132 = vsel %vm388, %v2024, 0
        %2134 = vmatprep.subr.mxu0 0.0
        %2135 = vmatpush1.msra.mxu0 0.0
        %2136 = vmatprep.subr.mxu0 0.0
        %2137 = vmatpush1.msra.mxu0 0.0
        %2138 = vmatprep.subr.mxu0 0.0
        %2139 = vmatpush1.msra.mxu0 0.0
        %2140 = vmatprep.subr.mxu0 0.0
        %2141 = vmatpush1.msra.mxu0 0.0
        %2142 = vmatprep.subr.mxu0 0.0
        %2143 = vmatpush1.msra.mxu0 0.0
        %2144 = vmatprep.subr.mxu0 0.0
        %2145 = vmatpush1.msra.mxu0 0.0
        %2146 = vmatprep.subr.mxu0 0.0
        %2147 = vmatpush1.msra.mxu0 0.0
        %2148 = vmatprep.subr.mxu0 0.0
        %2149 = vmatpush1.msra.mxu0 0.0
        %2150 = vmatprep.subr.mxu0 0.0
        %2151 = vmatpush1.msra.mxu0 0.0
        %2152 = vmatprep.subr.mxu0 0.0
        %2153 = vmatpush1.msra.mxu0 0.0
        %2154 = vmatprep.subr.mxu0 0.0
        %2155 = vmatpush1.msra.mxu0 0.0
        %2156 = vmatprep.subr.mxu0 0.0
        %2157 = vmatpush1.msra.mxu0 0.0
        %2158 = vmatprep.subr.mxu0 0.0
        %2159 = vmatpush1.msra.mxu0 %v2131
        %2160 = vmatprep.subr.mxu0 0.0
        %2161 = vmatpush1.msra.mxu0 %v2130
        %2162 = vmatprep.subr.mxu0 0.0
        %2163 = vmatpush1.msra.mxu0 %v2129
        %2164 = vmatprep.subr.mxu0 0.0
        %2165 = vmatpush1.msra.mxu0 %v2128
        %2166 = vmatprep.subr.mxu0 0.0
        %2167 = vmatpush2.msra.mxu0 0.0
        %2168 = vmatprep.subr.mxu0 0.0
        %2169 = vmatpush2.msra.mxu0 0.0
        %2170 = vmatprep.subr.mxu0 0.0
        %2171 = vmatpush2.msra.mxu0 0.0
        %2172 = vmatprep.subr.mxu0 0.0
        %2173 = vmatpush2.msra.mxu0 0.0
        %2174 = vmatprep.subr.mxu0 0.0
        %2175 = vmatpush2.msra.mxu0 0.0
        %2176 = vmatprep.subr.mxu0 0.0
        %2177 = vmatpush2.msra.mxu0 0.0
        %2178 = vmatprep.subr.mxu0 0.0
        %2179 = vmatpush2.msra.mxu0 0.0
        %2180 = vmatprep.subr.mxu0 0.0
        %2181 = vmatpush2.msra.mxu0 0.0
        %2182 = vmatprep.subr.mxu0 0.0
        %2183 = vmatpush2.msra.mxu0 0.0
        %2184 = vmatprep.subr.mxu0 0.0
        %2185 = vmatpush2.msra.mxu0 0.0
        %2186 = vmatprep.subr.mxu0 0.0
        %2187 = vmatpush2.msra.mxu0 0.0
        %2188 = vmatprep.subr.mxu0 0.0
        %2189 = vmatpush2.msra.mxu0 0.0
        %2190 = vmatprep.subr.mxu0 0.0
        %2191 = vmatpush2.msra.mxu0 0.0
        %2192 = vmatprep.subr.mxu0 0.0
        %2193 = vmatpush2.msra.mxu0 0.0
        %2194 = vmatprep.subr.mxu0 0.0
        %2195 = vmatpush2.msra.mxu0 0.0
        %2196 = vmatprep.subr.mxu0 0.0
        %2197 = vmatpush2.msra.mxu0 0.0
        %2198 = vmatprep.mubr.f32.mxu0 0.0
        %2199 = vmatmul.mubr.f32.gmra.mxu0 %v2132
        %v2200 = vpop.f32.mrf.mxu0
        %v2201 = vadd.f32 %v2127, %v2200
        %v2202 = vpop.f32.mrf.mxu0
        %2203 = vdwg.mxu0
        %v2204 = vld [vmem:[%s7] sm:$0x1]
        %v2206 = vlaneseq
        %v2207 = vshrl.u32 %v2206, 7
        %v2208 = vsub.s32 0, %v2207
        %v2209 = vrot.slane %v2204, %v2208
        %v2211 = vadd.f32 %v2201, %v2209
        %s2212 = scalar_lea.vmem %s366, 16 [#allocation6]
        %2213 = vst [vmem:[%s2212] sm:$0xff] %v2211
        %2214 = vmax.xlane.f32.xlu0 %v2211
        %v2215 = vpop.xlane.xlu0 %2214
        %vm2216 = vcmp.eq.f32.partialorder %v2211, %v2215
        %vm2217 = vmand %vm2216, %vm1879
        %v2218 = vsel %vm2217, %v368, 128
        %v2219 = vand.u32 %v2218, 65535
        %v2220 = vshra.s32 %v2218, 16
        %v2221 = vcvt.s32.f32 %v2219
        %v2222 = vcvt.s32.f32 %v2220
        %2223 = vmin.xlane.f32.xlu0 %v2222
        %v2224 = vpop.xlane.xlu0 %2223
        %vm2225 = vcmp.eq.f32.partialorder %v2222, %v2224
        %v2226 = vsel %vm2225, %v2221, inf
        %2227 = vmin.xlane.f32.xlu0 %v2226
        %v2228 = vpop.xlane.xlu0 %2227
        %v2229 = vcvt.f32.s32 %v2228
        %v2230 = vcvt.f32.s32 %v2224
        %v2231 = vshll.u32 %v2230, 16
        %v2232 = vadd.s32 %v2231, %v2229
        %vm2233 = vcmp.eq.s32.totalorder %v368, %v2232
        %v2234 = vsel %vm2233, 1, 0
        %v2235 = vcvt.s32.f32 %v2234
        %v2236 = vld [vmem:[%s4] sm:$0xff]
        %v2237 = vld [vmem:[%s4 + $0x8] sm:$0xff]
        %v2238 = vld [vmem:[%s4 + $0x10] sm:$0xff]
        %v2239 = vld [vmem:[%s4 + $0x18] sm:$0xff]
        %v2240 = vld [vmem:[%s4 + $0x20] sm:$0xff]
        %v2241 = vld [vmem:[%s4 + $0x28] sm:$0xff]
        %v2242 = vld [vmem:[%s4 + $0x30] sm:$0xff]
        %v2243 = vld [vmem:[%s4 + $0x38] sm:$0xff]
        %v2244 = vld [vmem:[%s4 + $0x40] sm:$0xff]
        %v2245 = vld [vmem:[%s4 + $0x48] sm:$0xff]
        %v2246 = vld [vmem:[%s4 + $0x50] sm:$0xff]
        %v2247 = vld [vmem:[%s4 + $0x58] sm:$0xff]
        %v2248 = vld [vmem:[%s4 + $0x60] sm:$0xff]
        %v2249 = vld [vmem:[%s4 + $0x68] sm:$0xff]
        %v2250 = vld [vmem:[%s4 + $0x70] sm:$0xff]
        %v2251 = vld [vmem:[%s4 + $0x78] sm:$0xff]
        %v2252 = vld [vmem:[%s4 + $0x80] sm:$0xff]
        %v2253 = vld [vmem:[%s4 + $0x88] sm:$0xff]
        %v2254 = vld [vmem:[%s4 + $0x90] sm:$0xff]
        %v2255 = vld [vmem:[%s4 + $0x98] sm:$0xff]
        %2256 = vmatprep.subr.mxu0 0.0
        %2257 = vmatpush1.msra.mxu0 %v2251
        %2258 = vmatprep.subr.mxu0 0.0
        %2259 = vmatpush1.msra.mxu0 %v2250
        %2260 = vmatprep.subr.mxu0 0.0
        %2261 = vmatpush1.msra.mxu0 %v2249
        %2262 = vmatprep.subr.mxu0 0.0
        %2263 = vmatpush1.msra.mxu0 %v2248
        %2264 = vmatprep.subr.mxu0 0.0
        %2265 = vmatpush1.msra.mxu0 %v2247
        %2266 = vmatprep.subr.mxu0 0.0
        %2267 = vmatpush1.msra.mxu0 %v2246
        %2268 = vmatprep.subr.mxu0 0.0
        %2269 = vmatpush1.msra.mxu0 %v2245
        %2270 = vmatprep.subr.mxu0 0.0
        %2271 = vmatpush1.msra.mxu0 %v2244
        %2272 = vmatprep.subr.mxu0 0.0
        %2273 = vmatpush1.msra.mxu0 %v2243
        %2274 = vmatprep.subr.mxu0 0.0
        %2275 = vmatpush1.msra.mxu0 %v2242
        %2276 = vmatprep.subr.mxu0 0.0
        %2277 = vmatpush1.msra.mxu0 %v2241
        %2278 = vmatprep.subr.mxu0 0.0
        %2279 = vmatpush1.msra.mxu0 %v2240
        %2280 = vmatprep.subr.mxu0 0.0
        %2281 = vmatpush1.msra.mxu0 %v2239
        %2282 = vmatprep.subr.mxu0 0.0
        %2283 = vmatpush1.msra.mxu0 %v2238
        %2284 = vmatprep.subr.mxu0 0.0
        %2285 = vmatpush1.msra.mxu0 %v2237
        %2286 = vmatprep.subr.mxu0 0.0
        %2287 = vmatpush1.msra.mxu0 %v2236
        %2288 = vmatprep.subr.mxu0 0.0
        %2289 = vmatpush2.msra.mxu0 0.0
        %2290 = vmatprep.subr.mxu0 0.0
        %2291 = vmatpush2.msra.mxu0 0.0
        %2292 = vmatprep.subr.mxu0 0.0
        %2293 = vmatpush2.msra.mxu0 0.0
        %2294 = vmatprep.subr.mxu0 0.0
        %2295 = vmatpush2.msra.mxu0 0.0
        %2296 = vmatprep.subr.mxu0 0.0
        %2297 = vmatpush2.msra.mxu0 0.0
        %2298 = vmatprep.subr.mxu0 0.0
        %2299 = vmatpush2.msra.mxu0 0.0
        %2300 = vmatprep.subr.mxu0 0.0
        %2301 = vmatpush2.msra.mxu0 0.0
        %2302 = vmatprep.subr.mxu0 0.0
        %2303 = vmatpush2.msra.mxu0 0.0
        %2304 = vmatprep.subr.mxu0 0.0
        %2305 = vmatpush2.msra.mxu0 0.0
        %2306 = vmatprep.subr.mxu0 0.0
        %2307 = vmatpush2.msra.mxu0 0.0
        %2308 = vmatprep.subr.mxu0 0.0
        %2309 = vmatpush2.msra.mxu0 0.0
        %2310 = vmatprep.subr.mxu0 0.0
        %2311 = vmatpush2.msra.mxu0 0.0
        %2312 = vmatprep.subr.mxu0 0.0
        %2313 = vmatpush2.msra.mxu0 %v2255
        %2314 = vmatprep.subr.mxu0 0.0
        %2315 = vmatpush2.msra.mxu0 %v2254
        %2316 = vmatprep.subr.mxu0 0.0
        %2317 = vmatpush2.msra.mxu0 %v2253
        %2318 = vmatprep.subr.mxu0 0.0
        %2319 = vmatpush2.msra.mxu0 %v2252
        %2320 = vmatprep.mubr.f32.mxu0 %v2132
        %2321 = vmatmul.mubr.f32.gmra.mxu0 %v2235
        %v2322 = vpop.f32.mrf.mxu0
        %v2323 = vadd.f32 0.0, %v2322
        %v2324 = vpop.f32.mrf.mxu0
        %2325 = vdwg.mxu0
        %v2326 = vxor.u32 %v2323, 2147483648
        %v2327 = vmul.f32 %v2326, 1.442695
        %v2328 = vpow.pop %v2327
        %v2329 = vadd.f32 %v2328, 1.0
        %v2330 = vrcp.pop %v2329
        %v2331 = vmul.f32 1.0, %v2330
        %v2332 = vtanh.pop %v2323
        %v2333 = vsel %vm605, %v2331, %v2332
        %v2334 = vmul.f32 %v2333, %v2007
        %2336 = vrot.lane.b32.xlu0 %v2333, 32
        %v2337 = vpop.permute.xlu0 %2336
        %v2339 = vmul.f32 %v2333, %v2337
        %2341 = vrot.lane.b32.xlu0 %v2339, 32
        %v2342 = vpop.permute.xlu0 %2341
        %v2344 = vadd.f32 %v2334, %v2342
        %v2345 = vtanh.pop %v2344
        %2347 = vrot.lane.b32.xlu0 %v2345, 32
        %v2348 = vpop.permute.xlu0 %2347
        %v2350 = vmul.f32 %v2333, %v2348
        %v2351 = vld [vmem:[#allocation3] sm:$0xff]
        %v2352 = vld [vmem:[#allocation3 + $0x8] sm:$0xff]
        %v2353 = vld [vmem:[#allocation3 + $0x10] sm:$0xff]
        %v2354 = vld [vmem:[#allocation3 + $0x18] sm:$0xff]
        %v2355 = vld [vmem:[#allocation3 + $0x20] sm:$0xff]
        %v2356 = vld [vmem:[#allocation3 + $0x28] sm:$0xff]
        %v2357 = vld [vmem:[#allocation3 + $0x30] sm:$0xff]
        %v2358 = vld [vmem:[#allocation3 + $0x38] sm:$0xff]
        %2360 = vrot.lane.b32.xlu0 %v2350, 64
        %v2361 = vpop.permute.xlu0 %2360
        %v2363 = vmul.f32 %v2351, %v2361
        %v2364 = vmul.f32 %v2352, %v2361
        %v2365 = vmul.f32 %v2353, %v2361
        %v2366 = vmul.f32 %v2354, %v2361
        %v2367 = vmul.f32 %v2355, %v2361
        %v2368 = vmul.f32 %v2356, %v2361
        %v2369 = vmul.f32 %v2357, %v2361
        %v2370 = vmul.f32 %v2358, %v2361
        %v2371 = vsel %vm388, %v2363, 0.0
        %2372 = vadd.xlane.f32.xlu0 %v2371
        %v2373 = vpop.xlane.xlu0 %2372
        %v2374 = vsel %vm388, %v2364, 0.0
        %2375 = vadd.xlane.f32.xlu0 %v2374
        %v2376 = vpop.xlane.xlu0 %2375
        %v2377 = vsel %vm388, %v2365, 0.0
        %2378 = vadd.xlane.f32.xlu0 %v2377
        %v2379 = vpop.xlane.xlu0 %2378
        %v2380 = vsel %vm388, %v2366, 0.0
        %2381 = vadd.xlane.f32.xlu0 %v2380
        %v2382 = vpop.xlane.xlu0 %2381
        %v2383 = vsel %vm388, %v2367, 0.0
        %2384 = vadd.xlane.f32.xlu0 %v2383
        %v2385 = vpop.xlane.xlu0 %2384
        %v2386 = vsel %vm388, %v2368, 0.0
        %2387 = vadd.xlane.f32.xlu0 %v2386
        %v2388 = vpop.xlane.xlu0 %2387
        %v2389 = vsel %vm388, %v2369, 0.0
        %2390 = vadd.xlane.f32.xlu0 %v2389
        %v2391 = vpop.xlane.xlu0 %2390
        %v2392 = vsel %vm388, %v2370, 0.0
        %2393 = vadd.xlane.f32.xlu0 %v2392
        %v2394 = vpop.xlane.xlu0 %2393
        %v2395 = vmax.f32 %v2373, %v2385
        %v2396 = vmax.f32 %v2376, %v2388
        %v2397 = vmax.f32 %v2379, %v2391
        %v2398 = vmax.f32 %v2382, %v2394
        %v2399 = vmax.f32 %v2395, %v2396
        %v2400 = vmax.f32 %v2397, %v2398
        %v2401 = vmax.f32 %v2399, %v2400
        %v2402 = vsub.f32 %v2373, %v2401
        %v2403 = vsub.f32 %v2376, %v2401
        %v2404 = vsub.f32 %v2379, %v2401
        %v2405 = vsub.f32 %v2382, %v2401
        %v2406 = vsub.f32 %v2385, %v2401
        %v2407 = vsub.f32 %v2388, %v2401
        %v2408 = vsub.f32 %v2391, %v2401
        %v2409 = vsub.f32 %v2394, %v2401
        %v2410 = vmul.f32 %v2402, 1.442695
        %v2411 = vpow.pop %v2410
        %v2412 = vmul.f32 %v2403, 1.442695
        %v2413 = vpow.pop %v2412
        %v2414 = vmul.f32 %v2404, 1.442695
        %v2415 = vpow.pop %v2414
        %v2416 = vmul.f32 %v2405, 1.442695
        %v2417 = vpow.pop %v2416
        %v2418 = vmul.f32 %v2406, 1.442695
        %v2419 = vpow.pop %v2418
        %v2420 = vmul.f32 %v2407, 1.442695
        %v2421 = vpow.pop %v2420
        %v2422 = vmul.f32 %v2408, 1.442695
        %v2423 = vpow.pop %v2422
        %v2424 = vmul.f32 %v2409, 1.442695
        %v2425 = vpow.pop %v2424
        %v2426 = vadd.f32 %v2411, %v2413
        %v2427 = vadd.f32 %v2426, %v2415
        %v2428 = vadd.f32 %v2427, %v2417
        %v2429 = vadd.f32 %v2428, %v2419
        %v2430 = vadd.f32 %v2429, %v2421
        %v2431 = vadd.f32 %v2430, %v2423
        %v2432 = vadd.f32 %v2431, %v2425
        %v2433 = vrcp.pop %v2432
        %v2434 = vmul.f32 %v2411, %v2433
        %v2435 = vmul.f32 %v2413, %v2433
        %v2436 = vmul.f32 %v2415, %v2433
        %v2437 = vmul.f32 %v2417, %v2433
        %v2438 = vmul.f32 %v2419, %v2433
        %v2439 = vmul.f32 %v2421, %v2433
        %v2440 = vmul.f32 %v2423, %v2433
        %v2441 = vmul.f32 %v2425, %v2433
        %v2442 = vld [vmem:[#allocation4] sm:$0xff]
        %v2443 = vld [vmem:[#allocation4 + $0x8] sm:$0xff]
        %v2444 = vld [vmem:[#allocation4 + $0x10] sm:$0xff]
        %v2445 = vld [vmem:[#allocation4 + $0x18] sm:$0xff]
        %v2446 = vld [vmem:[#allocation4 + $0x20] sm:$0xff]
        %v2447 = vld [vmem:[#allocation4 + $0x28] sm:$0xff]
        %v2448 = vld [vmem:[#allocation4 + $0x30] sm:$0xff]
        %v2449 = vld [vmem:[#allocation4 + $0x38] sm:$0xff]
        %v2450 = vmul.f32 %v2434, %v2442
        %v2451 = vmul.f32 %v2435, %v2443
        %v2452 = vmul.f32 %v2436, %v2444
        %v2453 = vmul.f32 %v2437, %v2445
        %v2454 = vmul.f32 %v2438, %v2446
        %v2455 = vmul.f32 %v2439, %v2447
        %v2456 = vmul.f32 %v2440, %v2448
        %v2457 = vmul.f32 %v2441, %v2449
        %v2458 = vadd.f32 %v2450, %v2451
        %v2459 = vadd.f32 %v2458, %v2452
        %v2460 = vadd.f32 %v2459, %v2453
        %v2461 = vadd.f32 %v2460, %v2454
        %v2462 = vadd.f32 %v2461, %v2455
        %v2463 = vadd.f32 %v2462, %v2456
        %v2464 = vadd.f32 %v2463, %v2457
        %v2465 = vld [vmem:[%s5] sm:$0xff]
        %v2466 = vld [vmem:[%s5 + $0x8] sm:$0xff]
        %v2467 = vld [vmem:[%s5 + $0x10] sm:$0xff]
        %v2468 = vld [vmem:[%s5 + $0x18] sm:$0xff]
        %v2469 = vsel %vm388, %v2361, 0
        %2471 = vmatprep.subr.mxu0 0.0
        %2472 = vmatpush1.msra.mxu0 0.0
        %2473 = vmatprep.subr.mxu0 0.0
        %2474 = vmatpush1.msra.mxu0 0.0
        %2475 = vmatprep.subr.mxu0 0.0
        %2476 = vmatpush1.msra.mxu0 0.0
        %2477 = vmatprep.subr.mxu0 0.0
        %2478 = vmatpush1.msra.mxu0 0.0
        %2479 = vmatprep.subr.mxu0 0.0
        %2480 = vmatpush1.msra.mxu0 0.0
        %2481 = vmatprep.subr.mxu0 0.0
        %2482 = vmatpush1.msra.mxu0 0.0
        %2483 = vmatprep.subr.mxu0 0.0
        %2484 = vmatpush1.msra.mxu0 0.0
        %2485 = vmatprep.subr.mxu0 0.0
        %2486 = vmatpush1.msra.mxu0 0.0
        %2487 = vmatprep.subr.mxu0 0.0
        %2488 = vmatpush1.msra.mxu0 0.0
        %2489 = vmatprep.subr.mxu0 0.0
        %2490 = vmatpush1.msra.mxu0 0.0
        %2491 = vmatprep.subr.mxu0 0.0
        %2492 = vmatpush1.msra.mxu0 0.0
        %2493 = vmatprep.subr.mxu0 0.0
        %2494 = vmatpush1.msra.mxu0 0.0
        %2495 = vmatprep.subr.mxu0 0.0
        %2496 = vmatpush1.msra.mxu0 %v2468
        %2497 = vmatprep.subr.mxu0 0.0
        %2498 = vmatpush1.msra.mxu0 %v2467
        %2499 = vmatprep.subr.mxu0 0.0
        %2500 = vmatpush1.msra.mxu0 %v2466
        %2501 = vmatprep.subr.mxu0 0.0
        %2502 = vmatpush1.msra.mxu0 %v2465
        %2503 = vmatprep.subr.mxu0 0.0
        %2504 = vmatpush2.msra.mxu0 0.0
        %2505 = vmatprep.subr.mxu0 0.0
        %2506 = vmatpush2.msra.mxu0 0.0
        %2507 = vmatprep.subr.mxu0 0.0
        %2508 = vmatpush2.msra.mxu0 0.0
        %2509 = vmatprep.subr.mxu0 0.0
        %2510 = vmatpush2.msra.mxu0 0.0
        %2511 = vmatprep.subr.mxu0 0.0
        %2512 = vmatpush2.msra.mxu0 0.0
        %2513 = vmatprep.subr.mxu0 0.0
        %2514 = vmatpush2.msra.mxu0 0.0
        %2515 = vmatprep.subr.mxu0 0.0
        %2516 = vmatpush2.msra.mxu0 0.0
        %2517 = vmatprep.subr.mxu0 0.0
        %2518 = vmatpush2.msra.mxu0 0.0
        %2519 = vmatprep.subr.mxu0 0.0
        %2520 = vmatpush2.msra.mxu0 0.0
        %2521 = vmatprep.subr.mxu0 0.0
        %2522 = vmatpush2.msra.mxu0 0.0
        %2523 = vmatprep.subr.mxu0 0.0
        %2524 = vmatpush2.msra.mxu0 0.0
        %2525 = vmatprep.subr.mxu0 0.0
        %2526 = vmatpush2.msra.mxu0 0.0
        %2527 = vmatprep.subr.mxu0 0.0
        %2528 = vmatpush2.msra.mxu0 0.0
        %2529 = vmatprep.subr.mxu0 0.0
        %2530 = vmatpush2.msra.mxu0 0.0
        %2531 = vmatprep.subr.mxu0 0.0
        %2532 = vmatpush2.msra.mxu0 0.0
        %2533 = vmatprep.subr.mxu0 0.0
        %2534 = vmatpush2.msra.mxu0 0.0
        %2535 = vmatprep.mubr.f32.mxu0 0.0
        %2536 = vmatmul.mubr.f32.gmra.mxu0 %v2469
        %v2537 = vpop.f32.mrf.mxu0
        %v2538 = vadd.f32 %v2464, %v2537
        %v2539 = vpop.f32.mrf.mxu0
        %2540 = vdwg.mxu0
        %v2541 = vld [vmem:[%s7] sm:$0x1]
        %v2543 = vlaneseq
        %v2544 = vshrl.u32 %v2543, 7
        %v2545 = vsub.s32 0, %v2544
        %v2546 = vrot.slane %v2541, %v2545
        %v2548 = vadd.f32 %v2538, %v2546
        %s2549 = scalar_lea.vmem %s366, 24 [#allocation6]
        %2550 = vst [vmem:[%s2549] sm:$0xff] %v2548
        %2551 = vmax.xlane.f32.xlu0 %v2548
        %v2552 = vpop.xlane.xlu0 %2551
        %vm2553 = vcmp.eq.f32.partialorder %v2548, %v2552
        %vm2554 = vmand %vm2553, %vm1879
        %v2555 = vsel %vm2554, %v368, 128
        %v2556 = vand.u32 %v2555, 65535
        %v2557 = vshra.s32 %v2555, 16
        %v2558 = vcvt.s32.f32 %v2556
        %v2559 = vcvt.s32.f32 %v2557
        %2560 = vmin.xlane.f32.xlu0 %v2559
        %v2561 = vpop.xlane.xlu0 %2560
        %vm2562 = vcmp.eq.f32.partialorder %v2559, %v2561
        %v2563 = vsel %vm2562, %v2558, inf
        %2564 = vmin.xlane.f32.xlu0 %v2563
        %v2565 = vpop.xlane.xlu0 %2564
        %v2566 = vcvt.f32.s32 %v2565
        %v2567 = vcvt.f32.s32 %v2561
        %v2568 = vshll.u32 %v2567, 16
        %v2569 = vadd.s32 %v2568, %v2566
        %vm2570 = vcmp.eq.s32.totalorder %v368, %v2569
        %v2571 = vsel %vm2570, 1, 0
        %v2572 = vcvt.s32.f32 %v2571
        %v2573 = vld [vmem:[%s4] sm:$0xff]
        %v2574 = vld [vmem:[%s4 + $0x8] sm:$0xff]
        %v2575 = vld [vmem:[%s4 + $0x10] sm:$0xff]
        %v2576 = vld [vmem:[%s4 + $0x18] sm:$0xff]
        %v2577 = vld [vmem:[%s4 + $0x20] sm:$0xff]
        %v2578 = vld [vmem:[%s4 + $0x28] sm:$0xff]
        %v2579 = vld [vmem:[%s4 + $0x30] sm:$0xff]
        %v2580 = vld [vmem:[%s4 + $0x38] sm:$0xff]
        %v2581 = vld [vmem:[%s4 + $0x40] sm:$0xff]
        %v2582 = vld [vmem:[%s4 + $0x48] sm:$0xff]
        %v2583 = vld [vmem:[%s4 + $0x50] sm:$0xff]
        %v2584 = vld [vmem:[%s4 + $0x58] sm:$0xff]
        %v2585 = vld [vmem:[%s4 + $0x60] sm:$0xff]
        %v2586 = vld [vmem:[%s4 + $0x68] sm:$0xff]
        %v2587 = vld [vmem:[%s4 + $0x70] sm:$0xff]
        %v2588 = vld [vmem:[%s4 + $0x78] sm:$0xff]
        %v2589 = vld [vmem:[%s4 + $0x80] sm:$0xff]
        %v2590 = vld [vmem:[%s4 + $0x88] sm:$0xff]
        %v2591 = vld [vmem:[%s4 + $0x90] sm:$0xff]
        %v2592 = vld [vmem:[%s4 + $0x98] sm:$0xff]
        %2593 = vmatprep.subr.mxu0 0.0
        %2594 = vmatpush1.msra.mxu0 %v2588
        %2595 = vmatprep.subr.mxu0 0.0
        %2596 = vmatpush1.msra.mxu0 %v2587
        %2597 = vmatprep.subr.mxu0 0.0
        %2598 = vmatpush1.msra.mxu0 %v2586
        %2599 = vmatprep.subr.mxu0 0.0
        %2600 = vmatpush1.msra.mxu0 %v2585
        %2601 = vmatprep.subr.mxu0 0.0
        %2602 = vmatpush1.msra.mxu0 %v2584
        %2603 = vmatprep.subr.mxu0 0.0
        %2604 = vmatpush1.msra.mxu0 %v2583
        %2605 = vmatprep.subr.mxu0 0.0
        %2606 = vmatpush1.msra.mxu0 %v2582
        %2607 = vmatprep.subr.mxu0 0.0
        %2608 = vmatpush1.msra.mxu0 %v2581
        %2609 = vmatprep.subr.mxu0 0.0
        %2610 = vmatpush1.msra.mxu0 %v2580
        %2611 = vmatprep.subr.mxu0 0.0
        %2612 = vmatpush1.msra.mxu0 %v2579
        %2613 = vmatprep.subr.mxu0 0.0
        %2614 = vmatpush1.msra.mxu0 %v2578
        %2615 = vmatprep.subr.mxu0 0.0
        %2616 = vmatpush1.msra.mxu0 %v2577
        %2617 = vmatprep.subr.mxu0 0.0
        %2618 = vmatpush1.msra.mxu0 %v2576
        %2619 = vmatprep.subr.mxu0 0.0
        %2620 = vmatpush1.msra.mxu0 %v2575
        %2621 = vmatprep.subr.mxu0 0.0
        %2622 = vmatpush1.msra.mxu0 %v2574
        %2623 = vmatprep.subr.mxu0 0.0
        %2624 = vmatpush1.msra.mxu0 %v2573
        %2625 = vmatprep.subr.mxu0 0.0
        %2626 = vmatpush2.msra.mxu0 0.0
        %2627 = vmatprep.subr.mxu0 0.0
        %2628 = vmatpush2.msra.mxu0 0.0
        %2629 = vmatprep.subr.mxu0 0.0
        %2630 = vmatpush2.msra.mxu0 0.0
        %2631 = vmatprep.subr.mxu0 0.0
        %2632 = vmatpush2.msra.mxu0 0.0
        %2633 = vmatprep.subr.mxu0 0.0
        %2634 = vmatpush2.msra.mxu0 0.0
        %2635 = vmatprep.subr.mxu0 0.0
        %2636 = vmatpush2.msra.mxu0 0.0
        %2637 = vmatprep.subr.mxu0 0.0
        %2638 = vmatpush2.msra.mxu0 0.0
        %2639 = vmatprep.subr.mxu0 0.0
        %2640 = vmatpush2.msra.mxu0 0.0
        %2641 = vmatprep.subr.mxu0 0.0
        %2642 = vmatpush2.msra.mxu0 0.0
        %2643 = vmatprep.subr.mxu0 0.0
        %2644 = vmatpush2.msra.mxu0 0.0
        %2645 = vmatprep.subr.mxu0 0.0
        %2646 = vmatpush2.msra.mxu0 0.0
        %2647 = vmatprep.subr.mxu0 0.0
        %2648 = vmatpush2.msra.mxu0 0.0
        %2649 = vmatprep.subr.mxu0 0.0
        %2650 = vmatpush2.msra.mxu0 %v2592
        %2651 = vmatprep.subr.mxu0 0.0
        %2652 = vmatpush2.msra.mxu0 %v2591
        %2653 = vmatprep.subr.mxu0 0.0
        %2654 = vmatpush2.msra.mxu0 %v2590
        %2655 = vmatprep.subr.mxu0 0.0
        %2656 = vmatpush2.msra.mxu0 %v2589
        %2657 = vmatprep.mubr.f32.mxu0 %v2469
        %2658 = vmatmul.mubr.f32.gmra.mxu0 %v2572
        %v2659 = vpop.f32.mrf.mxu0
        %v2660 = vadd.f32 0.0, %v2659
        %v2661 = vpop.f32.mrf.mxu0
        %2662 = vdwg.mxu0
        %v2663 = vxor.u32 %v2660, 2147483648
        %v2664 = vmul.f32 %v2663, 1.442695
        %v2665 = vpow.pop %v2664
        %v2666 = vadd.f32 %v2665, 1.0
        %v2667 = vrcp.pop %v2666
        %v2668 = vmul.f32 1.0, %v2667
        %v2669 = vtanh.pop %v2660
        %v2670 = vsel %vm605, %v2668, %v2669
        %v2671 = vmul.f32 %v2670, %v2344
        %2673 = vrot.lane.b32.xlu0 %v2670, 32
        %v2674 = vpop.permute.xlu0 %2673
        %v2676 = vmul.f32 %v2670, %v2674
        %2678 = vrot.lane.b32.xlu0 %v2676, 32
        %v2679 = vpop.permute.xlu0 %2678
        %v2681 = vadd.f32 %v2671, %v2679
        %v2682 = vtanh.pop %v2681
        %2684 = vrot.lane.b32.xlu0 %v2682, 32
        %v2685 = vpop.permute.xlu0 %2684
        %v2687 = vmul.f32 %v2670, %v2685
        %v2688 = vld [vmem:[#allocation3] sm:$0xff]
        %v2689 = vld [vmem:[#allocation3 + $0x8] sm:$0xff]
        %v2690 = vld [vmem:[#allocation3 + $0x10] sm:$0xff]
        %v2691 = vld [vmem:[#allocation3 + $0x18] sm:$0xff]
        %v2692 = vld [vmem:[#allocation3 + $0x20] sm:$0xff]
        %v2693 = vld [vmem:[#allocation3 + $0x28] sm:$0xff]
        %v2694 = vld [vmem:[#allocation3 + $0x30] sm:$0xff]
        %v2695 = vld [vmem:[#allocation3 + $0x38] sm:$0xff]
        %2697 = vrot.lane.b32.xlu0 %v2687, 64
        %v2698 = vpop.permute.xlu0 %2697
        %v2700 = vmul.f32 %v2688, %v2698
        %v2701 = vmul.f32 %v2689, %v2698
        %v2702 = vmul.f32 %v2690, %v2698
        %v2703 = vmul.f32 %v2691, %v2698
        %v2704 = vmul.f32 %v2692, %v2698
        %v2705 = vmul.f32 %v2693, %v2698
        %v2706 = vmul.f32 %v2694, %v2698
        %v2707 = vmul.f32 %v2695, %v2698
        %v2708 = vsel %vm388, %v2700, 0.0
        %2709 = vadd.xlane.f32.xlu0 %v2708
        %v2710 = vpop.xlane.xlu0 %2709
        %v2711 = vsel %vm388, %v2701, 0.0
        %2712 = vadd.xlane.f32.xlu0 %v2711
        %v2713 = vpop.xlane.xlu0 %2712
        %v2714 = vsel %vm388, %v2702, 0.0
        %2715 = vadd.xlane.f32.xlu0 %v2714
        %v2716 = vpop.xlane.xlu0 %2715
        %v2717 = vsel %vm388, %v2703, 0.0
        %2718 = vadd.xlane.f32.xlu0 %v2717
        %v2719 = vpop.xlane.xlu0 %2718
        %v2720 = vsel %vm388, %v2704, 0.0
        %2721 = vadd.xlane.f32.xlu0 %v2720
        %v2722 = vpop.xlane.xlu0 %2721
        %v2723 = vsel %vm388, %v2705, 0.0
        %2724 = vadd.xlane.f32.xlu0 %v2723
        %v2725 = vpop.xlane.xlu0 %2724
        %v2726 = vsel %vm388, %v2706, 0.0
        %2727 = vadd.xlane.f32.xlu0 %v2726
        %v2728 = vpop.xlane.xlu0 %2727
        %v2729 = vsel %vm388, %v2707, 0.0
        %2730 = vadd.xlane.f32.xlu0 %v2729
        %v2731 = vpop.xlane.xlu0 %2730
        %v2732 = vmax.f32 %v2710, %v2722
        %v2733 = vmax.f32 %v2713, %v2725
        %v2734 = vmax.f32 %v2716, %v2728
        %v2735 = vmax.f32 %v2719, %v2731
        %v2736 = vmax.f32 %v2732, %v2733
        %v2737 = vmax.f32 %v2734, %v2735
        %v2738 = vmax.f32 %v2736, %v2737
        %v2739 = vsub.f32 %v2710, %v2738
        %v2740 = vsub.f32 %v2713, %v2738
        %v2741 = vsub.f32 %v2716, %v2738
        %v2742 = vsub.f32 %v2719, %v2738
        %v2743 = vsub.f32 %v2722, %v2738
        %v2744 = vsub.f32 %v2725, %v2738
        %v2745 = vsub.f32 %v2728, %v2738
        %v2746 = vsub.f32 %v2731, %v2738
        %v2747 = vmul.f32 %v2739, 1.442695
        %v2748 = vpow.pop %v2747
        %v2749 = vmul.f32 %v2740, 1.442695
        %v2750 = vpow.pop %v2749
        %v2751 = vmul.f32 %v2741, 1.442695
        %v2752 = vpow.pop %v2751
        %v2753 = vmul.f32 %v2742, 1.442695
        %v2754 = vpow.pop %v2753
        %v2755 = vmul.f32 %v2743, 1.442695
        %v2756 = vpow.pop %v2755
        %v2757 = vmul.f32 %v2744, 1.442695
        %v2758 = vpow.pop %v2757
        %v2759 = vmul.f32 %v2745, 1.442695
        %v2760 = vpow.pop %v2759
        %v2761 = vmul.f32 %v2746, 1.442695
        %v2762 = vpow.pop %v2761
        %v2763 = vadd.f32 %v2748, %v2750
        %v2764 = vadd.f32 %v2763, %v2752
        %v2765 = vadd.f32 %v2764, %v2754
        %v2766 = vadd.f32 %v2765, %v2756
        %v2767 = vadd.f32 %v2766, %v2758
        %v2768 = vadd.f32 %v2767, %v2760
        %v2769 = vadd.f32 %v2768, %v2762
        %v2770 = vrcp.pop %v2769
        %v2771 = vmul.f32 %v2748, %v2770
        %v2772 = vmul.f32 %v2750, %v2770
        %v2773 = vmul.f32 %v2752, %v2770
        %v2774 = vmul.f32 %v2754, %v2770
        %v2775 = vmul.f32 %v2756, %v2770
        %v2776 = vmul.f32 %v2758, %v2770
        %v2777 = vmul.f32 %v2760, %v2770
        %v2778 = vmul.f32 %v2762, %v2770
        %v2779 = vld [vmem:[#allocation4] sm:$0xff]
        %v2780 = vld [vmem:[#allocation4 + $0x8] sm:$0xff]
        %v2781 = vld [vmem:[#allocation4 + $0x10] sm:$0xff]
        %v2782 = vld [vmem:[#allocation4 + $0x18] sm:$0xff]
        %v2783 = vld [vmem:[#allocation4 + $0x20] sm:$0xff]
        %v2784 = vld [vmem:[#allocation4 + $0x28] sm:$0xff]
        %v2785 = vld [vmem:[#allocation4 + $0x30] sm:$0xff]
        %v2786 = vld [vmem:[#allocation4 + $0x38] sm:$0xff]
        %v2787 = vmul.f32 %v2771, %v2779
        %v2788 = vmul.f32 %v2772, %v2780
        %v2789 = vmul.f32 %v2773, %v2781
        %v2790 = vmul.f32 %v2774, %v2782
        %v2791 = vmul.f32 %v2775, %v2783
        %v2792 = vmul.f32 %v2776, %v2784
        %v2793 = vmul.f32 %v2777, %v2785
        %v2794 = vmul.f32 %v2778, %v2786
        %v2795 = vadd.f32 %v2787, %v2788
        %v2796 = vadd.f32 %v2795, %v2789
        %v2797 = vadd.f32 %v2796, %v2790
        %v2798 = vadd.f32 %v2797, %v2791
        %v2799 = vadd.f32 %v2798, %v2792
        %v2800 = vadd.f32 %v2799, %v2793
        %v2801 = vadd.f32 %v2800, %v2794
        %v2802 = vld [vmem:[%s5] sm:$0xff]
        %v2803 = vld [vmem:[%s5 + $0x8] sm:$0xff]
        %v2804 = vld [vmem:[%s5 + $0x10] sm:$0xff]
        %v2805 = vld [vmem:[%s5 + $0x18] sm:$0xff]
        %v2806 = vsel %vm388, %v2698, 0
        %2808 = vmatprep.subr.mxu0 0.0
        %2809 = vmatpush1.msra.mxu0 0.0
        %2810 = vmatprep.subr.mxu0 0.0
        %2811 = vmatpush1.msra.mxu0 0.0
        %2812 = vmatprep.subr.mxu0 0.0
        %2813 = vmatpush1.msra.mxu0 0.0
        %2814 = vmatprep.subr.mxu0 0.0
        %2815 = vmatpush1.msra.mxu0 0.0
        %2816 = vmatprep.subr.mxu0 0.0
        %2817 = vmatpush1.msra.mxu0 0.0
        %2818 = vmatprep.subr.mxu0 0.0
        %2819 = vmatpush1.msra.mxu0 0.0
        %2820 = vmatprep.subr.mxu0 0.0
        %2821 = vmatpush1.msra.mxu0 0.0
        %2822 = vmatprep.subr.mxu0 0.0
        %2823 = vmatpush1.msra.mxu0 0.0
        %2824 = vmatprep.subr.mxu0 0.0
        %2825 = vmatpush1.msra.mxu0 0.0
        %2826 = vmatprep.subr.mxu0 0.0
        %2827 = vmatpush1.msra.mxu0 0.0
        %2828 = vmatprep.subr.mxu0 0.0
        %2829 = vmatpush1.msra.mxu0 0.0
        %2830 = vmatprep.subr.mxu0 0.0
        %2831 = vmatpush1.msra.mxu0 0.0
        %2832 = vmatprep.subr.mxu0 0.0
        %2833 = vmatpush1.msra.mxu0 %v2805
        %2834 = vmatprep.subr.mxu0 0.0
        %2835 = vmatpush1.msra.mxu0 %v2804
        %2836 = vmatprep.subr.mxu0 0.0
        %2837 = vmatpush1.msra.mxu0 %v2803
        %2838 = vmatprep.subr.mxu0 0.0
        %2839 = vmatpush1.msra.mxu0 %v2802
        %2840 = vmatprep.subr.mxu0 0.0
        %2841 = vmatpush2.msra.mxu0 0.0
        %2842 = vmatprep.subr.mxu0 0.0
        %2843 = vmatpush2.msra.mxu0 0.0
        %2844 = vmatprep.subr.mxu0 0.0
        %2845 = vmatpush2.msra.mxu0 0.0
        %2846 = vmatprep.subr.mxu0 0.0
        %2847 = vmatpush2.msra.mxu0 0.0
        %2848 = vmatprep.subr.mxu0 0.0
        %2849 = vmatpush2.msra.mxu0 0.0
        %2850 = vmatprep.subr.mxu0 0.0
        %2851 = vmatpush2.msra.mxu0 0.0
        %2852 = vmatprep.subr.mxu0 0.0
        %2853 = vmatpush2.msra.mxu0 0.0
        %2854 = vmatprep.subr.mxu0 0.0
        %2855 = vmatpush2.msra.mxu0 0.0
        %2856 = vmatprep.subr.mxu0 0.0
        %2857 = vmatpush2.msra.mxu0 0.0
        %2858 = vmatprep.subr.mxu0 0.0
        %2859 = vmatpush2.msra.mxu0 0.0
        %2860 = vmatprep.subr.mxu0 0.0
        %2861 = vmatpush2.msra.mxu0 0.0
        %2862 = vmatprep.subr.mxu0 0.0
        %2863 = vmatpush2.msra.mxu0 0.0
        %2864 = vmatprep.subr.mxu0 0.0
        %2865 = vmatpush2.msra.mxu0 0.0
        %2866 = vmatprep.subr.mxu0 0.0
        %2867 = vmatpush2.msra.mxu0 0.0
        %2868 = vmatprep.subr.mxu0 0.0
        %2869 = vmatpush2.msra.mxu0 0.0
        %2870 = vmatprep.subr.mxu0 0.0
        %2871 = vmatpush2.msra.mxu0 0.0
        %2872 = vmatprep.mubr.f32.mxu0 0.0
        %2873 = vmatmul.mubr.f32.gmra.mxu0 %v2806
        %v2874 = vpop.f32.mrf.mxu0
        %v2875 = vadd.f32 %v2801, %v2874
        %v2876 = vpop.f32.mrf.mxu0
        %2877 = vdwg.mxu0
        %v2878 = vld [vmem:[%s7] sm:$0x1]
        %v2880 = vlaneseq
        %v2881 = vshrl.u32 %v2880, 7
        %v2882 = vsub.s32 0, %v2881
        %v2883 = vrot.slane %v2878, %v2882
        %v2885 = vadd.f32 %v2875, %v2883
        %s2886 = scalar_lea.vmem %s366, 32 [#allocation6]
        %2887 = vst [vmem:[%s2886] sm:$0xff] %v2885
        %2888 = vmax.xlane.f32.xlu0 %v2885
        %v2889 = vpop.xlane.xlu0 %2888
        %vm2890 = vcmp.eq.f32.partialorder %v2885, %v2889
        %vm2891 = vmand %vm2890, %vm1879
        %v2892 = vsel %vm2891, %v368, 128
        %v2893 = vand.u32 %v2892, 65535
        %v2894 = vshra.s32 %v2892, 16
        %v2895 = vcvt.s32.f32 %v2893
        %v2896 = vcvt.s32.f32 %v2894
        %2897 = vmin.xlane.f32.xlu0 %v2896
        %v2898 = vpop.xlane.xlu0 %2897
        %vm2899 = vcmp.eq.f32.partialorder %v2896, %v2898
        %v2900 = vsel %vm2899, %v2895, inf
        %2901 = vmin.xlane.f32.xlu0 %v2900
        %v2902 = vpop.xlane.xlu0 %2901
        %v2903 = vcvt.f32.s32 %v2902
        %v2904 = vcvt.f32.s32 %v2898
        %v2905 = vshll.u32 %v2904, 16
        %v2906 = vadd.s32 %v2905, %v2903
        %vm2907 = vcmp.eq.s32.totalorder %v368, %v2906
        %v2908 = vsel %vm2907, 1, 0
        %v2909 = vcvt.s32.f32 %v2908
        %v2910 = vld [vmem:[%s4] sm:$0xff]
        %v2911 = vld [vmem:[%s4 + $0x8] sm:$0xff]
        %v2912 = vld [vmem:[%s4 + $0x10] sm:$0xff]
        %v2913 = vld [vmem:[%s4 + $0x18] sm:$0xff]
        %v2914 = vld [vmem:[%s4 + $0x20] sm:$0xff]
        %v2915 = vld [vmem:[%s4 + $0x28] sm:$0xff]
        %v2916 = vld [vmem:[%s4 + $0x30] sm:$0xff]
        %v2917 = vld [vmem:[%s4 + $0x38] sm:$0xff]
        %v2918 = vld [vmem:[%s4 + $0x40] sm:$0xff]
        %v2919 = vld [vmem:[%s4 + $0x48] sm:$0xff]
        %v2920 = vld [vmem:[%s4 + $0x50] sm:$0xff]
        %v2921 = vld [vmem:[%s4 + $0x58] sm:$0xff]
        %v2922 = vld [vmem:[%s4 + $0x60] sm:$0xff]
        %v2923 = vld [vmem:[%s4 + $0x68] sm:$0xff]
        %v2924 = vld [vmem:[%s4 + $0x70] sm:$0xff]
        %v2925 = vld [vmem:[%s4 + $0x78] sm:$0xff]
        %v2926 = vld [vmem:[%s4 + $0x80] sm:$0xff]
        %v2927 = vld [vmem:[%s4 + $0x88] sm:$0xff]
        %v2928 = vld [vmem:[%s4 + $0x90] sm:$0xff]
        %v2929 = vld [vmem:[%s4 + $0x98] sm:$0xff]
        %2930 = vmatprep.subr.mxu0 0.0
        %2931 = vmatpush1.msra.mxu0 %v2925
        %2932 = vmatprep.subr.mxu0 0.0
        %2933 = vmatpush1.msra.mxu0 %v2924
        %2934 = vmatprep.subr.mxu0 0.0
        %2935 = vmatpush1.msra.mxu0 %v2923
        %2936 = vmatprep.subr.mxu0 0.0
        %2937 = vmatpush1.msra.mxu0 %v2922
        %2938 = vmatprep.subr.mxu0 0.0
        %2939 = vmatpush1.msra.mxu0 %v2921
        %2940 = vmatprep.subr.mxu0 0.0
        %2941 = vmatpush1.msra.mxu0 %v2920
        %2942 = vmatprep.subr.mxu0 0.0
        %2943 = vmatpush1.msra.mxu0 %v2919
        %2944 = vmatprep.subr.mxu0 0.0
        %2945 = vmatpush1.msra.mxu0 %v2918
        %2946 = vmatprep.subr.mxu0 0.0
        %2947 = vmatpush1.msra.mxu0 %v2917
        %2948 = vmatprep.subr.mxu0 0.0
        %2949 = vmatpush1.msra.mxu0 %v2916
        %2950 = vmatprep.subr.mxu0 0.0
        %2951 = vmatpush1.msra.mxu0 %v2915
        %2952 = vmatprep.subr.mxu0 0.0
        %2953 = vmatpush1.msra.mxu0 %v2914
        %2954 = vmatprep.subr.mxu0 0.0
        %2955 = vmatpush1.msra.mxu0 %v2913
        %2956 = vmatprep.subr.mxu0 0.0
        %2957 = vmatpush1.msra.mxu0 %v2912
        %2958 = vmatprep.subr.mxu0 0.0
        %2959 = vmatpush1.msra.mxu0 %v2911
        %2960 = vmatprep.subr.mxu0 0.0
        %2961 = vmatpush1.msra.mxu0 %v2910
        %2962 = vmatprep.subr.mxu0 0.0
        %2963 = vmatpush2.msra.mxu0 0.0
        %2964 = vmatprep.subr.mxu0 0.0
        %2965 = vmatpush2.msra.mxu0 0.0
        %2966 = vmatprep.subr.mxu0 0.0
        %2967 = vmatpush2.msra.mxu0 0.0
        %2968 = vmatprep.subr.mxu0 0.0
        %2969 = vmatpush2.msra.mxu0 0.0
        %2970 = vmatprep.subr.mxu0 0.0
        %2971 = vmatpush2.msra.mxu0 0.0
        %2972 = vmatprep.subr.mxu0 0.0
        %2973 = vmatpush2.msra.mxu0 0.0
        %2974 = vmatprep.subr.mxu0 0.0
        %2975 = vmatpush2.msra.mxu0 0.0
        %2976 = vmatprep.subr.mxu0 0.0
        %2977 = vmatpush2.msra.mxu0 0.0
        %2978 = vmatprep.subr.mxu0 0.0
        %2979 = vmatpush2.msra.mxu0 0.0
        %2980 = vmatprep.subr.mxu0 0.0
        %2981 = vmatpush2.msra.mxu0 0.0
        %2982 = vmatprep.subr.mxu0 0.0
        %2983 = vmatpush2.msra.mxu0 0.0
        %2984 = vmatprep.subr.mxu0 0.0
        %2985 = vmatpush2.msra.mxu0 0.0
        %2986 = vmatprep.subr.mxu0 0.0
        %2987 = vmatpush2.msra.mxu0 %v2929
        %2988 = vmatprep.subr.mxu0 0.0
        %2989 = vmatpush2.msra.mxu0 %v2928
        %2990 = vmatprep.subr.mxu0 0.0
        %2991 = vmatpush2.msra.mxu0 %v2927
        %2992 = vmatprep.subr.mxu0 0.0
        %2993 = vmatpush2.msra.mxu0 %v2926
        %2994 = vmatprep.mubr.f32.mxu0 %v2806
        %2995 = vmatmul.mubr.f32.gmra.mxu0 %v2909
        %v2996 = vpop.f32.mrf.mxu0
        %v2997 = vadd.f32 0.0, %v2996
        %v2998 = vpop.f32.mrf.mxu0
        %2999 = vdwg.mxu0
        %v3000 = vxor.u32 %v2997, 2147483648
        %v3001 = vmul.f32 %v3000, 1.442695
        %v3002 = vpow.pop %v3001
        %v3003 = vadd.f32 %v3002, 1.0
        %v3004 = vrcp.pop %v3003
        %v3005 = vmul.f32 1.0, %v3004
        %v3006 = vtanh.pop %v2997
        %v3007 = vsel %vm605, %v3005, %v3006
        %v3008 = vmul.f32 %v3007, %v2681
        %3010 = vrot.lane.b32.xlu0 %v3007, 32
        %v3011 = vpop.permute.xlu0 %3010
        %v3013 = vmul.f32 %v3007, %v3011
        %3015 = vrot.lane.b32.xlu0 %v3013, 32
        %v3016 = vpop.permute.xlu0 %3015
        %v3018 = vadd.f32 %v3008, %v3016
        %v3019 = vtanh.pop %v3018
        %3021 = vrot.lane.b32.xlu0 %v3019, 32
        %v3022 = vpop.permute.xlu0 %3021
        %v3024 = vmul.f32 %v3007, %v3022
        %v3025 = vld [vmem:[#allocation3] sm:$0xff]
        %v3026 = vld [vmem:[#allocation3 + $0x8] sm:$0xff]
        %v3027 = vld [vmem:[#allocation3 + $0x10] sm:$0xff]
        %v3028 = vld [vmem:[#allocation3 + $0x18] sm:$0xff]
        %v3029 = vld [vmem:[#allocation3 + $0x20] sm:$0xff]
        %v3030 = vld [vmem:[#allocation3 + $0x28] sm:$0xff]
        %v3031 = vld [vmem:[#allocation3 + $0x30] sm:$0xff]
        %v3032 = vld [vmem:[#allocation3 + $0x38] sm:$0xff]
        %3034 = vrot.lane.b32.xlu0 %v3024, 64
        %v3035 = vpop.permute.xlu0 %3034
        %v3037 = vmul.f32 %v3025, %v3035
        %v3038 = vmul.f32 %v3026, %v3035
        %v3039 = vmul.f32 %v3027, %v3035
        %v3040 = vmul.f32 %v3028, %v3035
        %v3041 = vmul.f32 %v3029, %v3035
        %v3042 = vmul.f32 %v3030, %v3035
        %v3043 = vmul.f32 %v3031, %v3035
        %v3044 = vmul.f32 %v3032, %v3035
        %v3045 = vsel %vm388, %v3037, 0.0
        %3046 = vadd.xlane.f32.xlu0 %v3045
        %v3047 = vpop.xlane.xlu0 %3046
        %v3048 = vsel %vm388, %v3038, 0.0
        %3049 = vadd.xlane.f32.xlu0 %v3048
        %v3050 = vpop.xlane.xlu0 %3049
        %v3051 = vsel %vm388, %v3039, 0.0
        %3052 = vadd.xlane.f32.xlu0 %v3051
        %v3053 = vpop.xlane.xlu0 %3052
        %v3054 = vsel %vm388, %v3040, 0.0
        %3055 = vadd.xlane.f32.xlu0 %v3054
        %v3056 = vpop.xlane.xlu0 %3055
        %v3057 = vsel %vm388, %v3041, 0.0
        %3058 = vadd.xlane.f32.xlu0 %v3057
        %v3059 = vpop.xlane.xlu0 %3058
        %v3060 = vsel %vm388, %v3042, 0.0
        %3061 = vadd.xlane.f32.xlu0 %v3060
        %v3062 = vpop.xlane.xlu0 %3061
        %v3063 = vsel %vm388, %v3043, 0.0
        %3064 = vadd.xlane.f32.xlu0 %v3063
        %v3065 = vpop.xlane.xlu0 %3064
        %v3066 = vsel %vm388, %v3044, 0.0
        %3067 = vadd.xlane.f32.xlu0 %v3066
        %v3068 = vpop.xlane.xlu0 %3067
        %v3069 = vmax.f32 %v3047, %v3059
        %v3070 = vmax.f32 %v3050, %v3062
        %v3071 = vmax.f32 %v3053, %v3065
        %v3072 = vmax.f32 %v3056, %v3068
        %v3073 = vmax.f32 %v3069, %v3070
        %v3074 = vmax.f32 %v3071, %v3072
        %v3075 = vmax.f32 %v3073, %v3074
        %v3076 = vsub.f32 %v3047, %v3075
        %v3077 = vsub.f32 %v3050, %v3075
        %v3078 = vsub.f32 %v3053, %v3075
        %v3079 = vsub.f32 %v3056, %v3075
        %v3080 = vsub.f32 %v3059, %v3075
        %v3081 = vsub.f32 %v3062, %v3075
        %v3082 = vsub.f32 %v3065, %v3075
        %v3083 = vsub.f32 %v3068, %v3075
        %v3084 = vmul.f32 %v3076, 1.442695
        %v3085 = vpow.pop %v3084
        %v3086 = vmul.f32 %v3077, 1.442695
        %v3087 = vpow.pop %v3086
        %v3088 = vmul.f32 %v3078, 1.442695
        %v3089 = vpow.pop %v3088
        %v3090 = vmul.f32 %v3079, 1.442695
        %v3091 = vpow.pop %v3090
        %v3092 = vmul.f32 %v3080, 1.442695
        %v3093 = vpow.pop %v3092
        %v3094 = vmul.f32 %v3081, 1.442695
        %v3095 = vpow.pop %v3094
        %v3096 = vmul.f32 %v3082, 1.442695
        %v3097 = vpow.pop %v3096
        %v3098 = vmul.f32 %v3083, 1.442695
        %v3099 = vpow.pop %v3098
        %v3100 = vadd.f32 %v3085, %v3087
        %v3101 = vadd.f32 %v3100, %v3089
        %v3102 = vadd.f32 %v3101, %v3091
        %v3103 = vadd.f32 %v3102, %v3093
        %v3104 = vadd.f32 %v3103, %v3095
        %v3105 = vadd.f32 %v3104, %v3097
        %v3106 = vadd.f32 %v3105, %v3099
        %v3107 = vrcp.pop %v3106
        %v3108 = vmul.f32 %v3085, %v3107
        %v3109 = vmul.f32 %v3087, %v3107
        %v3110 = vmul.f32 %v3089, %v3107
        %v3111 = vmul.f32 %v3091, %v3107
        %v3112 = vmul.f32 %v3093, %v3107
        %v3113 = vmul.f32 %v3095, %v3107
        %v3114 = vmul.f32 %v3097, %v3107
        %v3115 = vmul.f32 %v3099, %v3107
        %v3116 = vld [vmem:[#allocation4] sm:$0xff]
        %v3117 = vld [vmem:[#allocation4 + $0x8] sm:$0xff]
        %v3118 = vld [vmem:[#allocation4 + $0x10] sm:$0xff]
        %v3119 = vld [vmem:[#allocation4 + $0x18] sm:$0xff]
        %v3120 = vld [vmem:[#allocation4 + $0x20] sm:$0xff]
        %v3121 = vld [vmem:[#allocation4 + $0x28] sm:$0xff]
        %v3122 = vld [vmem:[#allocation4 + $0x30] sm:$0xff]
        %v3123 = vld [vmem:[#allocation4 + $0x38] sm:$0xff]
        %v3124 = vmul.f32 %v3108, %v3116
        %v3125 = vmul.f32 %v3109, %v3117
        %v3126 = vmul.f32 %v3110, %v3118
        %v3127 = vmul.f32 %v3111, %v3119
        %v3128 = vmul.f32 %v3112, %v3120
        %v3129 = vmul.f32 %v3113, %v3121
        %v3130 = vmul.f32 %v3114, %v3122
        %v3131 = vmul.f32 %v3115, %v3123
        %v3132 = vadd.f32 %v3124, %v3125
        %v3133 = vadd.f32 %v3132, %v3126
        %v3134 = vadd.f32 %v3133, %v3127
        %v3135 = vadd.f32 %v3134, %v3128
        %v3136 = vadd.f32 %v3135, %v3129
        %v3137 = vadd.f32 %v3136, %v3130
        %v3138 = vadd.f32 %v3137, %v3131
        %v3139 = vld [vmem:[%s5] sm:$0xff]
        %v3140 = vld [vmem:[%s5 + $0x8] sm:$0xff]
        %v3141 = vld [vmem:[%s5 + $0x10] sm:$0xff]
        %v3142 = vld [vmem:[%s5 + $0x18] sm:$0xff]
        %v3143 = vsel %vm388, %v3035, 0
        %3145 = vmatprep.subr.mxu0 0.0
        %3146 = vmatpush1.msra.mxu0 0.0
        %3147 = vmatprep.subr.mxu0 0.0
        %3148 = vmatpush1.msra.mxu0 0.0
        %3149 = vmatprep.subr.mxu0 0.0
        %3150 = vmatpush1.msra.mxu0 0.0
        %3151 = vmatprep.subr.mxu0 0.0
        %3152 = vmatpush1.msra.mxu0 0.0
        %3153 = vmatprep.subr.mxu0 0.0
        %3154 = vmatpush1.msra.mxu0 0.0
        %3155 = vmatprep.subr.mxu0 0.0
        %3156 = vmatpush1.msra.mxu0 0.0
        %3157 = vmatprep.subr.mxu0 0.0
        %3158 = vmatpush1.msra.mxu0 0.0
        %3159 = vmatprep.subr.mxu0 0.0
        %3160 = vmatpush1.msra.mxu0 0.0
        %3161 = vmatprep.subr.mxu0 0.0
        %3162 = vmatpush1.msra.mxu0 0.0
        %3163 = vmatprep.subr.mxu0 0.0
        %3164 = vmatpush1.msra.mxu0 0.0
        %3165 = vmatprep.subr.mxu0 0.0
        %3166 = vmatpush1.msra.mxu0 0.0
        %3167 = vmatprep.subr.mxu0 0.0
        %3168 = vmatpush1.msra.mxu0 0.0
        %3169 = vmatprep.subr.mxu0 0.0
        %3170 = vmatpush1.msra.mxu0 %v3142
        %3171 = vmatprep.subr.mxu0 0.0
        %3172 = vmatpush1.msra.mxu0 %v3141
        %3173 = vmatprep.subr.mxu0 0.0
        %3174 = vmatpush1.msra.mxu0 %v3140
        %3175 = vmatprep.subr.mxu0 0.0
        %3176 = vmatpush1.msra.mxu0 %v3139
        %3177 = vmatprep.subr.mxu0 0.0
        %3178 = vmatpush2.msra.mxu0 0.0
        %3179 = vmatprep.subr.mxu0 0.0
        %3180 = vmatpush2.msra.mxu0 0.0
        %3181 = vmatprep.subr.mxu0 0.0
        %3182 = vmatpush2.msra.mxu0 0.0
        %3183 = vmatprep.subr.mxu0 0.0
        %3184 = vmatpush2.msra.mxu0 0.0
        %3185 = vmatprep.subr.mxu0 0.0
        %3186 = vmatpush2.msra.mxu0 0.0
        %3187 = vmatprep.subr.mxu0 0.0
        %3188 = vmatpush2.msra.mxu0 0.0
        %3189 = vmatprep.subr.mxu0 0.0
        %3190 = vmatpush2.msra.mxu0 0.0
        %3191 = vmatprep.subr.mxu0 0.0
        %3192 = vmatpush2.msra.mxu0 0.0
        %3193 = vmatprep.subr.mxu0 0.0
        %3194 = vmatpush2.msra.mxu0 0.0
        %3195 = vmatprep.subr.mxu0 0.0
        %3196 = vmatpush2.msra.mxu0 0.0
        %3197 = vmatprep.subr.mxu0 0.0
        %3198 = vmatpush2.msra.mxu0 0.0
        %3199 = vmatprep.subr.mxu0 0.0
        %3200 = vmatpush2.msra.mxu0 0.0
        %3201 = vmatprep.subr.mxu0 0.0
        %3202 = vmatpush2.msra.mxu0 0.0
        %3203 = vmatprep.subr.mxu0 0.0
        %3204 = vmatpush2.msra.mxu0 0.0
        %3205 = vmatprep.subr.mxu0 0.0
        %3206 = vmatpush2.msra.mxu0 0.0
        %3207 = vmatprep.subr.mxu0 0.0
        %3208 = vmatpush2.msra.mxu0 0.0
        %3209 = vmatprep.mubr.f32.mxu0 0.0
        %3210 = vmatmul.mubr.f32.gmra.mxu0 %v3143
        %v3211 = vpop.f32.mrf.mxu0
        %v3212 = vadd.f32 %v3138, %v3211
        %v3213 = vpop.f32.mrf.mxu0
        %3214 = vdwg.mxu0
        %v3215 = vld [vmem:[%s7] sm:$0x1]
        %v3217 = vlaneseq
        %v3218 = vshrl.u32 %v3217, 7
        %v3219 = vsub.s32 0, %v3218
        %v3220 = vrot.slane %v3215, %v3219
        %v3222 = vadd.f32 %v3212, %v3220
        %s3223 = scalar_lea.vmem %s366, 40 [#allocation6]
        %3224 = vst [vmem:[%s3223] sm:$0xff] %v3222
        %3225 = vmax.xlane.f32.xlu0 %v3222
        %v3226 = vpop.xlane.xlu0 %3225
        %vm3227 = vcmp.eq.f32.partialorder %v3222, %v3226
        %vm3228 = vmand %vm3227, %vm1879
        %v3229 = vsel %vm3228, %v368, 128
        %v3230 = vand.u32 %v3229, 65535
        %v3231 = vshra.s32 %v3229, 16
        %v3232 = vcvt.s32.f32 %v3230
        %v3233 = vcvt.s32.f32 %v3231
        %3234 = vmin.xlane.f32.xlu0 %v3233
        %v3235 = vpop.xlane.xlu0 %3234
        %vm3236 = vcmp.eq.f32.partialorder %v3233, %v3235
        %v3237 = vsel %vm3236, %v3232, inf
        %3238 = vmin.xlane.f32.xlu0 %v3237
        %v3239 = vpop.xlane.xlu0 %3238
        %v3240 = vcvt.f32.s32 %v3239
        %v3241 = vcvt.f32.s32 %v3235
        %v3242 = vshll.u32 %v3241, 16
        %v3243 = vadd.s32 %v3242, %v3240
        %vm3244 = vcmp.eq.s32.totalorder %v368, %v3243
        %v3245 = vsel %vm3244, 1, 0
        %v3246 = vcvt.s32.f32 %v3245
        %v3247 = vld [vmem:[%s4] sm:$0xff]
        %v3248 = vld [vmem:[%s4 + $0x8] sm:$0xff]
        %v3249 = vld [vmem:[%s4 + $0x10] sm:$0xff]
        %v3250 = vld [vmem:[%s4 + $0x18] sm:$0xff]
        %v3251 = vld [vmem:[%s4 + $0x20] sm:$0xff]
        %v3252 = vld [vmem:[%s4 + $0x28] sm:$0xff]
        %v3253 = vld [vmem:[%s4 + $0x30] sm:$0xff]
        %v3254 = vld [vmem:[%s4 + $0x38] sm:$0xff]
        %v3255 = vld [vmem:[%s4 + $0x40] sm:$0xff]
        %v3256 = vld [vmem:[%s4 + $0x48] sm:$0xff]
        %v3257 = vld [vmem:[%s4 + $0x50] sm:$0xff]
        %v3258 = vld [vmem:[%s4 + $0x58] sm:$0xff]
        %v3259 = vld [vmem:[%s4 + $0x60] sm:$0xff]
        %v3260 = vld [vmem:[%s4 + $0x68] sm:$0xff]
        %v3261 = vld [vmem:[%s4 + $0x70] sm:$0xff]
        %v3262 = vld [vmem:[%s4 + $0x78] sm:$0xff]
        %v3263 = vld [vmem:[%s4 + $0x80] sm:$0xff]
        %v3264 = vld [vmem:[%s4 + $0x88] sm:$0xff]
        %v3265 = vld [vmem:[%s4 + $0x90] sm:$0xff]
        %v3266 = vld [vmem:[%s4 + $0x98] sm:$0xff]
        %3267 = vmatprep.subr.mxu0 0.0
        %3268 = vmatpush1.msra.mxu0 %v3262
        %3269 = vmatprep.subr.mxu0 0.0
        %3270 = vmatpush1.msra.mxu0 %v3261
        %3271 = vmatprep.subr.mxu0 0.0
        %3272 = vmatpush1.msra.mxu0 %v3260
        %3273 = vmatprep.subr.mxu0 0.0
        %3274 = vmatpush1.msra.mxu0 %v3259
        %3275 = vmatprep.subr.mxu0 0.0
        %3276 = vmatpush1.msra.mxu0 %v3258
        %3277 = vmatprep.subr.mxu0 0.0
        %3278 = vmatpush1.msra.mxu0 %v3257
        %3279 = vmatprep.subr.mxu0 0.0
        %3280 = vmatpush1.msra.mxu0 %v3256
        %3281 = vmatprep.subr.mxu0 0.0
        %3282 = vmatpush1.msra.mxu0 %v3255
        %3283 = vmatprep.subr.mxu0 0.0
        %3284 = vmatpush1.msra.mxu0 %v3254
        %3285 = vmatprep.subr.mxu0 0.0
        %3286 = vmatpush1.msra.mxu0 %v3253
        %3287 = vmatprep.subr.mxu0 0.0
        %3288 = vmatpush1.msra.mxu0 %v3252
        %3289 = vmatprep.subr.mxu0 0.0
        %3290 = vmatpush1.msra.mxu0 %v3251
        %3291 = vmatprep.subr.mxu0 0.0
        %3292 = vmatpush1.msra.mxu0 %v3250
        %3293 = vmatprep.subr.mxu0 0.0
        %3294 = vmatpush1.msra.mxu0 %v3249
        %3295 = vmatprep.subr.mxu0 0.0
        %3296 = vmatpush1.msra.mxu0 %v3248
        %3297 = vmatprep.subr.mxu0 0.0
        %3298 = vmatpush1.msra.mxu0 %v3247
        %3299 = vmatprep.subr.mxu0 0.0
        %3300 = vmatpush2.msra.mxu0 0.0
        %3301 = vmatprep.subr.mxu0 0.0
        %3302 = vmatpush2.msra.mxu0 0.0
        %3303 = vmatprep.subr.mxu0 0.0
        %3304 = vmatpush2.msra.mxu0 0.0
        %3305 = vmatprep.subr.mxu0 0.0
        %3306 = vmatpush2.msra.mxu0 0.0
        %3307 = vmatprep.subr.mxu0 0.0
        %3308 = vmatpush2.msra.mxu0 0.0
        %3309 = vmatprep.subr.mxu0 0.0
        %3310 = vmatpush2.msra.mxu0 0.0
        %3311 = vmatprep.subr.mxu0 0.0
        %3312 = vmatpush2.msra.mxu0 0.0
        %3313 = vmatprep.subr.mxu0 0.0
        %3314 = vmatpush2.msra.mxu0 0.0
        %3315 = vmatprep.subr.mxu0 0.0
        %3316 = vmatpush2.msra.mxu0 0.0
        %3317 = vmatprep.subr.mxu0 0.0
        %3318 = vmatpush2.msra.mxu0 0.0
        %3319 = vmatprep.subr.mxu0 0.0
        %3320 = vmatpush2.msra.mxu0 0.0
        %3321 = vmatprep.subr.mxu0 0.0
        %3322 = vmatpush2.msra.mxu0 0.0
        %3323 = vmatprep.subr.mxu0 0.0
        %3324 = vmatpush2.msra.mxu0 %v3266
        %3325 = vmatprep.subr.mxu0 0.0
        %3326 = vmatpush2.msra.mxu0 %v3265
        %3327 = vmatprep.subr.mxu0 0.0
        %3328 = vmatpush2.msra.mxu0 %v3264
        %3329 = vmatprep.subr.mxu0 0.0
        %3330 = vmatpush2.msra.mxu0 %v3263
        %3331 = vmatprep.mubr.f32.mxu0 %v3143
        %3332 = vmatmul.mubr.f32.gmra.mxu0 %v3246
        %v3333 = vpop.f32.mrf.mxu0
        %v3334 = vadd.f32 0.0, %v3333
        %v3335 = vpop.f32.mrf.mxu0
        %3336 = vdwg.mxu0
        %v3337 = vxor.u32 %v3334, 2147483648
        %v3338 = vmul.f32 %v3337, 1.442695
        %v3339 = vpow.pop %v3338
        %v3340 = vadd.f32 %v3339, 1.0
        %v3341 = vrcp.pop %v3340
        %v3342 = vmul.f32 1.0, %v3341
        %v3343 = vtanh.pop %v3334
        %v3344 = vsel %vm605, %v3342, %v3343
        %v3345 = vmul.f32 %v3344, %v3018
        %3347 = vrot.lane.b32.xlu0 %v3344, 32
        %v3348 = vpop.permute.xlu0 %3347
        %v3350 = vmul.f32 %v3344, %v3348
        %3352 = vrot.lane.b32.xlu0 %v3350, 32
        %v3353 = vpop.permute.xlu0 %3352
        %v3355 = vadd.f32 %v3345, %v3353
        %v3356 = vtanh.pop %v3355
        %3358 = vrot.lane.b32.xlu0 %v3356, 32
        %v3359 = vpop.permute.xlu0 %3358
        %v3361 = vmul.f32 %v3344, %v3359
        %v3362 = vld [vmem:[#allocation3] sm:$0xff]
        %v3363 = vld [vmem:[#allocation3 + $0x8] sm:$0xff]
        %v3364 = vld [vmem:[#allocation3 + $0x10] sm:$0xff]
        %v3365 = vld [vmem:[#allocation3 + $0x18] sm:$0xff]
        %v3366 = vld [vmem:[#allocation3 + $0x20] sm:$0xff]
        %v3367 = vld [vmem:[#allocation3 + $0x28] sm:$0xff]
        %v3368 = vld [vmem:[#allocation3 + $0x30] sm:$0xff]
        %v3369 = vld [vmem:[#allocation3 + $0x38] sm:$0xff]
        %3371 = vrot.lane.b32.xlu0 %v3361, 64
        %v3372 = vpop.permute.xlu0 %3371
        %v3374 = vmul.f32 %v3362, %v3372
        %v3375 = vmul.f32 %v3363, %v3372
        %v3376 = vmul.f32 %v3364, %v3372
        %v3377 = vmul.f32 %v3365, %v3372
        %v3378 = vmul.f32 %v3366, %v3372
        %v3379 = vmul.f32 %v3367, %v3372
        %v3380 = vmul.f32 %v3368, %v3372
        %v3381 = vmul.f32 %v3369, %v3372
        %v3382 = vsel %vm388, %v3374, 0.0
        %3383 = vadd.xlane.f32.xlu0 %v3382
        %v3384 = vpop.xlane.xlu0 %3383
        %v3385 = vsel %vm388, %v3375, 0.0
        %3386 = vadd.xlane.f32.xlu0 %v3385
        %v3387 = vpop.xlane.xlu0 %3386
        %v3388 = vsel %vm388, %v3376, 0.0
        %3389 = vadd.xlane.f32.xlu0 %v3388
        %v3390 = vpop.xlane.xlu0 %3389
        %v3391 = vsel %vm388, %v3377, 0.0
        %3392 = vadd.xlane.f32.xlu0 %v3391
        %v3393 = vpop.xlane.xlu0 %3392
        %v3394 = vsel %vm388, %v3378, 0.0
        %3395 = vadd.xlane.f32.xlu0 %v3394
        %v3396 = vpop.xlane.xlu0 %3395
        %v3397 = vsel %vm388, %v3379, 0.0
        %3398 = vadd.xlane.f32.xlu0 %v3397
        %v3399 = vpop.xlane.xlu0 %3398
        %v3400 = vsel %vm388, %v3380, 0.0
        %3401 = vadd.xlane.f32.xlu0 %v3400
        %v3402 = vpop.xlane.xlu0 %3401
        %v3403 = vsel %vm388, %v3381, 0.0
        %3404 = vadd.xlane.f32.xlu0 %v3403
        %v3405 = vpop.xlane.xlu0 %3404
        %v3406 = vmax.f32 %v3384, %v3396
        %v3407 = vmax.f32 %v3387, %v3399
        %v3408 = vmax.f32 %v3390, %v3402
        %v3409 = vmax.f32 %v3393, %v3405
        %v3410 = vmax.f32 %v3406, %v3407
        %v3411 = vmax.f32 %v3408, %v3409
        %v3412 = vmax.f32 %v3410, %v3411
        %v3413 = vsub.f32 %v3384, %v3412
        %v3414 = vsub.f32 %v3387, %v3412
        %v3415 = vsub.f32 %v3390, %v3412
        %v3416 = vsub.f32 %v3393, %v3412
        %v3417 = vsub.f32 %v3396, %v3412
        %v3418 = vsub.f32 %v3399, %v3412
        %v3419 = vsub.f32 %v3402, %v3412
        %v3420 = vsub.f32 %v3405, %v3412
        %v3421 = vmul.f32 %v3413, 1.442695
        %v3422 = vpow.pop %v3421
        %v3423 = vmul.f32 %v3414, 1.442695
        %v3424 = vpow.pop %v3423
        %v3425 = vmul.f32 %v3415, 1.442695
        %v3426 = vpow.pop %v3425
        %v3427 = vmul.f32 %v3416, 1.442695
        %v3428 = vpow.pop %v3427
        %v3429 = vmul.f32 %v3417, 1.442695
        %v3430 = vpow.pop %v3429
        %v3431 = vmul.f32 %v3418, 1.442695
        %v3432 = vpow.pop %v3431
        %v3433 = vmul.f32 %v3419, 1.442695
        %v3434 = vpow.pop %v3433
        %v3435 = vmul.f32 %v3420, 1.442695
        %v3436 = vpow.pop %v3435
        %v3437 = vadd.f32 %v3422, %v3424
        %v3438 = vadd.f32 %v3437, %v3426
        %v3439 = vadd.f32 %v3438, %v3428
        %v3440 = vadd.f32 %v3439, %v3430
        %v3441 = vadd.f32 %v3440, %v3432
        %v3442 = vadd.f32 %v3441, %v3434
        %v3443 = vadd.f32 %v3442, %v3436
        %v3444 = vrcp.pop %v3443
        %v3445 = vmul.f32 %v3422, %v3444
        %v3446 = vmul.f32 %v3424, %v3444
        %v3447 = vmul.f32 %v3426, %v3444
        %v3448 = vmul.f32 %v3428, %v3444
        %v3449 = vmul.f32 %v3430, %v3444
        %v3450 = vmul.f32 %v3432, %v3444
        %v3451 = vmul.f32 %v3434, %v3444
        %v3452 = vmul.f32 %v3436, %v3444
        %v3453 = vld [vmem:[#allocation4] sm:$0xff]
        %v3454 = vld [vmem:[#allocation4 + $0x8] sm:$0xff]
        %v3455 = vld [vmem:[#allocation4 + $0x10] sm:$0xff]
        %v3456 = vld [vmem:[#allocation4 + $0x18] sm:$0xff]
        %v3457 = vld [vmem:[#allocation4 + $0x20] sm:$0xff]
        %v3458 = vld [vmem:[#allocation4 + $0x28] sm:$0xff]
        %v3459 = vld [vmem:[#allocation4 + $0x30] sm:$0xff]
        %v3460 = vld [vmem:[#allocation4 + $0x38] sm:$0xff]
        %v3461 = vmul.f32 %v3445, %v3453
        %v3462 = vmul.f32 %v3446, %v3454
        %v3463 = vmul.f32 %v3447, %v3455
        %v3464 = vmul.f32 %v3448, %v3456
        %v3465 = vmul.f32 %v3449, %v3457
        %v3466 = vmul.f32 %v3450, %v3458
        %v3467 = vmul.f32 %v3451, %v3459
        %v3468 = vmul.f32 %v3452, %v3460
        %v3469 = vadd.f32 %v3461, %v3462
        %v3470 = vadd.f32 %v3469, %v3463
        %v3471 = vadd.f32 %v3470, %v3464
        %v3472 = vadd.f32 %v3471, %v3465
        %v3473 = vadd.f32 %v3472, %v3466
        %v3474 = vadd.f32 %v3473, %v3467
        %v3475 = vadd.f32 %v3474, %v3468
        %v3476 = vld [vmem:[%s5] sm:$0xff]
        %v3477 = vld [vmem:[%s5 + $0x8] sm:$0xff]
        %v3478 = vld [vmem:[%s5 + $0x10] sm:$0xff]
        %v3479 = vld [vmem:[%s5 + $0x18] sm:$0xff]
        %v3480 = vsel %vm388, %v3372, 0
        %3482 = vmatprep.subr.mxu0 0.0
        %3483 = vmatpush1.msra.mxu0 0.0
        %3484 = vmatprep.subr.mxu0 0.0
        %3485 = vmatpush1.msra.mxu0 0.0
        %3486 = vmatprep.subr.mxu0 0.0
        %3487 = vmatpush1.msra.mxu0 0.0
        %3488 = vmatprep.subr.mxu0 0.0
        %3489 = vmatpush1.msra.mxu0 0.0
        %3490 = vmatprep.subr.mxu0 0.0
        %3491 = vmatpush1.msra.mxu0 0.0
        %3492 = vmatprep.subr.mxu0 0.0
        %3493 = vmatpush1.msra.mxu0 0.0
        %3494 = vmatprep.subr.mxu0 0.0
        %3495 = vmatpush1.msra.mxu0 0.0
        %3496 = vmatprep.subr.mxu0 0.0
        %3497 = vmatpush1.msra.mxu0 0.0
        %3498 = vmatprep.subr.mxu0 0.0
        %3499 = vmatpush1.msra.mxu0 0.0
        %3500 = vmatprep.subr.mxu0 0.0
        %3501 = vmatpush1.msra.mxu0 0.0
        %3502 = vmatprep.subr.mxu0 0.0
        %3503 = vmatpush1.msra.mxu0 0.0
        %3504 = vmatprep.subr.mxu0 0.0
        %3505 = vmatpush1.msra.mxu0 0.0
        %3506 = vmatprep.subr.mxu0 0.0
        %3507 = vmatpush1.msra.mxu0 %v3479
        %3508 = vmatprep.subr.mxu0 0.0
        %3509 = vmatpush1.msra.mxu0 %v3478
        %3510 = vmatprep.subr.mxu0 0.0
        %3511 = vmatpush1.msra.mxu0 %v3477
        %3512 = vmatprep.subr.mxu0 0.0
        %3513 = vmatpush1.msra.mxu0 %v3476
        %3514 = vmatprep.subr.mxu0 0.0
        %3515 = vmatpush2.msra.mxu0 0.0
        %3516 = vmatprep.subr.mxu0 0.0
        %3517 = vmatpush2.msra.mxu0 0.0
        %3518 = vmatprep.subr.mxu0 0.0
        %3519 = vmatpush2.msra.mxu0 0.0
        %3520 = vmatprep.subr.mxu0 0.0
        %3521 = vmatpush2.msra.mxu0 0.0
        %3522 = vmatprep.subr.mxu0 0.0
        %3523 = vmatpush2.msra.mxu0 0.0
        %3524 = vmatprep.subr.mxu0 0.0
        %3525 = vmatpush2.msra.mxu0 0.0
        %3526 = vmatprep.subr.mxu0 0.0
        %3527 = vmatpush2.msra.mxu0 0.0
        %3528 = vmatprep.subr.mxu0 0.0
        %3529 = vmatpush2.msra.mxu0 0.0
        %3530 = vmatprep.subr.mxu0 0.0
        %3531 = vmatpush2.msra.mxu0 0.0
        %3532 = vmatprep.subr.mxu0 0.0
        %3533 = vmatpush2.msra.mxu0 0.0
        %3534 = vmatprep.subr.mxu0 0.0
        %3535 = vmatpush2.msra.mxu0 0.0
        %3536 = vmatprep.subr.mxu0 0.0
        %3537 = vmatpush2.msra.mxu0 0.0
        %3538 = vmatprep.subr.mxu0 0.0
        %3539 = vmatpush2.msra.mxu0 0.0
        %3540 = vmatprep.subr.mxu0 0.0
        %3541 = vmatpush2.msra.mxu0 0.0
        %3542 = vmatprep.subr.mxu0 0.0
        %3543 = vmatpush2.msra.mxu0 0.0
        %3544 = vmatprep.subr.mxu0 0.0
        %3545 = vmatpush2.msra.mxu0 0.0
        %3546 = vmatprep.mubr.f32.mxu0 0.0
        %3547 = vmatmul.mubr.f32.gmra.mxu0 %v3480
        %v3548 = vpop.f32.mrf.mxu0
        %v3549 = vadd.f32 %v3475, %v3548
        %v3550 = vpop.f32.mrf.mxu0
        %3551 = vdwg.mxu0
        %v3552 = vld [vmem:[%s7] sm:$0x1]
        %v3554 = vlaneseq
        %v3555 = vshrl.u32 %v3554, 7
        %v3556 = vsub.s32 0, %v3555
        %v3557 = vrot.slane %v3552, %v3556
        %v3559 = vadd.f32 %v3549, %v3557
        %s3560 = scalar_lea.vmem %s366, 48 [#allocation6]
        %3561 = vst [vmem:[%s3560] sm:$0xff] %v3559
        %3562 = vmax.xlane.f32.xlu0 %v3559
        %v3563 = vpop.xlane.xlu0 %3562
        %vm3564 = vcmp.eq.f32.partialorder %v3559, %v3563
        %vm3565 = vmand %vm3564, %vm1879
        %v3566 = vsel %vm3565, %v368, 128
        %v3567 = vand.u32 %v3566, 65535
        %v3568 = vshra.s32 %v3566, 16
        %v3569 = vcvt.s32.f32 %v3567
        %v3570 = vcvt.s32.f32 %v3568
        %3571 = vmin.xlane.f32.xlu0 %v3570
        %v3572 = vpop.xlane.xlu0 %3571
        %vm3573 = vcmp.eq.f32.partialorder %v3570, %v3572
        %v3574 = vsel %vm3573, %v3569, inf
        %3575 = vmin.xlane.f32.xlu0 %v3574
        %v3576 = vpop.xlane.xlu0 %3575
        %v3577 = vcvt.f32.s32 %v3576
        %v3578 = vcvt.f32.s32 %v3572
        %v3579 = vshll.u32 %v3578, 16
        %v3580 = vadd.s32 %v3579, %v3577
        %vm3581 = vcmp.eq.s32.totalorder %v368, %v3580
        %v3582 = vsel %vm3581, 1, 0
        %v3583 = vcvt.s32.f32 %v3582
        %v3584 = vld [vmem:[%s4] sm:$0xff]
        %v3585 = vld [vmem:[%s4 + $0x8] sm:$0xff]
        %v3586 = vld [vmem:[%s4 + $0x10] sm:$0xff]
        %v3587 = vld [vmem:[%s4 + $0x18] sm:$0xff]
        %v3588 = vld [vmem:[%s4 + $0x20] sm:$0xff]
        %v3589 = vld [vmem:[%s4 + $0x28] sm:$0xff]
        %v3590 = vld [vmem:[%s4 + $0x30] sm:$0xff]
        %v3591 = vld [vmem:[%s4 + $0x38] sm:$0xff]
        %v3592 = vld [vmem:[%s4 + $0x40] sm:$0xff]
        %v3593 = vld [vmem:[%s4 + $0x48] sm:$0xff]
        %v3594 = vld [vmem:[%s4 + $0x50] sm:$0xff]
        %v3595 = vld [vmem:[%s4 + $0x58] sm:$0xff]
        %v3596 = vld [vmem:[%s4 + $0x60] sm:$0xff]
        %v3597 = vld [vmem:[%s4 + $0x68] sm:$0xff]
        %v3598 = vld [vmem:[%s4 + $0x70] sm:$0xff]
        %v3599 = vld [vmem:[%s4 + $0x78] sm:$0xff]
        %v3600 = vld [vmem:[%s4 + $0x80] sm:$0xff]
        %v3601 = vld [vmem:[%s4 + $0x88] sm:$0xff]
        %v3602 = vld [vmem:[%s4 + $0x90] sm:$0xff]
        %v3603 = vld [vmem:[%s4 + $0x98] sm:$0xff]
        %3604 = vmatprep.subr.mxu0 0.0
        %3605 = vmatpush1.msra.mxu0 %v3599
        %3606 = vmatprep.subr.mxu0 0.0
        %3607 = vmatpush1.msra.mxu0 %v3598
        %3608 = vmatprep.subr.mxu0 0.0
        %3609 = vmatpush1.msra.mxu0 %v3597
        %3610 = vmatprep.subr.mxu0 0.0
        %3611 = vmatpush1.msra.mxu0 %v3596
        %3612 = vmatprep.subr.mxu0 0.0
        %3613 = vmatpush1.msra.mxu0 %v3595
        %3614 = vmatprep.subr.mxu0 0.0
        %3615 = vmatpush1.msra.mxu0 %v3594
        %3616 = vmatprep.subr.mxu0 0.0
        %3617 = vmatpush1.msra.mxu0 %v3593
        %3618 = vmatprep.subr.mxu0 0.0
        %3619 = vmatpush1.msra.mxu0 %v3592
        %3620 = vmatprep.subr.mxu0 0.0
        %3621 = vmatpush1.msra.mxu0 %v3591
        %3622 = vmatprep.subr.mxu0 0.0
        %3623 = vmatpush1.msra.mxu0 %v3590
        %3624 = vmatprep.subr.mxu0 0.0
        %3625 = vmatpush1.msra.mxu0 %v3589
        %3626 = vmatprep.subr.mxu0 0.0
        %3627 = vmatpush1.msra.mxu0 %v3588
        %3628 = vmatprep.subr.mxu0 0.0
        %3629 = vmatpush1.msra.mxu0 %v3587
        %3630 = vmatprep.subr.mxu0 0.0
        %3631 = vmatpush1.msra.mxu0 %v3586
        %3632 = vmatprep.subr.mxu0 0.0
        %3633 = vmatpush1.msra.mxu0 %v3585
        %3634 = vmatprep.subr.mxu0 0.0
        %3635 = vmatpush1.msra.mxu0 %v3584
        %3636 = vmatprep.subr.mxu0 0.0
        %3637 = vmatpush2.msra.mxu0 0.0
        %3638 = vmatprep.subr.mxu0 0.0
        %3639 = vmatpush2.msra.mxu0 0.0
        %3640 = vmatprep.subr.mxu0 0.0
        %3641 = vmatpush2.msra.mxu0 0.0
        %3642 = vmatprep.subr.mxu0 0.0
        %3643 = vmatpush2.msra.mxu0 0.0
        %3644 = vmatprep.subr.mxu0 0.0
        %3645 = vmatpush2.msra.mxu0 0.0
        %3646 = vmatprep.subr.mxu0 0.0
        %3647 = vmatpush2.msra.mxu0 0.0
        %3648 = vmatprep.subr.mxu0 0.0
        %3649 = vmatpush2.msra.mxu0 0.0
        %3650 = vmatprep.subr.mxu0 0.0
        %3651 = vmatpush2.msra.mxu0 0.0
        %3652 = vmatprep.subr.mxu0 0.0
        %3653 = vmatpush2.msra.mxu0 0.0
        %3654 = vmatprep.subr.mxu0 0.0
        %3655 = vmatpush2.msra.mxu0 0.0
        %3656 = vmatprep.subr.mxu0 0.0
        %3657 = vmatpush2.msra.mxu0 0.0
        %3658 = vmatprep.subr.mxu0 0.0
        %3659 = vmatpush2.msra.mxu0 0.0
        %3660 = vmatprep.subr.mxu0 0.0
        %3661 = vmatpush2.msra.mxu0 %v3603
        %3662 = vmatprep.subr.mxu0 0.0
        %3663 = vmatpush2.msra.mxu0 %v3602
        %3664 = vmatprep.subr.mxu0 0.0
        %3665 = vmatpush2.msra.mxu0 %v3601
        %3666 = vmatprep.subr.mxu0 0.0
        %3667 = vmatpush2.msra.mxu0 %v3600
        %3668 = vmatprep.mubr.f32.mxu0 %v3480
        %3669 = vmatmul.mubr.f32.gmra.mxu0 %v3583
        %v3670 = vpop.f32.mrf.mxu0
        %v3671 = vadd.f32 0.0, %v3670
        %v3672 = vpop.f32.mrf.mxu0
        %3673 = vdwg.mxu0
        %v3674 = vxor.u32 %v3671, 2147483648
        %v3675 = vmul.f32 %v3674, 1.442695
        %v3676 = vpow.pop %v3675
        %v3677 = vadd.f32 %v3676, 1.0
        %v3678 = vrcp.pop %v3677
        %v3679 = vmul.f32 1.0, %v3678
        %v3680 = vtanh.pop %v3671
        %v3681 = vsel %vm605, %v3679, %v3680
        %v3682 = vmul.f32 %v3681, %v3355
        %3684 = vrot.lane.b32.xlu0 %v3681, 32
        %v3685 = vpop.permute.xlu0 %3684
        %v3687 = vmul.f32 %v3681, %v3685
        %3689 = vrot.lane.b32.xlu0 %v3687, 32
        %v3690 = vpop.permute.xlu0 %3689
        %v3692 = vadd.f32 %v3682, %v3690
        %v3693 = vtanh.pop %v3692
        %3695 = vrot.lane.b32.xlu0 %v3693, 32
        %v3696 = vpop.permute.xlu0 %3695
        %v3698 = vmul.f32 %v3681, %v3696
        %v3699 = vld [vmem:[#allocation3] sm:$0xff]
        %v3700 = vld [vmem:[#allocation3 + $0x8] sm:$0xff]
        %v3701 = vld [vmem:[#allocation3 + $0x10] sm:$0xff]
        %v3702 = vld [vmem:[#allocation3 + $0x18] sm:$0xff]
        %v3703 = vld [vmem:[#allocation3 + $0x20] sm:$0xff]
        %v3704 = vld [vmem:[#allocation3 + $0x28] sm:$0xff]
        %v3705 = vld [vmem:[#allocation3 + $0x30] sm:$0xff]
        %v3706 = vld [vmem:[#allocation3 + $0x38] sm:$0xff]
        %3708 = vrot.lane.b32.xlu0 %v3698, 64
        %v3709 = vpop.permute.xlu0 %3708
        %v3711 = vmul.f32 %v3699, %v3709
        %v3712 = vmul.f32 %v3700, %v3709
        %v3713 = vmul.f32 %v3701, %v3709
        %v3714 = vmul.f32 %v3702, %v3709
        %v3715 = vmul.f32 %v3703, %v3709
        %v3716 = vmul.f32 %v3704, %v3709
        %v3717 = vmul.f32 %v3705, %v3709
        %v3718 = vmul.f32 %v3706, %v3709
        %v3719 = vsel %vm388, %v3711, 0.0
        %3720 = vadd.xlane.f32.xlu0 %v3719
        %v3721 = vpop.xlane.xlu0 %3720
        %v3722 = vsel %vm388, %v3712, 0.0
        %3723 = vadd.xlane.f32.xlu0 %v3722
        %v3724 = vpop.xlane.xlu0 %3723
        %v3725 = vsel %vm388, %v3713, 0.0
        %3726 = vadd.xlane.f32.xlu0 %v3725
        %v3727 = vpop.xlane.xlu0 %3726
        %v3728 = vsel %vm388, %v3714, 0.0
        %3729 = vadd.xlane.f32.xlu0 %v3728
        %v3730 = vpop.xlane.xlu0 %3729
        %v3731 = vsel %vm388, %v3715, 0.0
        %3732 = vadd.xlane.f32.xlu0 %v3731
        %v3733 = vpop.xlane.xlu0 %3732
        %v3734 = vsel %vm388, %v3716, 0.0
        %3735 = vadd.xlane.f32.xlu0 %v3734
        %v3736 = vpop.xlane.xlu0 %3735
        %v3737 = vsel %vm388, %v3717, 0.0
        %3738 = vadd.xlane.f32.xlu0 %v3737
        %v3739 = vpop.xlane.xlu0 %3738
        %v3740 = vsel %vm388, %v3718, 0.0
        %3741 = vadd.xlane.f32.xlu0 %v3740
        %v3742 = vpop.xlane.xlu0 %3741
        %v3743 = vmax.f32 %v3721, %v3733
        %v3744 = vmax.f32 %v3724, %v3736
        %v3745 = vmax.f32 %v3727, %v3739
        %v3746 = vmax.f32 %v3730, %v3742
        %v3747 = vmax.f32 %v3743, %v3744
        %v3748 = vmax.f32 %v3745, %v3746
        %v3749 = vmax.f32 %v3747, %v3748
        %v3750 = vsub.f32 %v3721, %v3749
        %v3751 = vsub.f32 %v3724, %v3749
        %v3752 = vsub.f32 %v3727, %v3749
        %v3753 = vsub.f32 %v3730, %v3749
        %v3754 = vsub.f32 %v3733, %v3749
        %v3755 = vsub.f32 %v3736, %v3749
        %v3756 = vsub.f32 %v3739, %v3749
        %v3757 = vsub.f32 %v3742, %v3749
        %v3758 = vmul.f32 %v3750, 1.442695
        %v3759 = vpow.pop %v3758
        %v3760 = vmul.f32 %v3751, 1.442695
        %v3761 = vpow.pop %v3760
        %v3762 = vmul.f32 %v3752, 1.442695
        %v3763 = vpow.pop %v3762
        %v3764 = vmul.f32 %v3753, 1.442695
        %v3765 = vpow.pop %v3764
        %v3766 = vmul.f32 %v3754, 1.442695
        %v3767 = vpow.pop %v3766
        %v3768 = vmul.f32 %v3755, 1.442695
        %v3769 = vpow.pop %v3768
        %v3770 = vmul.f32 %v3756, 1.442695
        %v3771 = vpow.pop %v3770
        %v3772 = vmul.f32 %v3757, 1.442695
        %v3773 = vpow.pop %v3772
        %v3774 = vadd.f32 %v3759, %v3761
        %v3775 = vadd.f32 %v3774, %v3763
        %v3776 = vadd.f32 %v3775, %v3765
        %v3777 = vadd.f32 %v3776, %v3767
        %v3778 = vadd.f32 %v3777, %v3769
        %v3779 = vadd.f32 %v3778, %v3771
        %v3780 = vadd.f32 %v3779, %v3773
        %v3781 = vrcp.pop %v3780
        %v3782 = vmul.f32 %v3759, %v3781
        %v3783 = vmul.f32 %v3761, %v3781
        %v3784 = vmul.f32 %v3763, %v3781
        %v3785 = vmul.f32 %v3765, %v3781
        %v3786 = vmul.f32 %v3767, %v3781
        %v3787 = vmul.f32 %v3769, %v3781
        %v3788 = vmul.f32 %v3771, %v3781
        %v3789 = vmul.f32 %v3773, %v3781
        %v3790 = vld [vmem:[#allocation4] sm:$0xff]
        %v3791 = vld [vmem:[#allocation4 + $0x8] sm:$0xff]
        %v3792 = vld [vmem:[#allocation4 + $0x10] sm:$0xff]
        %v3793 = vld [vmem:[#allocation4 + $0x18] sm:$0xff]
        %v3794 = vld [vmem:[#allocation4 + $0x20] sm:$0xff]
        %v3795 = vld [vmem:[#allocation4 + $0x28] sm:$0xff]
        %v3796 = vld [vmem:[#allocation4 + $0x30] sm:$0xff]
        %v3797 = vld [vmem:[#allocation4 + $0x38] sm:$0xff]
        %v3798 = vmul.f32 %v3782, %v3790
        %v3799 = vmul.f32 %v3783, %v3791
        %v3800 = vmul.f32 %v3784, %v3792
        %v3801 = vmul.f32 %v3785, %v3793
        %v3802 = vmul.f32 %v3786, %v3794
        %v3803 = vmul.f32 %v3787, %v3795
        %v3804 = vmul.f32 %v3788, %v3796
        %v3805 = vmul.f32 %v3789, %v3797
        %v3806 = vadd.f32 %v3798, %v3799
        %v3807 = vadd.f32 %v3806, %v3800
        %v3808 = vadd.f32 %v3807, %v3801
        %v3809 = vadd.f32 %v3808, %v3802
        %v3810 = vadd.f32 %v3809, %v3803
        %v3811 = vadd.f32 %v3810, %v3804
        %v3812 = vadd.f32 %v3811, %v3805
        %v3813 = vld [vmem:[%s5] sm:$0xff]
        %v3814 = vld [vmem:[%s5 + $0x8] sm:$0xff]
        %v3815 = vld [vmem:[%s5 + $0x10] sm:$0xff]
        %v3816 = vld [vmem:[%s5 + $0x18] sm:$0xff]
        %v3817 = vsel %vm388, %v3709, 0
        %3819 = vmatprep.subr.mxu0 0.0
        %3820 = vmatpush1.msra.mxu0 0.0
        %3821 = vmatprep.subr.mxu0 0.0
        %3822 = vmatpush1.msra.mxu0 0.0
        %3823 = vmatprep.subr.mxu0 0.0
        %3824 = vmatpush1.msra.mxu0 0.0
        %3825 = vmatprep.subr.mxu0 0.0
        %3826 = vmatpush1.msra.mxu0 0.0
        %3827 = vmatprep.subr.mxu0 0.0
        %3828 = vmatpush1.msra.mxu0 0.0
        %3829 = vmatprep.subr.mxu0 0.0
        %3830 = vmatpush1.msra.mxu0 0.0
        %3831 = vmatprep.subr.mxu0 0.0
        %3832 = vmatpush1.msra.mxu0 0.0
        %3833 = vmatprep.subr.mxu0 0.0
        %3834 = vmatpush1.msra.mxu0 0.0
        %3835 = vmatprep.subr.mxu0 0.0
        %3836 = vmatpush1.msra.mxu0 0.0
        %3837 = vmatprep.subr.mxu0 0.0
        %3838 = vmatpush1.msra.mxu0 0.0
        %3839 = vmatprep.subr.mxu0 0.0
        %3840 = vmatpush1.msra.mxu0 0.0
        %3841 = vmatprep.subr.mxu0 0.0
        %3842 = vmatpush1.msra.mxu0 0.0
        %3843 = vmatprep.subr.mxu0 0.0
        %3844 = vmatpush1.msra.mxu0 %v3816
        %3845 = vmatprep.subr.mxu0 0.0
        %3846 = vmatpush1.msra.mxu0 %v3815
        %3847 = vmatprep.subr.mxu0 0.0
        %3848 = vmatpush1.msra.mxu0 %v3814
        %3849 = vmatprep.subr.mxu0 0.0
        %3850 = vmatpush1.msra.mxu0 %v3813
        %3851 = vmatprep.subr.mxu0 0.0
        %3852 = vmatpush2.msra.mxu0 0.0
        %3853 = vmatprep.subr.mxu0 0.0
        %3854 = vmatpush2.msra.mxu0 0.0
        %3855 = vmatprep.subr.mxu0 0.0
        %3856 = vmatpush2.msra.mxu0 0.0
        %3857 = vmatprep.subr.mxu0 0.0
        %3858 = vmatpush2.msra.mxu0 0.0
        %3859 = vmatprep.subr.mxu0 0.0
        %3860 = vmatpush2.msra.mxu0 0.0
        %3861 = vmatprep.subr.mxu0 0.0
        %3862 = vmatpush2.msra.mxu0 0.0
        %3863 = vmatprep.subr.mxu0 0.0
        %3864 = vmatpush2.msra.mxu0 0.0
        %3865 = vmatprep.subr.mxu0 0.0
        %3866 = vmatpush2.msra.mxu0 0.0
        %3867 = vmatprep.subr.mxu0 0.0
        %3868 = vmatpush2.msra.mxu0 0.0
        %3869 = vmatprep.subr.mxu0 0.0
        %3870 = vmatpush2.msra.mxu0 0.0
        %3871 = vmatprep.subr.mxu0 0.0
        %3872 = vmatpush2.msra.mxu0 0.0
        %3873 = vmatprep.subr.mxu0 0.0
        %3874 = vmatpush2.msra.mxu0 0.0
        %3875 = vmatprep.subr.mxu0 0.0
        %3876 = vmatpush2.msra.mxu0 0.0
        %3877 = vmatprep.subr.mxu0 0.0
        %3878 = vmatpush2.msra.mxu0 0.0
        %3879 = vmatprep.subr.mxu0 0.0
        %3880 = vmatpush2.msra.mxu0 0.0
        %3881 = vmatprep.subr.mxu0 0.0
        %3882 = vmatpush2.msra.mxu0 0.0
        %3883 = vmatprep.mubr.f32.mxu0 0.0
        %3884 = vmatmul.mubr.f32.gmra.mxu0 %v3817
        %v3885 = vpop.f32.mrf.mxu0
        %v3886 = vadd.f32 %v3812, %v3885
        %v3887 = vpop.f32.mrf.mxu0
        %3888 = vdwg.mxu0
        %v3889 = vld [vmem:[%s7] sm:$0x1]
        %v3891 = vlaneseq
        %v3892 = vshrl.u32 %v3891, 7
        %v3893 = vsub.s32 0, %v3892
        %v3894 = vrot.slane %v3889, %v3893
        %v3896 = vadd.f32 %v3886, %v3894
        %s3897 = scalar_lea.vmem %s366, 56 [#allocation6]
        %3898 = vst [vmem:[%s3897] sm:$0xff] %v3896
        %s3899 = sand.u32 %s203, 1
        %s3900 = scalar_lea.sflag [#allocation7], %s3899
        %s3901 = sand.u32 %s203, 1
        %s3902 = smul.addr %s3901, 64
        %s3903 = scalar_lea.vmem [#allocation6], %s3902
        // Predicated region
        $region91: #{full_model_forward.1} parent=85 // pred_check
          %p3904 = pneg %p213
        $region92: #{full_model_forward.1} parent=85 // pred_check_branch
          %3906 = sbr.rel (%p3904) target = $region94
        $region93: #{full_model_forward.1} parent=85 // pred_region
          %s3908 = ssub.s32 1024, 1024
          %3909 = vsyncadd %s3900, %s3908
          %s3910 = smul.addr %s22, 128
          %s3911 = scalar_lea.hbm %s8, %s3910
          %s3912 = sshll.u32 %s3903, 4
          %s3913 = int_to_ptr.vmem [resolvable:$true] %s3912
          %3918 = dma.vmem_to_hbm [thread:$0]  %s3913, 1024, %s3911, %s3900, 128, 256, 8
        $region94: #{full_model_forward.1} parent=85 // pred_fallthru
          _
      $region86: #{full_model_forward.1} parent=5 // pred_fallthru
        _
      %p3919 = scmp.le.s32.totalorder 2, %s17
      // Predicated region
      $region95: #{full_model_forward.1} parent=5 // pred_check
        %p3920 = pneg %p3919
      $region96: #{full_model_forward.1} parent=5 // pred_check_branch
        %3922 = sbr.rel (%p3920) target = $region98
      $region97: #{full_model_forward.1} parent=5 // pred_region
        %s3923 = ssub.s32 %s17, 2
        // Predicated region
        $region99: #{full_model_forward.1} parent=97 // pred_check
          %p3924 = pneg %p219
        $region100: #{full_model_forward.1} parent=97 // pred_check_branch
          %3926 = sbr.rel (%p3924) target = $region102
        $region101: #{full_model_forward.1} parent=97 // pred_region
          %s3927 = sand.u32 %s204, 1
          %s3928 = scalar_lea.sflag [#allocation7], %s3927
          %s3929 = sand.u32 %s204, 1
          %s3930 = smul.addr %s3929, 64
          %s3931 = scalar_lea.vmem [#allocation6], %s3930
          %3932 = dma.done %s3928, 1024
        $region102: #{full_model_forward.1} parent=97 // pred_fallthru
          _
      $region98: #{full_model_forward.1} parent=5 // pred_fallthru
        _
    $region6: #{full_model_forward.1} parent=1 // loop_footer
      %s21 = sadd.s32 1, %s17
    $region7: #{full_model_forward.1} parent=1 // loop_footer_branch
      %16 = sbr.rel target = $region3
    $region8: #{full_model_forward.1} parent=1 // loop_exit
      _
    %3933 = vsyncpa [#allocation7], 1
    %s3934 = scalar_lea.sflag [#allocation7], 1
    %3935 = vsyncpa %s3934, 1

</llo_original>
